<compile_context>
chip_gen: v7x
topology: tpu7x:2x2x1
jax: 0.10.0
libtpu: 0.0.40
codegen_flags: <defaults>
</compile_context>

<pallas_src>
import functools

import jax
import jax.numpy as jnp
from jax.experimental import pallas as pl
from jax.experimental.pallas import tpu as pltpu


# --------------------------------------------------------------------------
# Kernel
# --------------------------------------------------------------------------
def make_pm25_kernel(cnn_layer: int):
    """Per-grid-step kernel: block-diag conv stack on a lane-dense (bt, L*F)
    slab, then a single fused (mean + fc) lane reduce."""

    def kernel(*refs):
        x_ref = refs[0]
        conv_refs = refs[1:1 + 2 * cnn_layer]                 # (W_blk, b_tiled)
        wvec_ref, c_ref, o_ref = refs[1 + 2 * cnn_layer:]

        h = x_ref[...]                                        # (bt, L*F) f32

        # Conv1d(k=1) stack: per-position matmul == block-diagonal matmul on
        # the lane-dense row.  Cast operands to the weight dtype (bf16 by
        # default) right before the MXU; accumulate / bias / ReLU in f32.
        for i in range(cnn_layer):
            w = conv_refs[2 * i][...]                         # (L*Cin, L*H)
            b = conv_refs[2 * i + 1][...]                     # (1, L*H) f32
            h = jnp.maximum(
                jnp.dot(h.astype(w.dtype), w,
                        preferred_element_type=jnp.float32) + b, 0.0)

        # mean over L + 2*cnn_layer positions  AND  Linear(H, 1), folded:
        #   out[b] = sum_lanes( h[b, :] * tile(w_fc/total_len, L) ) + c
        # (padding-column + fc-bias contribution is the scalar c).
        out_col = jnp.sum(h * wvec_ref[...], axis=-1)         # (bt,)
        o_ref[...] = (out_col[None, :] + c_ref[...]).astype(o_ref.dtype)

    return kernel


# --------------------------------------------------------------------------
# Wrapper helpers
# --------------------------------------------------------------------------
def _tensorcores_per_chip() -> int:
    """Best-effort TensorCores-per-chip (v7x: 2, v5e/v6e: 1)."""
    try:
        info = pltpu.get_tpu_info()
        for attr in ("num_cores", "core_count", "num_tensorcores",
                     "tensorcores_per_chip", "cores_per_chip"):
            v = getattr(info, attr, None)
            if isinstance(v, int) and v >= 1:
                return max(1, min(int(v), 2))
    except Exception:
        pass
    try:
        kind = jax.devices()[0].device_kind.lower()
        if "7" in kind:                      # "TPU v7x" / "TPU7x"
            return 2
    except Exception:
        pass
    return 1


def _padding_column_sum(conv_weights, conv_biases, hidden, mm_dtype):
    """Batch-independent contribution of the padding=1 columns.

    Layer d's two zero-padded columns become relu(bias_d) and then flow
    through layers d+1..end like normal columns.  Mirrors the kernel's
    mm_dtype matmul precision (f32 accumulation, f32 bias/ReLU)."""
    cnn_layer = len(conv_weights)
    pad_sum = jnp.zeros((1, hidden), jnp.float32)
    for d in range(cnn_layer):
        p = jnp.maximum(conv_biases[d].astype(jnp.float32).reshape(1, -1), 0.0)
        for j in range(d + 1, cnn_layer):
            w = jnp.transpose(conv_weights[j][:, :, 0]).astype(mm_dtype)
            b = conv_biases[j].astype(jnp.float32).reshape(1, -1)
            p = jnp.maximum(
                jnp.dot(p.astype(mm_dtype), w,
                        preferred_element_type=jnp.float32) + b, 0.0)
        pad_sum = pad_sum + 2.0 * p
    return pad_sum                                            # (1, H) f32


# --------------------------------------------------------------------------
# Public forward
# --------------------------------------------------------------------------
@functools.partial(jax.jit, static_argnames=("bt", "mm_dtype"))
def pm25_cnn_forward(x, conv_weights, conv_biases, w_fc, b_fc, *,
                     bt=None, mm_dtype=jnp.bfloat16):
    """x: (B, L, F); conv_weights[i]: (H, C_in, 1); conv_biases[i]: (H,);
    w_fc: (1, H); b_fc: (1,).  Returns (B, 1) float32.

    bt: batch rows per grid step (None -> auto: whole batch in one step on
        v5e/v6e, split over the 2 TensorCores on v7x, lane-aligned to 128).
    mm_dtype: MXU operand dtype.  bf16 (default) is the fast path on every
        generation (f32 MXU is multi-pass emulated); use jnp.float32 for
        tight numerical checks against an f32 reference.
    """
    conv_weights = list(conv_weights)
    conv_biases = list(conv_biases)
    B, L, F = x.shape
    cnn_layer = len(conv_weights)
    H = conv_weights[0].shape[0]
    total_len = L + 2 * cnn_layer
    inv_len = 1.0 / float(total_len)

    # ---- per-generation grid sizing (one step per TensorCore) -------------
    if bt is None:
        n_cores = _tensorcores_per_chip()
        per_core = -(-B // n_cores)
        bt = -(-per_core // 128) * 128          # lane-aligned batch tile
        bt = max(128, min(bt, 1024))            # VMEM-safe cap for huge B
    n_tiles = pl.cdiv(B, bt)
    b_pad = n_tiles * bt

    # ---- lane-dense input: (B, L, F) -> (B, L*F), one row per sample ------
    # Trailing-dim collapse is layout-preserving; pad only if B % bt != 0.
    x_rows = x.reshape(B, L * F)
    if b_pad != B:
        x_rows = jnp.pad(x_rows, ((0, b_pad - B), (0, 0)))

    # ---- block-diagonal conv weights + tiled biases ------------------------
    eye_l = jnp.eye(L, dtype=jnp.float32)
    conv_args = []
    for w, b in zip(conv_weights, conv_biases):
        wt = jnp.transpose(w[:, :, 0]).astype(jnp.float32)        # (Cin, H)
        conv_args.append(jnp.kron(eye_l, wt).astype(mm_dtype))    # (L*Cin, L*H)
        conv_args.append(jnp.tile(b.astype(jnp.float32).reshape(1, H), (1, L)))

    # ---- folded epilogue constants -----------------------------------------
    pad_sum = _padding_column_sum(conv_weights, conv_biases, H, mm_dtype)
    wfc = w_fc.astype(jnp.float32).reshape(1, H)
    w_vec = jnp.tile(wfc * inv_len, (1, L))                       # (1, L*H)
    c = pad_sum @ (wfc.T * inv_len) \
        + b_fc.astype(jnp.float32).reshape(1, 1)                  # (1, 1)

    # ---- BlockSpecs: streamed x, everything else VMEM-resident -------------
    in_specs = [pl.BlockSpec((bt, L * F), lambda i: (i, 0))]
    for a in conv_args:
        in_specs.append(pl.BlockSpec(a.shape, lambda i: (0, 0)))
    in_specs.append(pl.BlockSpec((1, L * H), lambda i: (0, 0)))   # w_vec
    in_specs.append(pl.BlockSpec((1, 1), lambda i: (0, 0)))       # c

    out = pl.pallas_call(
        make_pm25_kernel(cnn_layer),
        out_shape=jax.ShapeDtypeStruct((1, b_pad), jnp.float32),
        grid=(n_tiles,),
        in_specs=in_specs,
        out_specs=pl.BlockSpec((1, bt), lambda i: (0, i)),        # lane-dense
        compiler_params=pltpu.CompilerParams(
            dimension_semantics=("parallel",)),
    )(x_rows, *conv_args, w_vec, c)

    # Layout plumbing back to the PyTorch (B, 1) shape.
    return out[0, :B].reshape(B, 1)


# --------------------------------------------------------------------------
# Pure-JAX reference (mirrors the PyTorch forward exactly; dropout = identity)
# --------------------------------------------------------------------------
def pm25_cnn_reference(x, conv_weights, conv_biases, w_fc, b_fc):
    h = jnp.transpose(x, (0, 2, 1))                     # (B, C, L) like NCL
    for w, b in zip(conv_weights, conv_biases):
        h = jnp.pad(h, ((0, 0), (0, 0), (1, 1)))        # padding=1
        h = jnp.einsum('bcl,oc->bol', h, w[:, :, 0]) + b[None, :, None]
        h = jnp.maximum(h, 0.0)                         # ReLU
    m = jnp.mean(h, axis=2)                             # mean over padded L
    return m @ w_fc.T + b_fc[None, :]                   # (B, 1)


# --------------------------------------------------------------------------
# Demo / self-check
# --------------------------------------------------------------------------
if __name__ == "__main__":
    # batch, seq, n_features, hidden, conv layers (L*F = 128, L*H = 256 lanes)
    B, L, F, H, CNN_LAYER = 256, 8, 16, 32, 2

    key = jax.random.PRNGKey(0)
    keys = jax.random.split(key, 2 * CNN_LAYER + 3)

    x = jax.random.normal(keys[0], (B, L, F), dtype=jnp.float32)

    conv_weights, conv_biases = [], []
    in_ch = F
    for li in range(CNN_LAYER):
        conv_weights.append(
            0.2 * jax.random.normal(keys[1 + 2 * li], (H, in_ch, 1),
                                    dtype=jnp.float32))
        conv_biases.append(
            0.1 * jax.random.normal(keys[2 + 2 * li], (H,), dtype=jnp.float32))
        in_ch = H

    w_fc = 0.2 * jax.random.normal(keys[-2], (1, H), dtype=jnp.float32)
    b_fc = 0.1 * jax.random.normal(keys[-1], (1,), dtype=jnp.float32)

    cw, cb = tuple(conv_weights), tuple(conv_biases)
    ref = pm25_cnn_reference(x, conv_weights, conv_biases, w_fc, b_fc)

    # 1) f32-MXU path, auto grid (1 step on v5e/v6e, 2 on v7x): tight check.
    out_f32 = jax.block_until_ready(
        pm25_cnn_forward(x, cw, cb, w_fc, b_fc, mm_dtype=jnp.float32))
    assert out_f32.shape == (B, 1)
    assert jnp.allclose(out_f32, ref, rtol=1e-3, atol=1e-3)

    # 2) Forced 2-tile grid: validates the multi-step / lane-dense out path.
    out_2t = jax.block_until_ready(
        pm25_cnn_forward(x, cw, cb, w_fc, b_fc, bt=128, mm_dtype=jnp.float32))
    assert jnp.allclose(out_2t, ref, rtol=1e-3, atol=1e-3)

    # 3) bf16-MXU path (the performance default): looser tolerance vs f32 ref.
    out_bf16 = jax.block_until_ready(
        pm25_cnn_forward(x, cw, cb, w_fc, b_fc, mm_dtype=jnp.bfloat16))
    assert jnp.allclose(out_bf16, ref, rtol=2e-2, atol=2e-2)

    print("KERNEL_OK")
</pallas_src>

<mosaic_0001>
module attributes {stable_mosaic.version = 11 : i64} {
  func.func @kernel(%arg0: i32, %arg1: memref<256x128xf32, #tpu.memory_space<vmem>>, %arg2: memref<128x256xf32, #tpu.memory_space<vmem>>, %arg3: memref<1x256xf32, #tpu.memory_space<vmem>>, %arg4: memref<256x256xf32, #tpu.memory_space<vmem>>, %arg5: memref<1x256xf32, #tpu.memory_space<vmem>>, %arg6: memref<1x256xf32, #tpu.memory_space<vmem>>, %arg7: memref<1x1xf32, #tpu.memory_space<vmem>>, %arg8: memref<1x256xf32, #tpu.memory_space<vmem>>) attributes {dimension_semantics = [#tpu.dimension_semantics<parallel>], iteration_bounds = array<i64: 1>, scalar_prefetch = 0 : i64, scratch_operands = 0 : i64, tpu.core_type = #tpu.core_type<tc>, window_params = [{transform_indices = @transform_0, window_bounds = array<i64: 256, 128>}, {pipeline_mode = #tpu.pipeline_mode<synchronous>, transform_indices = @transform_1, window_bounds = array<i64: 128, 256>}, {pipeline_mode = #tpu.pipeline_mode<synchronous>, transform_indices = @transform_2, window_bounds = array<i64: 1, 256>}, {pipeline_mode = #tpu.pipeline_mode<synchronous>, transform_indices = @transform_3, window_bounds = array<i64: 256, 256>}, {pipeline_mode = #tpu.pipeline_mode<synchronous>, transform_indices = @transform_4, window_bounds = array<i64: 1, 256>}, {pipeline_mode = #tpu.pipeline_mode<synchronous>, transform_indices = @transform_5, window_bounds = array<i64: 1, 256>}, {pipeline_mode = #tpu.pipeline_mode<synchronous>, transform_indices = @transform_6, window_bounds = array<i64: 1, 1>}, {transform_indices = @transform_7, window_bounds = array<i64: 1, 256>}]} {
    %c0 = arith.constant 0 : index
    %c0_0 = arith.constant 0 : index
    %0 = vector.load %arg1[%c0, %c0_0] : memref<256x128xf32, #tpu.memory_space<vmem>>, vector<256x128xf32>
    %c0_1 = arith.constant 0 : index
    %c0_2 = arith.constant 0 : index
    %1 = vector.load %arg2[%c0_1, %c0_2] : memref<128x256xf32, #tpu.memory_space<vmem>>, vector<128x256xf32>
    %c0_3 = arith.constant 0 : index
    %c0_4 = arith.constant 0 : index
    %2 = vector.load %arg3[%c0_3, %c0_4] : memref<1x256xf32, #tpu.memory_space<vmem>>, vector<1x256xf32>
    %cst = arith.constant dense<0.000000e+00> : vector<256x256xf32>
    %3 = tpu.matmul %0, %1, %cst {dimension_numbers = #tpu.dot_dimension_numbers<[1], [0], [0], [1], [0, 0, 1, 1], [], []>} : vector<256x128xf32>, vector<128x256xf32>, vector<256x256xf32> -> vector<256x256xf32>
    %4 = vector.broadcast %2 : vector<1x256xf32> to vector<256x256xf32>
    %5 = arith.addf %3, %4 : vector<256x256xf32>
    %cst_5 = arith.constant 0.000000e+00 : f32
    %6 = vector.broadcast %cst_5 : f32 to vector<256x256xf32>
    %7 = arith.maximumf %5, %6 : vector<256x256xf32>
    %c0_6 = arith.constant 0 : index
    %c0_7 = arith.constant 0 : index
    %8 = vector.load %arg4[%c0_6, %c0_7] : memref<256x256xf32, #tpu.memory_space<vmem>>, vector<256x256xf32>
    %c0_8 = arith.constant 0 : index
    %c0_9 = arith.constant 0 : index
    %9 = vector.load %arg5[%c0_8, %c0_9] : memref<1x256xf32, #tpu.memory_space<vmem>>, vector<1x256xf32>
    %cst_10 = arith.constant dense<0.000000e+00> : vector<256x256xf32>
    %10 = tpu.matmul %7, %8, %cst_10 {dimension_numbers = #tpu.dot_dimension_numbers<[1], [0], [0], [1], [0, 0, 1, 1], [], []>} : vector<256x256xf32>, vector<256x256xf32>, vector<256x256xf32> -> vector<256x256xf32>
    %11 = vector.broadcast %9 : vector<1x256xf32> to vector<256x256xf32>
    %12 = arith.addf %10, %11 : vector<256x256xf32>
    %cst_11 = arith.constant 0.000000e+00 : f32
    %13 = vector.broadcast %cst_11 : f32 to vector<256x256xf32>
    %14 = arith.maximumf %12, %13 : vector<256x256xf32>
    %c0_12 = arith.constant 0 : index
    %c0_13 = arith.constant 0 : index
    %15 = vector.load %arg6[%c0_12, %c0_13] : memref<1x256xf32, #tpu.memory_space<vmem>>, vector<1x256xf32>
    %16 = vector.broadcast %15 : vector<1x256xf32> to vector<256x256xf32>
    %17 = arith.mulf %14, %16 : vector<256x256xf32>
    %cst_14 = arith.constant dense<0.000000e+00> : vector<256xf32>
    %18 = vector.multi_reduction <add>, %17, %cst_14 [1] : vector<256x256xf32> to vector<256xf32>
    %19 = vector.shape_cast %18 : vector<256xf32> to vector<1x256xf32>
    %c0_15 = arith.constant 0 : index
    %c0_16 = arith.constant 0 : index
    %20 = vector.load %arg7[%c0_15, %c0_16] : memref<1x1xf32, #tpu.memory_space<vmem>>, vector<1x1xf32>
    %21 = vector.broadcast %20 : vector<1x1xf32> to vector<1x256xf32>
    %22 = arith.addf %19, %21 : vector<1x256xf32>
    %c0_17 = arith.constant 0 : index
    %c0_18 = arith.constant 0 : index
    %23 = vector.load %arg8[%c0_17, %c0_18] : memref<1x256xf32, #tpu.memory_space<vmem>>, vector<1x256xf32>
    tpu.vector_store %arg8[%c0_17, %c0_18], %22 {strides = array<i32>} : memref<1x256xf32, #tpu.memory_space<vmem>>, vector<1x256xf32>,
    return
  }
  func.func @transform_0(%arg0: i32) -> (i32, i32) {
    %c0_i32 = arith.constant 0 : i32
    %c0_i32_0 = arith.constant 0 : i32
    return %arg0, %c0_i32 : i32, i32
  }
  func.func @transform_1(%arg0: i32) -> (i32, i32) {
    %c0_i32 = arith.constant 0 : i32
    %c0_i32_0 = arith.constant 0 : i32
    %c0_i32_1 = arith.constant 0 : i32
    return %c0_i32, %c0_i32_0 : i32, i32
  }
  func.func @transform_2(%arg0: i32) -> (i32, i32) {
    %c0_i32 = arith.constant 0 : i32
    %c0_i32_0 = arith.constant 0 : i32
    %c0_i32_1 = arith.constant 0 : i32
    return %c0_i32, %c0_i32_0 : i32, i32
  }
  func.func @transform_3(%arg0: i32) -> (i32, i32) {
    %c0_i32 = arith.constant 0 : i32
    %c0_i32_0 = arith.constant 0 : i32
    %c0_i32_1 = arith.constant 0 : i32
    return %c0_i32, %c0_i32_0 : i32, i32
  }
  func.func @transform_4(%arg0: i32) -> (i32, i32) {
    %c0_i32 = arith.constant 0 : i32
    %c0_i32_0 = arith.constant 0 : i32
    %c0_i32_1 = arith.constant 0 : i32
    return %c0_i32, %c0_i32_0 : i32, i32
  }
  func.func @transform_5(%arg0: i32) -> (i32, i32) {
    %c0_i32 = arith.constant 0 : i32
    %c0_i32_0 = arith.constant 0 : i32
    %c0_i32_1 = arith.constant 0 : i32
    return %c0_i32, %c0_i32_0 : i32, i32
  }
  func.func @transform_6(%arg0: i32) -> (i32, i32) {
    %c0_i32 = arith.constant 0 : i32
    %c0_i32_0 = arith.constant 0 : i32
    %c0_i32_1 = arith.constant 0 : i32
    return %c0_i32, %c0_i32_0 : i32, i32
  }
  func.func @transform_7(%arg0: i32) -> (i32, i32) {
    %c0_i32 = arith.constant 0 : i32
    %c0_i32_0 = arith.constant 0 : i32
    return %c0_i32, %arg0 : i32, i32
  }
}

</mosaic_0001>

<llo_original>
// kernel: pm25_cnn_forward.1
$region0: #{pm25_cnn_forward.1}
  #allocation0 [shape = 'u32[]', space=smem, size = 0x4, offset = 0x4, fixed_abs, tag = 'smem constant byte address 0x4 - core index']
  #allocation1 [shape = 'u32[144,128]{1,0:T(1,128)}', space=vmem, size = 0x12000, scoped, tag = 'internal scratch']
  #allocation2 [shape = 'f32[1,1]{1,0:T(1,128)S(1)}', space=vmem, size = 0x200, scoped, tag = 'scoped memory for pm25_cnn_forward.1']
  %s0 = inlined_call_operand.vmem [shape: f32[256,128], index: 0, kind: input, shape index: {}]
  %s1 = inlined_call_operand.vmem [shape: f32[128,256], index: 1, kind: input, shape index: {}]
  %s2 = inlined_call_operand.vmem [shape: f32[1,256], index: 2, kind: input, shape index: {}]
  %s3 = inlined_call_operand.vmem [shape: f32[256,256], index: 3, kind: input, shape index: {}]
  %s4 = inlined_call_operand.vmem [shape: f32[1,256], index: 4, kind: input, shape index: {}]
  %s5 = inlined_call_operand.vmem [shape: f32[1,256], index: 5, kind: input, shape index: {}]
  %s6 = inlined_call_operand.<no memory space> [shape: f32[1,1], index: 6, kind: input, shape index: {}]
  %s7 = inlined_call_operand.hbm [shape: f32[1,256], index: 7, kind: output, shape index: {}]
  %s8 = sld [smem:[#allocation0]]
  $region38: #{pm25_cnn_forward.1} parent=0
    _
  %s10 = ssub.s32 1, %s8
  %s11 = scalar_select 0, %s10, %s8
  %v12 = vstv %s6
  %13 = vst [vmem:[#allocation2] sm:$0x1] %v12
  $region1: #{pm25_cnn_forward.1} parent=0
    #allocation3 [shape = 'u8[1024]{0}', space=vmem, size = 0x400, scoped, tag = 'output window, operand 0, single buffered']
    #allocation4 [shape = 's32[1]{0}', space=sflag, size = 0x4, scoped, tag = 'scoped memory for pm25_cnn_forward.1']
    %14 = vsyncpa [#allocation4], 0
    // Predicated region
    $region2: #{pm25_cnn_forward.1} parent=1 // pred_check
      _
    $region3: #{pm25_cnn_forward.1} parent=1 // pred_check_branch
      %16 = sbr.rel (0) target = $region5
    $region4: #{pm25_cnn_forward.1} parent=1 // pred_region
      _
    $region5: #{pm25_cnn_forward.1} parent=1 // pred_fallthru
      _
    // Predicated region
    $region6: #{pm25_cnn_forward.1} parent=1 // pred_check
      _
    $region7: #{pm25_cnn_forward.1} parent=1 // pred_check_branch
      %18 = sbr.rel (0) target = $region9
    $region8: #{pm25_cnn_forward.1} parent=1 // pred_region
      _
    $region9: #{pm25_cnn_forward.1} parent=1 // pred_fallthru
      _
    // Predicated region
    $region10: #{pm25_cnn_forward.1} parent=1 // pred_check
      _
    $region11: #{pm25_cnn_forward.1} parent=1 // pred_check_branch
      %20 = sbr.rel (0) target = $region13
    $region12: #{pm25_cnn_forward.1} parent=1 // pred_region
      _
    $region13: #{pm25_cnn_forward.1} parent=1 // pred_fallthru
      _
    // Predicated region
    $region14: #{pm25_cnn_forward.1} parent=1 // pred_check
      _
    $region15: #{pm25_cnn_forward.1} parent=1 // pred_check_branch
      %22 = sbr.rel (0) target = $region17
    $region16: #{pm25_cnn_forward.1} parent=1 // pred_region
      _
    $region17: #{pm25_cnn_forward.1} parent=1 // pred_fallthru
      _
    // Predicated region
    $region18: #{pm25_cnn_forward.1} parent=1 // pred_check
      _
    $region19: #{pm25_cnn_forward.1} parent=1 // pred_check_branch
      %24 = sbr.rel (0) target = $region21
    $region20: #{pm25_cnn_forward.1} parent=1 // pred_region
      _
    $region21: #{pm25_cnn_forward.1} parent=1 // pred_fallthru
      _
    // Predicated region
    $region22: #{pm25_cnn_forward.1} parent=1 // pred_check
      _
    $region23: #{pm25_cnn_forward.1} parent=1 // pred_check_branch
      %26 = sbr.rel (0) target = $region25
    $region24: #{pm25_cnn_forward.1} parent=1 // pred_region
      _
    $region25: #{pm25_cnn_forward.1} parent=1 // pred_fallthru
      _
    // Predicated region
    $region26: #{pm25_cnn_forward.1} parent=1 // pred_check
      _
    $region27: #{pm25_cnn_forward.1} parent=1 // pred_check_branch
      %28 = sbr.rel (0) target = $region29
    $region28: #{pm25_cnn_forward.1} parent=1 // pred_region
      _
    $region29: #{pm25_cnn_forward.1} parent=1 // pred_fallthru
      _
    %v29 = vld [vmem:[%s0] sm:$0xff]
    %v30 = vld [vmem:[%s0 + $0x8] sm:$0xff]
    %v31 = vld [vmem:[%s0 + $0x10] sm:$0xff]
    %v32 = vld [vmem:[%s0 + $0x18] sm:$0xff]
    %v33 = vld [vmem:[%s0 + $0x20] sm:$0xff]
    %v34 = vld [vmem:[%s0 + $0x28] sm:$0xff]
    %v35 = vld [vmem:[%s0 + $0x30] sm:$0xff]
    %v36 = vld [vmem:[%s0 + $0x38] sm:$0xff]
    %v37 = vld [vmem:[%s0 + $0x40] sm:$0xff]
    %v38 = vld [vmem:[%s0 + $0x48] sm:$0xff]
    %v39 = vld [vmem:[%s0 + $0x50] sm:$0xff]
    %v40 = vld [vmem:[%s0 + $0x58] sm:$0xff]
    %v41 = vld [vmem:[%s0 + $0x60] sm:$0xff]
    %v42 = vld [vmem:[%s0 + $0x68] sm:$0xff]
    %v43 = vld [vmem:[%s0 + $0x70] sm:$0xff]
    %v44 = vld [vmem:[%s0 + $0x78] sm:$0xff]
    %v45 = vld [vmem:[%s0 + $0x80] sm:$0xff]
    %v46 = vld [vmem:[%s0 + $0x88] sm:$0xff]
    %v47 = vld [vmem:[%s0 + $0x90] sm:$0xff]
    %v48 = vld [vmem:[%s0 + $0x98] sm:$0xff]
    %v49 = vld [vmem:[%s0 + $0xa0] sm:$0xff]
    %v50 = vld [vmem:[%s0 + $0xa8] sm:$0xff]
    %v51 = vld [vmem:[%s0 + $0xb0] sm:$0xff]
    %v52 = vld [vmem:[%s0 + $0xb8] sm:$0xff]
    %v53 = vld [vmem:[%s0 + $0xc0] sm:$0xff]
    %v54 = vld [vmem:[%s0 + $0xc8] sm:$0xff]
    %v55 = vld [vmem:[%s0 + $0xd0] sm:$0xff]
    %v56 = vld [vmem:[%s0 + $0xd8] sm:$0xff]
    %v57 = vld [vmem:[%s0 + $0xe0] sm:$0xff]
    %v58 = vld [vmem:[%s0 + $0xe8] sm:$0xff]
    %v59 = vld [vmem:[%s0 + $0xf0] sm:$0xff]
    %v60 = vld [vmem:[%s0 + $0xf8] sm:$0xff]
    %v61 = vld [vmem:[%s1] sm:$0xff]
    %v62 = vld [vmem:[%s1 + $0x8] sm:$0xff]
    %v63 = vld [vmem:[%s1 + $0x10] sm:$0xff]
    %v64 = vld [vmem:[%s1 + $0x18] sm:$0xff]
    %v65 = vld [vmem:[%s1 + $0x20] sm:$0xff]
    %v66 = vld [vmem:[%s1 + $0x28] sm:$0xff]
    %v67 = vld [vmem:[%s1 + $0x30] sm:$0xff]
    %v68 = vld [vmem:[%s1 + $0x38] sm:$0xff]
    %v69 = vld [vmem:[%s1 + $0x40] sm:$0xff]
    %v70 = vld [vmem:[%s1 + $0x48] sm:$0xff]
    %v71 = vld [vmem:[%s1 + $0x50] sm:$0xff]
    %v72 = vld [vmem:[%s1 + $0x58] sm:$0xff]
    %v73 = vld [vmem:[%s1 + $0x60] sm:$0xff]
    %v74 = vld [vmem:[%s1 + $0x68] sm:$0xff]
    %v75 = vld [vmem:[%s1 + $0x70] sm:$0xff]
    %v76 = vld [vmem:[%s1 + $0x78] sm:$0xff]
    %v77 = vld [vmem:[%s1 + $0x80] sm:$0xff]
    %v78 = vld [vmem:[%s1 + $0x88] sm:$0xff]
    %v79 = vld [vmem:[%s1 + $0x90] sm:$0xff]
    %v80 = vld [vmem:[%s1 + $0x98] sm:$0xff]
    %v81 = vld [vmem:[%s1 + $0xa0] sm:$0xff]
    %v82 = vld [vmem:[%s1 + $0xa8] sm:$0xff]
    %v83 = vld [vmem:[%s1 + $0xb0] sm:$0xff]
    %v84 = vld [vmem:[%s1 + $0xb8] sm:$0xff]
    %v85 = vld [vmem:[%s1 + $0xc0] sm:$0xff]
    %v86 = vld [vmem:[%s1 + $0xc8] sm:$0xff]
    %v87 = vld [vmem:[%s1 + $0xd0] sm:$0xff]
    %v88 = vld [vmem:[%s1 + $0xd8] sm:$0xff]
    %v89 = vld [vmem:[%s1 + $0xe0] sm:$0xff]
    %v90 = vld [vmem:[%s1 + $0xe8] sm:$0xff]
    %v91 = vld [vmem:[%s1 + $0xf0] sm:$0xff]
    %v92 = vld [vmem:[%s1 + $0xf8] sm:$0xff]
    %v93 = vld [vmem:[%s2] sm:$0x3]
    %v95 = vlaneseq
    %v96 = vshrl.u32 %v95, 7
    %v97 = vsub.s32 0, %v96
    %v98 = vrot.slane %v93, %v97
    %v99 = vlaneseq
    %v100 = vshrl.u32 %v99, 7
    %v101 = vsub.s32 1, %v100
    %v102 = vrot.slane %v93, %v101
    %105 = vmatprep.subr.mxu0 %v62
    %106 = vmatpush1.msra.mxu0 %v61
    %107 = vmatprep.subr.mxu0 %v64
    %108 = vmatpush1.msra.mxu0 %v63
    %109 = vmatprep.subr.mxu0 %v66
    %110 = vmatpush1.msra.mxu0 %v65
    %111 = vmatprep.subr.mxu0 %v68
    %112 = vmatpush1.msra.mxu0 %v67
    %113 = vmatprep.subr.mxu0 %v70
    %114 = vmatpush1.msra.mxu0 %v69
    %115 = vmatprep.subr.mxu0 %v72
    %116 = vmatpush1.msra.mxu0 %v71
    %117 = vmatprep.subr.mxu0 %v74
    %118 = vmatpush1.msra.mxu0 %v73
    %119 = vmatprep.subr.mxu0 %v76
    %120 = vmatpush1.msra.mxu0 %v75
    %121 = vmatprep.subr.mxu0 %v78
    %122 = vmatpush1.msra.mxu0 %v77
    %123 = vmatprep.subr.mxu0 %v80
    %124 = vmatpush1.msra.mxu0 %v79
    %125 = vmatprep.subr.mxu0 %v82
    %126 = vmatpush1.msra.mxu0 %v81
    %127 = vmatprep.subr.mxu0 %v84
    %128 = vmatpush1.msra.mxu0 %v83
    %129 = vmatprep.subr.mxu0 %v86
    %130 = vmatpush1.msra.mxu0 %v85
    %131 = vmatprep.subr.mxu0 %v88
    %132 = vmatpush1.msra.mxu0 %v87
    %133 = vmatprep.subr.mxu0 %v90
    %134 = vmatpush1.msra.mxu0 %v89
    %135 = vmatprep.subr.mxu0 %v92
    %136 = vmatpush1.msra.mxu0 %v91
    %137 = vmatprep.subr.mxu0 0.0
    %138 = vmatpush1.msra.mxu0 0.0
    %139 = vmatprep.subr.mxu0 0.0
    %140 = vmatpush1.msra.mxu0 0.0
    %141 = vmatprep.subr.mxu0 0.0
    %142 = vmatpush1.msra.mxu0 0.0
    %143 = vmatprep.subr.mxu0 0.0
    %144 = vmatpush1.msra.mxu0 0.0
    %145 = vmatprep.subr.mxu0 0.0
    %146 = vmatpush1.msra.mxu0 0.0
    %147 = vmatprep.subr.mxu0 0.0
    %148 = vmatpush1.msra.mxu0 0.0
    %149 = vmatprep.subr.mxu0 0.0
    %150 = vmatpush1.msra.mxu0 0.0
    %151 = vmatprep.subr.mxu0 0.0
    %152 = vmatpush1.msra.mxu0 0.0
    %153 = vmatprep.subr.mxu0 0.0
    %154 = vmatpush1.msra.mxu0 0.0
    %155 = vmatprep.subr.mxu0 0.0
    %156 = vmatpush1.msra.mxu0 0.0
    %157 = vmatprep.subr.mxu0 0.0
    %158 = vmatpush1.msra.mxu0 0.0
    %159 = vmatprep.subr.mxu0 0.0
    %160 = vmatpush1.msra.mxu0 0.0
    %161 = vmatprep.subr.mxu0 0.0
    %162 = vmatpush1.msra.mxu0 0.0
    %163 = vmatprep.subr.mxu0 0.0
    %164 = vmatpush1.msra.mxu0 0.0
    %165 = vmatprep.subr.mxu0 0.0
    %166 = vmatpush1.msra.mxu0 0.0
    %167 = vmatprep.subr.mxu0 0.0
    %168 = vmatpush1.msra.mxu0 0.0
    %169 = vmatprep.mubr.f32.mxu0 0.0
    %170 = vmatmul.mubr.f32.gmra.mrb[0].mxu0 %v29
    %v171 = vpop.f32.mrb[0].mxu0
    %v172 = vadd.f32 %v98, %v171
    %v173 = vpop.f32.mrb[0].mxu0
    %v174 = vadd.f32 %v102, %v173
    %175 = vmatprep.mubr.f32.mxu0 0.0
    %176 = vmatmul.mubr.f32.gmra.mrb[0].mxu0 %v30
    %v177 = vpop.f32.mrb[0].mxu0
    %v178 = vadd.f32 %v98, %v177
    %v179 = vpop.f32.mrb[0].mxu0
    %v180 = vadd.f32 %v102, %v179
    %181 = vmatprep.mubr.f32.mxu0 0.0
    %182 = vmatmul.mubr.f32.gmra.mrb[0].mxu0 %v31
    %v183 = vpop.f32.mrb[0].mxu0
    %v184 = vadd.f32 %v98, %v183
    %v185 = vpop.f32.mrb[0].mxu0
    %v186 = vadd.f32 %v102, %v185
    %187 = vmatprep.mubr.f32.mxu0 0.0
    %188 = vmatmul.mubr.f32.gmra.mrb[0].mxu0 %v32
    %v189 = vpop.f32.mrb[0].mxu0
    %v190 = vadd.f32 %v98, %v189
    %v191 = vpop.f32.mrb[0].mxu0
    %v192 = vadd.f32 %v102, %v191
    %193 = vmatprep.mubr.f32.mxu0 0.0
    %194 = vmatmul.mubr.f32.gmra.mrb[0].mxu0 %v33
    %v195 = vpop.f32.mrb[0].mxu0
    %v196 = vadd.f32 %v98, %v195
    %v197 = vpop.f32.mrb[0].mxu0
    %v198 = vadd.f32 %v102, %v197
    %199 = vmatprep.mubr.f32.mxu0 0.0
    %200 = vmatmul.mubr.f32.gmra.mrb[0].mxu0 %v34
    %v201 = vpop.f32.mrb[0].mxu0
    %v202 = vadd.f32 %v98, %v201
    %v203 = vpop.f32.mrb[0].mxu0
    %v204 = vadd.f32 %v102, %v203
    %205 = vmatprep.mubr.f32.mxu0 0.0
    %206 = vmatmul.mubr.f32.gmra.mrb[0].mxu0 %v35
    %v207 = vpop.f32.mrb[0].mxu0
    %v208 = vadd.f32 %v98, %v207
    %v209 = vpop.f32.mrb[0].mxu0
    %v210 = vadd.f32 %v102, %v209
    %211 = vmatprep.mubr.f32.mxu0 0.0
    %212 = vmatmul.mubr.f32.gmra.mrb[0].mxu0 %v36
    %v213 = vpop.f32.mrb[0].mxu0
    %v214 = vadd.f32 %v98, %v213
    %v215 = vpop.f32.mrb[0].mxu0
    %v216 = vadd.f32 %v102, %v215
    %217 = vmatprep.mubr.f32.mxu0 0.0
    %218 = vmatmul.mubr.f32.gmra.mrb[0].mxu0 %v37
    %v219 = vpop.f32.mrb[0].mxu0
    %v220 = vadd.f32 %v98, %v219
    %v221 = vpop.f32.mrb[0].mxu0
    %v222 = vadd.f32 %v102, %v221
    %223 = vmatprep.mubr.f32.mxu0 0.0
    %224 = vmatmul.mubr.f32.gmra.mrb[0].mxu0 %v38
    %v225 = vpop.f32.mrb[0].mxu0
    %v226 = vadd.f32 %v98, %v225
    %v227 = vpop.f32.mrb[0].mxu0
    %v228 = vadd.f32 %v102, %v227
    %229 = vmatprep.mubr.f32.mxu0 0.0
    %230 = vmatmul.mubr.f32.gmra.mrb[0].mxu0 %v39
    %v231 = vpop.f32.mrb[0].mxu0
    %v232 = vadd.f32 %v98, %v231
    %v233 = vpop.f32.mrb[0].mxu0
    %v234 = vadd.f32 %v102, %v233
    %235 = vmatprep.mubr.f32.mxu0 0.0
    %236 = vmatmul.mubr.f32.gmra.mrb[0].mxu0 %v40
    %v237 = vpop.f32.mrb[0].mxu0
    %v238 = vadd.f32 %v98, %v237
    %v239 = vpop.f32.mrb[0].mxu0
    %v240 = vadd.f32 %v102, %v239
    %241 = vmatprep.mubr.f32.mxu0 0.0
    %242 = vmatmul.mubr.f32.gmra.mrb[0].mxu0 %v41
    %v243 = vpop.f32.mrb[0].mxu0
    %v244 = vadd.f32 %v98, %v243
    %v245 = vpop.f32.mrb[0].mxu0
    %v246 = vadd.f32 %v102, %v245
    %247 = vmatprep.mubr.f32.mxu0 0.0
    %248 = vmatmul.mubr.f32.gmra.mrb[0].mxu0 %v42
    %v249 = vpop.f32.mrb[0].mxu0
    %v250 = vadd.f32 %v98, %v249
    %v251 = vpop.f32.mrb[0].mxu0
    %v252 = vadd.f32 %v102, %v251
    %253 = vmatprep.mubr.f32.mxu0 0.0
    %254 = vmatmul.mubr.f32.gmra.mrb[0].mxu0 %v43
    %v255 = vpop.f32.mrb[0].mxu0
    %v256 = vadd.f32 %v98, %v255
    %v257 = vpop.f32.mrb[0].mxu0
    %v258 = vadd.f32 %v102, %v257
    %259 = vmatprep.mubr.f32.mxu0 0.0
    %260 = vmatmul.mubr.f32.gmra.mrb[0].mxu0 %v44
    %v261 = vpop.f32.mrb[0].mxu0
    %v262 = vadd.f32 %v98, %v261
    %v263 = vpop.f32.mrb[0].mxu0
    %v264 = vadd.f32 %v102, %v263
    %265 = vmatprep.mubr.f32.mxu0 0.0
    %266 = vmatmul.mubr.f32.gmra.mrb[0].mxu0 %v45
    %v267 = vpop.f32.mrb[0].mxu0
    %v268 = vadd.f32 %v98, %v267
    %v269 = vpop.f32.mrb[0].mxu0
    %v270 = vadd.f32 %v102, %v269
    %271 = vmatprep.mubr.f32.mxu0 0.0
    %272 = vmatmul.mubr.f32.gmra.mrb[0].mxu0 %v46
    %v273 = vpop.f32.mrb[0].mxu0
    %v274 = vadd.f32 %v98, %v273
    %v275 = vpop.f32.mrb[0].mxu0
    %v276 = vadd.f32 %v102, %v275
    %277 = vmatprep.mubr.f32.mxu0 0.0
    %278 = vmatmul.mubr.f32.gmra.mrb[0].mxu0 %v47
    %v279 = vpop.f32.mrb[0].mxu0
    %v280 = vadd.f32 %v98, %v279
    %v281 = vpop.f32.mrb[0].mxu0
    %v282 = vadd.f32 %v102, %v281
    %283 = vmatprep.mubr.f32.mxu0 0.0
    %284 = vmatmul.mubr.f32.gmra.mrb[0].mxu0 %v48
    %v285 = vpop.f32.mrb[0].mxu0
    %v286 = vadd.f32 %v98, %v285
    %v287 = vpop.f32.mrb[0].mxu0
    %v288 = vadd.f32 %v102, %v287
    %289 = vmatprep.mubr.f32.mxu0 0.0
    %290 = vmatmul.mubr.f32.gmra.mrb[0].mxu0 %v49
    %v291 = vpop.f32.mrb[0].mxu0
    %v292 = vadd.f32 %v98, %v291
    %v293 = vpop.f32.mrb[0].mxu0
    %v294 = vadd.f32 %v102, %v293
    %295 = vmatprep.mubr.f32.mxu0 0.0
    %296 = vmatmul.mubr.f32.gmra.mrb[0].mxu0 %v50
    %v297 = vpop.f32.mrb[0].mxu0
    %v298 = vadd.f32 %v98, %v297
    %v299 = vpop.f32.mrb[0].mxu0
    %v300 = vadd.f32 %v102, %v299
    %301 = vmatprep.mubr.f32.mxu0 0.0
    %302 = vmatmul.mubr.f32.gmra.mrb[0].mxu0 %v51
    %v303 = vpop.f32.mrb[0].mxu0
    %v304 = vadd.f32 %v98, %v303
    %v305 = vpop.f32.mrb[0].mxu0
    %v306 = vadd.f32 %v102, %v305
    %307 = vmatprep.mubr.f32.mxu0 0.0
    %308 = vmatmul.mubr.f32.gmra.mrb[0].mxu0 %v52
    %v309 = vpop.f32.mrb[0].mxu0
    %v310 = vadd.f32 %v98, %v309
    %v311 = vpop.f32.mrb[0].mxu0
    %v312 = vadd.f32 %v102, %v311
    %313 = vmatprep.mubr.f32.mxu0 0.0
    %314 = vmatmul.mubr.f32.gmra.mrb[0].mxu0 %v53
    %v315 = vpop.f32.mrb[0].mxu0
    %v316 = vadd.f32 %v98, %v315
    %v317 = vpop.f32.mrb[0].mxu0
    %v318 = vadd.f32 %v102, %v317
    %319 = vmatprep.mubr.f32.mxu0 0.0
    %320 = vmatmul.mubr.f32.gmra.mrb[0].mxu0 %v54
    %v321 = vpop.f32.mrb[0].mxu0
    %v322 = vadd.f32 %v98, %v321
    %v323 = vpop.f32.mrb[0].mxu0
    %v324 = vadd.f32 %v102, %v323
    %325 = vmatprep.mubr.f32.mxu0 0.0
    %326 = vmatmul.mubr.f32.gmra.mrb[0].mxu0 %v55
    %v327 = vpop.f32.mrb[0].mxu0
    %v328 = vadd.f32 %v98, %v327
    %v329 = vpop.f32.mrb[0].mxu0
    %v330 = vadd.f32 %v102, %v329
    %331 = vmatprep.mubr.f32.mxu0 0.0
    %332 = vmatmul.mubr.f32.gmra.mrb[0].mxu0 %v56
    %v333 = vpop.f32.mrb[0].mxu0
    %v334 = vadd.f32 %v98, %v333
    %v335 = vpop.f32.mrb[0].mxu0
    %v336 = vadd.f32 %v102, %v335
    %337 = vmatprep.mubr.f32.mxu0 0.0
    %338 = vmatmul.mubr.f32.gmra.mrb[0].mxu0 %v57
    %v339 = vpop.f32.mrb[0].mxu0
    %v340 = vadd.f32 %v98, %v339
    %v341 = vpop.f32.mrb[0].mxu0
    %v342 = vadd.f32 %v102, %v341
    %343 = vmatprep.mubr.f32.mxu0 0.0
    %344 = vmatmul.mubr.f32.gmra.mrb[0].mxu0 %v58
    %v345 = vpop.f32.mrb[0].mxu0
    %v346 = vadd.f32 %v98, %v345
    %v347 = vpop.f32.mrb[0].mxu0
    %v348 = vadd.f32 %v102, %v347
    %349 = vmatprep.mubr.f32.mxu0 0.0
    %350 = vmatmul.mubr.f32.gmra.mrb[0].mxu0 %v59
    %v351 = vpop.f32.mrb[0].mxu0
    %v352 = vadd.f32 %v98, %v351
    %v353 = vpop.f32.mrb[0].mxu0
    %v354 = vadd.f32 %v102, %v353
    %355 = vmatprep.mubr.f32.mxu0 0.0
    %356 = vmatmul.mubr.f32.gmra.mrb[0].mxu0 %v60
    %v357 = vpop.f32.mrb[0].mxu0
    %v358 = vadd.f32 %v98, %v357
    %v359 = vpop.f32.mrb[0].mxu0
    %v360 = vadd.f32 %v102, %v359
    %361 = vdwg.mxu0
    %v362 = vmax.f32 %v172, 0.0
    %v363 = vmax.f32 %v174, 0.0
    %v364 = vmax.f32 %v178, 0.0
    %v365 = vmax.f32 %v180, 0.0
    %v366 = vmax.f32 %v184, 0.0
    %v367 = vmax.f32 %v186, 0.0
    %v368 = vmax.f32 %v190, 0.0
    %v369 = vmax.f32 %v192, 0.0
    %v370 = vmax.f32 %v196, 0.0
    %v371 = vmax.f32 %v198, 0.0
    %v372 = vmax.f32 %v202, 0.0
    %v373 = vmax.f32 %v204, 0.0
    %v374 = vmax.f32 %v208, 0.0
    %v375 = vmax.f32 %v210, 0.0
    %v376 = vmax.f32 %v214, 0.0
    %v377 = vmax.f32 %v216, 0.0
    %v378 = vmax.f32 %v220, 0.0
    %v379 = vmax.f32 %v222, 0.0
    %v380 = vmax.f32 %v226, 0.0
    %v381 = vmax.f32 %v228, 0.0
    %v382 = vmax.f32 %v232, 0.0
    %v383 = vmax.f32 %v234, 0.0
    %v384 = vmax.f32 %v238, 0.0
    %v385 = vmax.f32 %v240, 0.0
    %v386 = vmax.f32 %v244, 0.0
    %v387 = vmax.f32 %v246, 0.0
    %v388 = vmax.f32 %v250, 0.0
    %v389 = vmax.f32 %v252, 0.0
    %v390 = vmax.f32 %v256, 0.0
    %v391 = vmax.f32 %v258, 0.0
    %v392 = vmax.f32 %v262, 0.0
    %v393 = vmax.f32 %v264, 0.0
    %v394 = vmax.f32 %v268, 0.0
    %v395 = vmax.f32 %v270, 0.0
    %v396 = vmax.f32 %v274, 0.0
    %v397 = vmax.f32 %v276, 0.0
    %v398 = vmax.f32 %v280, 0.0
    %v399 = vmax.f32 %v282, 0.0
    %v400 = vmax.f32 %v286, 0.0
    %v401 = vmax.f32 %v288, 0.0
    %v402 = vmax.f32 %v292, 0.0
    %v403 = vmax.f32 %v294, 0.0
    %v404 = vmax.f32 %v298, 0.0
    %v405 = vmax.f32 %v300, 0.0
    %v406 = vmax.f32 %v304, 0.0
    %v407 = vmax.f32 %v306, 0.0
    %v408 = vmax.f32 %v310, 0.0
    %v409 = vmax.f32 %v312, 0.0
    %v410 = vmax.f32 %v316, 0.0
    %v411 = vmax.f32 %v318, 0.0
    %v412 = vmax.f32 %v322, 0.0
    %v413 = vmax.f32 %v324, 0.0
    %v414 = vmax.f32 %v328, 0.0
    %v415 = vmax.f32 %v330, 0.0
    %v416 = vmax.f32 %v334, 0.0
    %v417 = vmax.f32 %v336, 0.0
    %v418 = vmax.f32 %v340, 0.0
    %v419 = vmax.f32 %v342, 0.0
    %v420 = vmax.f32 %v346, 0.0
    %v421 = vmax.f32 %v348, 0.0
    %v422 = vmax.f32 %v352, 0.0
    %v423 = vmax.f32 %v354, 0.0
    %v424 = vmax.f32 %v358, 0.0
    %v425 = vmax.f32 %v360, 0.0
    %v426 = vld [vmem:[%s3] sm:$0xff]
    %v427 = vld [vmem:[%s3 + $0x8] sm:$0xff]
    %v428 = vld [vmem:[%s3 + $0x10] sm:$0xff]
    %v429 = vld [vmem:[%s3 + $0x18] sm:$0xff]
    %v430 = vld [vmem:[%s3 + $0x20] sm:$0xff]
    %v431 = vld [vmem:[%s3 + $0x28] sm:$0xff]
    %v432 = vld [vmem:[%s3 + $0x30] sm:$0xff]
    %v433 = vld [vmem:[%s3 + $0x38] sm:$0xff]
    %v434 = vld [vmem:[%s3 + $0x40] sm:$0xff]
    %v435 = vld [vmem:[%s3 + $0x48] sm:$0xff]
    %v436 = vld [vmem:[%s3 + $0x50] sm:$0xff]
    %v437 = vld [vmem:[%s3 + $0x58] sm:$0xff]
    %v438 = vld [vmem:[%s3 + $0x60] sm:$0xff]
    %v439 = vld [vmem:[%s3 + $0x68] sm:$0xff]
    %v440 = vld [vmem:[%s3 + $0x70] sm:$0xff]
    %v441 = vld [vmem:[%s3 + $0x78] sm:$0xff]
    %v442 = vld [vmem:[%s3 + $0x80] sm:$0xff]
    %v443 = vld [vmem:[%s3 + $0x88] sm:$0xff]
    %v444 = vld [vmem:[%s3 + $0x90] sm:$0xff]
    %v445 = vld [vmem:[%s3 + $0x98] sm:$0xff]
    %v446 = vld [vmem:[%s3 + $0xa0] sm:$0xff]
    %v447 = vld [vmem:[%s3 + $0xa8] sm:$0xff]
    %v448 = vld [vmem:[%s3 + $0xb0] sm:$0xff]
    %v449 = vld [vmem:[%s3 + $0xb8] sm:$0xff]
    %v450 = vld [vmem:[%s3 + $0xc0] sm:$0xff]
    %v451 = vld [vmem:[%s3 + $0xc8] sm:$0xff]
    %v452 = vld [vmem:[%s3 + $0xd0] sm:$0xff]
    %v453 = vld [vmem:[%s3 + $0xd8] sm:$0xff]
    %v454 = vld [vmem:[%s3 + $0xe0] sm:$0xff]
    %v455 = vld [vmem:[%s3 + $0xe8] sm:$0xff]
    %v456 = vld [vmem:[%s3 + $0xf0] sm:$0xff]
    %v457 = vld [vmem:[%s3 + $0xf8] sm:$0xff]
    %v458 = vld [vmem:[%s3 + $0x100] sm:$0xff]
    %v459 = vld [vmem:[%s3 + $0x108] sm:$0xff]
    %v460 = vld [vmem:[%s3 + $0x110] sm:$0xff]
    %v461 = vld [vmem:[%s3 + $0x118] sm:$0xff]
    %v462 = vld [vmem:[%s3 + $0x120] sm:$0xff]
    %v463 = vld [vmem:[%s3 + $0x128] sm:$0xff]
    %v464 = vld [vmem:[%s3 + $0x130] sm:$0xff]
    %v465 = vld [vmem:[%s3 + $0x138] sm:$0xff]
    %v466 = vld [vmem:[%s3 + $0x140] sm:$0xff]
    %v467 = vld [vmem:[%s3 + $0x148] sm:$0xff]
    %v468 = vld [vmem:[%s3 + $0x150] sm:$0xff]
    %v469 = vld [vmem:[%s3 + $0x158] sm:$0xff]
    %v470 = vld [vmem:[%s3 + $0x160] sm:$0xff]
    %v471 = vld [vmem:[%s3 + $0x168] sm:$0xff]
    %v472 = vld [vmem:[%s3 + $0x170] sm:$0xff]
    %v473 = vld [vmem:[%s3 + $0x178] sm:$0xff]
    %v474 = vld [vmem:[%s3 + $0x180] sm:$0xff]
    %v475 = vld [vmem:[%s3 + $0x188] sm:$0xff]
    %v476 = vld [vmem:[%s3 + $0x190] sm:$0xff]
    %v477 = vld [vmem:[%s3 + $0x198] sm:$0xff]
    %v478 = vld [vmem:[%s3 + $0x1a0] sm:$0xff]
    %v479 = vld [vmem:[%s3 + $0x1a8] sm:$0xff]
    %v480 = vld [vmem:[%s3 + $0x1b0] sm:$0xff]
    %v481 = vld [vmem:[%s3 + $0x1b8] sm:$0xff]
    %v482 = vld [vmem:[%s3 + $0x1c0] sm:$0xff]
    %v483 = vld [vmem:[%s3 + $0x1c8] sm:$0xff]
    %v484 = vld [vmem:[%s3 + $0x1d0] sm:$0xff]
    %v485 = vld [vmem:[%s3 + $0x1d8] sm:$0xff]
    %v486 = vld [vmem:[%s3 + $0x1e0] sm:$0xff]
    %v487 = vld [vmem:[%s3 + $0x1e8] sm:$0xff]
    %v488 = vld [vmem:[%s3 + $0x1f0] sm:$0xff]
    %v489 = vld [vmem:[%s3 + $0x1f8] sm:$0xff]
    %v490 = vld [vmem:[%s4] sm:$0x3]
    %v492 = vlaneseq
    %v493 = vshrl.u32 %v492, 7
    %v494 = vsub.s32 0, %v493
    %v495 = vrot.slane %v490, %v494
    %v496 = vlaneseq
    %v497 = vshrl.u32 %v496, 7
    %v498 = vsub.s32 1, %v497
    %v499 = vrot.slane %v490, %v498
    %502 = vmatprep.subr.mxu0 %v427
    %503 = vmatpush1.msra.mxu0 %v426
    %504 = vmatprep.subr.mxu0 %v429
    %505 = vmatpush1.msra.mxu0 %v428
    %506 = vmatprep.subr.mxu0 %v431
    %507 = vmatpush1.msra.mxu0 %v430
    %508 = vmatprep.subr.mxu0 %v433
    %509 = vmatpush1.msra.mxu0 %v432
    %510 = vmatprep.subr.mxu0 %v435
    %511 = vmatpush1.msra.mxu0 %v434
    %512 = vmatprep.subr.mxu0 %v437
    %513 = vmatpush1.msra.mxu0 %v436
    %514 = vmatprep.subr.mxu0 %v439
    %515 = vmatpush1.msra.mxu0 %v438
    %516 = vmatprep.subr.mxu0 %v441
    %517 = vmatpush1.msra.mxu0 %v440
    %518 = vmatprep.subr.mxu0 %v443
    %519 = vmatpush1.msra.mxu0 %v442
    %520 = vmatprep.subr.mxu0 %v445
    %521 = vmatpush1.msra.mxu0 %v444
    %522 = vmatprep.subr.mxu0 %v447
    %523 = vmatpush1.msra.mxu0 %v446
    %524 = vmatprep.subr.mxu0 %v449
    %525 = vmatpush1.msra.mxu0 %v448
    %526 = vmatprep.subr.mxu0 %v451
    %527 = vmatpush1.msra.mxu0 %v450
    %528 = vmatprep.subr.mxu0 %v453
    %529 = vmatpush1.msra.mxu0 %v452
    %530 = vmatprep.subr.mxu0 %v455
    %531 = vmatpush1.msra.mxu0 %v454
    %532 = vmatprep.subr.mxu0 %v457
    %533 = vmatpush1.msra.mxu0 %v456
    %534 = vmatprep.subr.mxu0 %v459
    %535 = vmatpush1.msra.mxu0 %v458
    %536 = vmatprep.subr.mxu0 %v461
    %537 = vmatpush1.msra.mxu0 %v460
    %538 = vmatprep.subr.mxu0 %v463
    %539 = vmatpush1.msra.mxu0 %v462
    %540 = vmatprep.subr.mxu0 %v465
    %541 = vmatpush1.msra.mxu0 %v464
    %542 = vmatprep.subr.mxu0 %v467
    %543 = vmatpush1.msra.mxu0 %v466
    %544 = vmatprep.subr.mxu0 %v469
    %545 = vmatpush1.msra.mxu0 %v468
    %546 = vmatprep.subr.mxu0 %v471
    %547 = vmatpush1.msra.mxu0 %v470
    %548 = vmatprep.subr.mxu0 %v473
    %549 = vmatpush1.msra.mxu0 %v472
    %550 = vmatprep.subr.mxu0 %v475
    %551 = vmatpush1.msra.mxu0 %v474
    %552 = vmatprep.subr.mxu0 %v477
    %553 = vmatpush1.msra.mxu0 %v476
    %554 = vmatprep.subr.mxu0 %v479
    %555 = vmatpush1.msra.mxu0 %v478
    %556 = vmatprep.subr.mxu0 %v481
    %557 = vmatpush1.msra.mxu0 %v480
    %558 = vmatprep.subr.mxu0 %v483
    %559 = vmatpush1.msra.mxu0 %v482
    %560 = vmatprep.subr.mxu0 %v485
    %561 = vmatpush1.msra.mxu0 %v484
    %562 = vmatprep.subr.mxu0 %v487
    %563 = vmatpush1.msra.mxu0 %v486
    %564 = vmatprep.subr.mxu0 %v489
    %565 = vmatpush1.msra.mxu0 %v488
    %566 = vmatprep.mubr.f32.mxu0 %v363
    %567 = vmatmul.mubr.f32.gmra.mrb[0].mxu0 %v362
    %v568 = vpop.f32.mrb[0].mxu0
    %v569 = vadd.f32 %v495, %v568
    %v570 = vpop.f32.mrb[0].mxu0
    %v571 = vadd.f32 %v499, %v570
    %572 = vmatprep.mubr.f32.mxu0 %v365
    %573 = vmatmul.mubr.f32.gmra.mrb[0].mxu0 %v364
    %v574 = vpop.f32.mrb[0].mxu0
    %v575 = vadd.f32 %v495, %v574
    %v576 = vpop.f32.mrb[0].mxu0
    %v577 = vadd.f32 %v499, %v576
    %578 = vmatprep.mubr.f32.mxu0 %v367
    %579 = vmatmul.mubr.f32.gmra.mrb[0].mxu0 %v366
    %v580 = vpop.f32.mrb[0].mxu0
    %v581 = vadd.f32 %v495, %v580
    %v582 = vpop.f32.mrb[0].mxu0
    %v583 = vadd.f32 %v499, %v582
    %584 = vmatprep.mubr.f32.mxu0 %v369
    %585 = vmatmul.mubr.f32.gmra.mrb[0].mxu0 %v368
    %v586 = vpop.f32.mrb[0].mxu0
    %v587 = vadd.f32 %v495, %v586
    %v588 = vpop.f32.mrb[0].mxu0
    %v589 = vadd.f32 %v499, %v588
    %590 = vmatprep.mubr.f32.mxu0 %v371
    %591 = vmatmul.mubr.f32.gmra.mrb[0].mxu0 %v370
    %v592 = vpop.f32.mrb[0].mxu0
    %v593 = vadd.f32 %v495, %v592
    %v594 = vpop.f32.mrb[0].mxu0
    %v595 = vadd.f32 %v499, %v594
    %596 = vmatprep.mubr.f32.mxu0 %v373
    %597 = vmatmul.mubr.f32.gmra.mrb[0].mxu0 %v372
    %v598 = vpop.f32.mrb[0].mxu0
    %v599 = vadd.f32 %v495, %v598
    %v600 = vpop.f32.mrb[0].mxu0
    %v601 = vadd.f32 %v499, %v600
    %602 = vmatprep.mubr.f32.mxu0 %v375
    %603 = vmatmul.mubr.f32.gmra.mrb[0].mxu0 %v374
    %v604 = vpop.f32.mrb[0].mxu0
    %v605 = vadd.f32 %v495, %v604
    %v606 = vpop.f32.mrb[0].mxu0
    %v607 = vadd.f32 %v499, %v606
    %608 = vmatprep.mubr.f32.mxu0 %v377
    %609 = vmatmul.mubr.f32.gmra.mrb[0].mxu0 %v376
    %v610 = vpop.f32.mrb[0].mxu0
    %v611 = vadd.f32 %v495, %v610
    %v612 = vpop.f32.mrb[0].mxu0
    %v613 = vadd.f32 %v499, %v612
    %614 = vmatprep.mubr.f32.mxu0 %v379
    %615 = vmatmul.mubr.f32.gmra.mrb[0].mxu0 %v378
    %v616 = vpop.f32.mrb[0].mxu0
    %v617 = vadd.f32 %v495, %v616
    %v618 = vpop.f32.mrb[0].mxu0
    %v619 = vadd.f32 %v499, %v618
    %620 = vmatprep.mubr.f32.mxu0 %v381
    %621 = vmatmul.mubr.f32.gmra.mrb[0].mxu0 %v380
    %v622 = vpop.f32.mrb[0].mxu0
    %v623 = vadd.f32 %v495, %v622
    %v624 = vpop.f32.mrb[0].mxu0
    %v625 = vadd.f32 %v499, %v624
    %626 = vmatprep.mubr.f32.mxu0 %v383
    %627 = vmatmul.mubr.f32.gmra.mrb[0].mxu0 %v382
    %v628 = vpop.f32.mrb[0].mxu0
    %v629 = vadd.f32 %v495, %v628
    %v630 = vpop.f32.mrb[0].mxu0
    %v631 = vadd.f32 %v499, %v630
    %632 = vmatprep.mubr.f32.mxu0 %v385
    %633 = vmatmul.mubr.f32.gmra.mrb[0].mxu0 %v384
    %v634 = vpop.f32.mrb[0].mxu0
    %v635 = vadd.f32 %v495, %v634
    %v636 = vpop.f32.mrb[0].mxu0
    %v637 = vadd.f32 %v499, %v636
    %638 = vmatprep.mubr.f32.mxu0 %v387
    %639 = vmatmul.mubr.f32.gmra.mrb[0].mxu0 %v386
    %v640 = vpop.f32.mrb[0].mxu0
    %v641 = vadd.f32 %v495, %v640
    %v642 = vpop.f32.mrb[0].mxu0
    %v643 = vadd.f32 %v499, %v642
    %644 = vmatprep.mubr.f32.mxu0 %v389
    %645 = vmatmul.mubr.f32.gmra.mrb[0].mxu0 %v388
    %v646 = vpop.f32.mrb[0].mxu0
    %v647 = vadd.f32 %v495, %v646
    %v648 = vpop.f32.mrb[0].mxu0
    %v649 = vadd.f32 %v499, %v648
    %650 = vmatprep.mubr.f32.mxu0 %v391
    %651 = vmatmul.mubr.f32.gmra.mrb[0].mxu0 %v390
    %v652 = vpop.f32.mrb[0].mxu0
    %v653 = vadd.f32 %v495, %v652
    %v654 = vpop.f32.mrb[0].mxu0
    %v655 = vadd.f32 %v499, %v654
    %656 = vmatprep.mubr.f32.mxu0 %v393
    %657 = vmatmul.mubr.f32.gmra.mrb[0].mxu0 %v392
    %v658 = vpop.f32.mrb[0].mxu0
    %v659 = vadd.f32 %v495, %v658
    %v660 = vpop.f32.mrb[0].mxu0
    %v661 = vadd.f32 %v499, %v660
    %662 = vmatprep.mubr.f32.mxu0 %v395
    %663 = vmatmul.mubr.f32.gmra.mrb[0].mxu0 %v394
    %v664 = vpop.f32.mrb[0].mxu0
    %v665 = vadd.f32 %v495, %v664
    %v666 = vpop.f32.mrb[0].mxu0
    %v667 = vadd.f32 %v499, %v666
    %668 = vmatprep.mubr.f32.mxu0 %v397
    %669 = vmatmul.mubr.f32.gmra.mrb[0].mxu0 %v396
    %v670 = vpop.f32.mrb[0].mxu0
    %v671 = vadd.f32 %v495, %v670
    %v672 = vpop.f32.mrb[0].mxu0
    %v673 = vadd.f32 %v499, %v672
    %674 = vmatprep.mubr.f32.mxu0 %v399
    %675 = vmatmul.mubr.f32.gmra.mrb[0].mxu0 %v398
    %v676 = vpop.f32.mrb[0].mxu0
    %v677 = vadd.f32 %v495, %v676
    %v678 = vpop.f32.mrb[0].mxu0
    %v679 = vadd.f32 %v499, %v678
    %680 = vmatprep.mubr.f32.mxu0 %v401
    %681 = vmatmul.mubr.f32.gmra.mrb[0].mxu0 %v400
    %v682 = vpop.f32.mrb[0].mxu0
    %v683 = vadd.f32 %v495, %v682
    %v684 = vpop.f32.mrb[0].mxu0
    %v685 = vadd.f32 %v499, %v684
    %686 = vmatprep.mubr.f32.mxu0 %v403
    %687 = vmatmul.mubr.f32.gmra.mrb[0].mxu0 %v402
    %v688 = vpop.f32.mrb[0].mxu0
    %v689 = vadd.f32 %v495, %v688
    %v690 = vpop.f32.mrb[0].mxu0
    %v691 = vadd.f32 %v499, %v690
    %692 = vmatprep.mubr.f32.mxu0 %v405
    %693 = vmatmul.mubr.f32.gmra.mrb[0].mxu0 %v404
    %v694 = vpop.f32.mrb[0].mxu0
    %v695 = vadd.f32 %v495, %v694
    %v696 = vpop.f32.mrb[0].mxu0
    %v697 = vadd.f32 %v499, %v696
    %698 = vmatprep.mubr.f32.mxu0 %v407
    %699 = vmatmul.mubr.f32.gmra.mrb[0].mxu0 %v406
    %v700 = vpop.f32.mrb[0].mxu0
    %v701 = vadd.f32 %v495, %v700
    %v702 = vpop.f32.mrb[0].mxu0
    %v703 = vadd.f32 %v499, %v702
    %704 = vmatprep.mubr.f32.mxu0 %v409
    %705 = vmatmul.mubr.f32.gmra.mrb[0].mxu0 %v408
    %v706 = vpop.f32.mrb[0].mxu0
    %v707 = vadd.f32 %v495, %v706
    %v708 = vpop.f32.mrb[0].mxu0
    %v709 = vadd.f32 %v499, %v708
    %710 = vmatprep.mubr.f32.mxu0 %v411
    %711 = vmatmul.mubr.f32.gmra.mrb[0].mxu0 %v410
    %v712 = vpop.f32.mrb[0].mxu0
    %v713 = vadd.f32 %v495, %v712
    %v714 = vpop.f32.mrb[0].mxu0
    %v715 = vadd.f32 %v499, %v714
    %716 = vmatprep.mubr.f32.mxu0 %v413
    %717 = vmatmul.mubr.f32.gmra.mrb[0].mxu0 %v412
    %v718 = vpop.f32.mrb[0].mxu0
    %v719 = vadd.f32 %v495, %v718
    %v720 = vpop.f32.mrb[0].mxu0
    %v721 = vadd.f32 %v499, %v720
    %722 = vmatprep.mubr.f32.mxu0 %v415
    %723 = vmatmul.mubr.f32.gmra.mrb[0].mxu0 %v414
    %v724 = vpop.f32.mrb[0].mxu0
    %v725 = vadd.f32 %v495, %v724
    %v726 = vpop.f32.mrb[0].mxu0
    %v727 = vadd.f32 %v499, %v726
    %728 = vmatprep.mubr.f32.mxu0 %v417
    %729 = vmatmul.mubr.f32.gmra.mrb[0].mxu0 %v416
    %v730 = vpop.f32.mrb[0].mxu0
    %v731 = vadd.f32 %v495, %v730
    %v732 = vpop.f32.mrb[0].mxu0
    %v733 = vadd.f32 %v499, %v732
    %734 = vmatprep.mubr.f32.mxu0 %v419
    %735 = vmatmul.mubr.f32.gmra.mrb[0].mxu0 %v418
    %v736 = vpop.f32.mrb[0].mxu0
    %v737 = vadd.f32 %v495, %v736
    %v738 = vpop.f32.mrb[0].mxu0
    %v739 = vadd.f32 %v499, %v738
    %740 = vmatprep.mubr.f32.mxu0 %v421
    %741 = vmatmul.mubr.f32.gmra.mrb[0].mxu0 %v420
    %v742 = vpop.f32.mrb[0].mxu0
    %v743 = vadd.f32 %v495, %v742
    %v744 = vpop.f32.mrb[0].mxu0
    %v745 = vadd.f32 %v499, %v744
    %746 = vmatprep.mubr.f32.mxu0 %v423
    %747 = vmatmul.mubr.f32.gmra.mrb[0].mxu0 %v422
    %v748 = vpop.f32.mrb[0].mxu0
    %v749 = vadd.f32 %v495, %v748
    %v750 = vpop.f32.mrb[0].mxu0
    %v751 = vadd.f32 %v499, %v750
    %752 = vmatprep.mubr.f32.mxu0 %v425
    %753 = vmatmul.mubr.f32.gmra.mrb[0].mxu0 %v424
    %v754 = vpop.f32.mrb[0].mxu0
    %v755 = vadd.f32 %v495, %v754
    %v756 = vpop.f32.mrb[0].mxu0
    %v757 = vadd.f32 %v499, %v756
    %758 = vdwg.mxu0
    %v759 = vmax.f32 %v569, 0.0
    %v760 = vmax.f32 %v571, 0.0
    %v761 = vmax.f32 %v575, 0.0
    %v762 = vmax.f32 %v577, 0.0
    %v763 = vmax.f32 %v581, 0.0
    %v764 = vmax.f32 %v583, 0.0
    %v765 = vmax.f32 %v587, 0.0
    %v766 = vmax.f32 %v589, 0.0
    %v767 = vmax.f32 %v593, 0.0
    %v768 = vmax.f32 %v595, 0.0
    %v769 = vmax.f32 %v599, 0.0
    %v770 = vmax.f32 %v601, 0.0
    %v771 = vmax.f32 %v605, 0.0
    %v772 = vmax.f32 %v607, 0.0
    %v773 = vmax.f32 %v611, 0.0
    %v774 = vmax.f32 %v613, 0.0
    %v775 = vmax.f32 %v617, 0.0
    %v776 = vmax.f32 %v619, 0.0
    %v777 = vmax.f32 %v623, 0.0
    %v778 = vmax.f32 %v625, 0.0
    %v779 = vmax.f32 %v629, 0.0
    %v780 = vmax.f32 %v631, 0.0
    %v781 = vmax.f32 %v635, 0.0
    %v782 = vmax.f32 %v637, 0.0
    %v783 = vmax.f32 %v641, 0.0
    %v784 = vmax.f32 %v643, 0.0
    %v785 = vmax.f32 %v647, 0.0
    %v786 = vmax.f32 %v649, 0.0
    %v787 = vmax.f32 %v653, 0.0
    %v788 = vmax.f32 %v655, 0.0
    %v789 = vmax.f32 %v659, 0.0
    %v790 = vmax.f32 %v661, 0.0
    %v791 = vmax.f32 %v665, 0.0
    %v792 = vmax.f32 %v667, 0.0
    %v793 = vmax.f32 %v671, 0.0
    %v794 = vmax.f32 %v673, 0.0
    %v795 = vmax.f32 %v677, 0.0
    %v796 = vmax.f32 %v679, 0.0
    %v797 = vmax.f32 %v683, 0.0
    %v798 = vmax.f32 %v685, 0.0
    %v799 = vmax.f32 %v689, 0.0
    %v800 = vmax.f32 %v691, 0.0
    %v801 = vmax.f32 %v695, 0.0
    %v802 = vmax.f32 %v697, 0.0
    %v803 = vmax.f32 %v701, 0.0
    %v804 = vmax.f32 %v703, 0.0
    %v805 = vmax.f32 %v707, 0.0
    %v806 = vmax.f32 %v709, 0.0
    %v807 = vmax.f32 %v713, 0.0
    %v808 = vmax.f32 %v715, 0.0
    %v809 = vmax.f32 %v719, 0.0
    %v810 = vmax.f32 %v721, 0.0
    %v811 = vmax.f32 %v725, 0.0
    %v812 = vmax.f32 %v727, 0.0
    %v813 = vmax.f32 %v731, 0.0
    %v814 = vmax.f32 %v733, 0.0
    %v815 = vmax.f32 %v737, 0.0
    %v816 = vmax.f32 %v739, 0.0
    %v817 = vmax.f32 %v743, 0.0
    %v818 = vmax.f32 %v745, 0.0
    %v819 = vmax.f32 %v749, 0.0
    %v820 = vmax.f32 %v751, 0.0
    %v821 = vmax.f32 %v755, 0.0
    %v822 = vmax.f32 %v757, 0.0
    %v823 = vld [vmem:[%s5] sm:$0x3]
    %v825 = vlaneseq
    %v826 = vshrl.u32 %v825, 7
    %v827 = vsub.s32 0, %v826
    %v828 = vrot.slane %v823, %v827
    %v829 = vlaneseq
    %v830 = vshrl.u32 %v829, 7
    %v831 = vsub.s32 1, %v830
    %v832 = vrot.slane %v823, %v831
    %v835 = vmul.f32 %v759, %v828
    %v836 = vmul.f32 %v760, %v832
    %v837 = vmul.f32 %v761, %v828
    %v838 = vmul.f32 %v762, %v832
    %v839 = vmul.f32 %v763, %v828
    %v840 = vmul.f32 %v764, %v832
    %v841 = vmul.f32 %v765, %v828
    %v842 = vmul.f32 %v766, %v832
    %v843 = vmul.f32 %v767, %v828
    %v844 = vmul.f32 %v768, %v832
    %v845 = vmul.f32 %v769, %v828
    %v846 = vmul.f32 %v770, %v832
    %v847 = vmul.f32 %v771, %v828
    %v848 = vmul.f32 %v772, %v832
    %v849 = vmul.f32 %v773, %v828
    %v850 = vmul.f32 %v774, %v832
    %v851 = vmul.f32 %v775, %v828
    %v852 = vmul.f32 %v776, %v832
    %v853 = vmul.f32 %v777, %v828
    %v854 = vmul.f32 %v778, %v832
    %v855 = vmul.f32 %v779, %v828
    %v856 = vmul.f32 %v780, %v832
    %v857 = vmul.f32 %v781, %v828
    %v858 = vmul.f32 %v782, %v832
    %v859 = vmul.f32 %v783, %v828
    %v860 = vmul.f32 %v784, %v832
    %v861 = vmul.f32 %v785, %v828
    %v862 = vmul.f32 %v786, %v832
    %v863 = vmul.f32 %v787, %v828
    %v864 = vmul.f32 %v788, %v832
    %v865 = vmul.f32 %v789, %v828
    %v866 = vmul.f32 %v790, %v832
    %v867 = vmul.f32 %v791, %v828
    %v868 = vmul.f32 %v792, %v832
    %v869 = vmul.f32 %v793, %v828
    %v870 = vmul.f32 %v794, %v832
    %v871 = vmul.f32 %v795, %v828
    %v872 = vmul.f32 %v796, %v832
    %v873 = vmul.f32 %v797, %v828
    %v874 = vmul.f32 %v798, %v832
    %v875 = vmul.f32 %v799, %v828
    %v876 = vmul.f32 %v800, %v832
    %v877 = vmul.f32 %v801, %v828
    %v878 = vmul.f32 %v802, %v832
    %v879 = vmul.f32 %v803, %v828
    %v880 = vmul.f32 %v804, %v832
    %v881 = vmul.f32 %v805, %v828
    %v882 = vmul.f32 %v806, %v832
    %v883 = vmul.f32 %v807, %v828
    %v884 = vmul.f32 %v808, %v832
    %v885 = vmul.f32 %v809, %v828
    %v886 = vmul.f32 %v810, %v832
    %v887 = vmul.f32 %v811, %v828
    %v888 = vmul.f32 %v812, %v832
    %v889 = vmul.f32 %v813, %v828
    %v890 = vmul.f32 %v814, %v832
    %v891 = vmul.f32 %v815, %v828
    %v892 = vmul.f32 %v816, %v832
    %v893 = vmul.f32 %v817, %v828
    %v894 = vmul.f32 %v818, %v832
    %v895 = vmul.f32 %v819, %v828
    %v896 = vmul.f32 %v820, %v832
    %v897 = vmul.f32 %v821, %v828
    %v898 = vmul.f32 %v822, %v832
    %v899 = vadd.f32 %v835, %v836
    %900 = vadd.xlane.f32.xlu0 %v899
    %v901 = vpop.xlane.xlu0 %900
    %v902 = vadd.f32 %v837, %v838
    %903 = vadd.xlane.f32.xlu0 %v902
    %v904 = vpop.xlane.xlu0 %903
    %v905 = vadd.f32 %v839, %v840
    %906 = vadd.xlane.f32.xlu0 %v905
    %v907 = vpop.xlane.xlu0 %906
    %v908 = vadd.f32 %v841, %v842
    %909 = vadd.xlane.f32.xlu0 %v908
    %v910 = vpop.xlane.xlu0 %909
    %v911 = vadd.f32 %v843, %v844
    %912 = vadd.xlane.f32.xlu0 %v911
    %v913 = vpop.xlane.xlu0 %912
    %v914 = vadd.f32 %v845, %v846
    %915 = vadd.xlane.f32.xlu0 %v914
    %v916 = vpop.xlane.xlu0 %915
    %v917 = vadd.f32 %v847, %v848
    %918 = vadd.xlane.f32.xlu0 %v917
    %v919 = vpop.xlane.xlu0 %918
    %v920 = vadd.f32 %v849, %v850
    %921 = vadd.xlane.f32.xlu0 %v920
    %v922 = vpop.xlane.xlu0 %921
    %v923 = vadd.f32 %v851, %v852
    %924 = vadd.xlane.f32.xlu0 %v923
    %v925 = vpop.xlane.xlu0 %924
    %v926 = vadd.f32 %v853, %v854
    %927 = vadd.xlane.f32.xlu0 %v926
    %v928 = vpop.xlane.xlu0 %927
    %v929 = vadd.f32 %v855, %v856
    %930 = vadd.xlane.f32.xlu0 %v929
    %v931 = vpop.xlane.xlu0 %930
    %v932 = vadd.f32 %v857, %v858
    %933 = vadd.xlane.f32.xlu0 %v932
    %v934 = vpop.xlane.xlu0 %933
    %v935 = vadd.f32 %v859, %v860
    %936 = vadd.xlane.f32.xlu0 %v935
    %v937 = vpop.xlane.xlu0 %936
    %v938 = vadd.f32 %v861, %v862
    %939 = vadd.xlane.f32.xlu0 %v938
    %v940 = vpop.xlane.xlu0 %939
    %v941 = vadd.f32 %v863, %v864
    %942 = vadd.xlane.f32.xlu0 %v941
    %v943 = vpop.xlane.xlu0 %942
    %v944 = vadd.f32 %v865, %v866
    %945 = vadd.xlane.f32.xlu0 %v944
    %v946 = vpop.xlane.xlu0 %945
    %v947 = vadd.f32 %v867, %v868
    %948 = vadd.xlane.f32.xlu0 %v947
    %v949 = vpop.xlane.xlu0 %948
    %v950 = vadd.f32 %v869, %v870
    %951 = vadd.xlane.f32.xlu0 %v950
    %v952 = vpop.xlane.xlu0 %951
    %v953 = vadd.f32 %v871, %v872
    %954 = vadd.xlane.f32.xlu0 %v953
    %v955 = vpop.xlane.xlu0 %954
    %v956 = vadd.f32 %v873, %v874
    %957 = vadd.xlane.f32.xlu0 %v956
    %v958 = vpop.xlane.xlu0 %957
    %v959 = vadd.f32 %v875, %v876
    %960 = vadd.xlane.f32.xlu0 %v959
    %v961 = vpop.xlane.xlu0 %960
    %v962 = vadd.f32 %v877, %v878
    %963 = vadd.xlane.f32.xlu0 %v962
    %v964 = vpop.xlane.xlu0 %963
    %v965 = vadd.f32 %v879, %v880
    %966 = vadd.xlane.f32.xlu0 %v965
    %v967 = vpop.xlane.xlu0 %966
    %v968 = vadd.f32 %v881, %v882
    %969 = vadd.xlane.f32.xlu0 %v968
    %v970 = vpop.xlane.xlu0 %969
    %v971 = vadd.f32 %v883, %v884
    %972 = vadd.xlane.f32.xlu0 %v971
    %v973 = vpop.xlane.xlu0 %972
    %v974 = vadd.f32 %v885, %v886
    %975 = vadd.xlane.f32.xlu0 %v974
    %v976 = vpop.xlane.xlu0 %975
    %v977 = vadd.f32 %v887, %v888
    %978 = vadd.xlane.f32.xlu0 %v977
    %v979 = vpop.xlane.xlu0 %978
    %v980 = vadd.f32 %v889, %v890
    %981 = vadd.xlane.f32.xlu0 %v980
    %v982 = vpop.xlane.xlu0 %981
    %v983 = vadd.f32 %v891, %v892
    %984 = vadd.xlane.f32.xlu0 %v983
    %v985 = vpop.xlane.xlu0 %984
    %v986 = vadd.f32 %v893, %v894
    %987 = vadd.xlane.f32.xlu0 %v986
    %v988 = vpop.xlane.xlu0 %987
    %v989 = vadd.f32 %v895, %v896
    %990 = vadd.xlane.f32.xlu0 %v989
    %v991 = vpop.xlane.xlu0 %990
    %v992 = vadd.f32 %v897, %v898
    %993 = vadd.xlane.f32.xlu0 %v992
    %v994 = vpop.xlane.xlu0 %993
    %v995 = vld [vmem:[#allocation2] sm:$0x1]
    %997 = vset.pattern.permute.xlu0 0
    %998 = vperm.xlu0 %997, %v995
    %v999 = vpop.permute.xlu0 %998
    %v1001 = vlaneseq
    %v1002 = vshrl.u32 %v1001, 7
    %v1003 = vsub.s32 0, %v1002
    %v1004 = vrot.slane %v999, %v1003
    %v1005 = vadd.f32 %v901, %v1004
    %v1006 = vadd.f32 %v904, %v1004
    %v1007 = vadd.f32 %v907, %v1004
    %v1008 = vadd.f32 %v910, %v1004
    %v1009 = vadd.f32 %v913, %v1004
    %v1010 = vadd.f32 %v916, %v1004
    %v1011 = vadd.f32 %v919, %v1004
    %v1012 = vadd.f32 %v922, %v1004
    %v1013 = vadd.f32 %v925, %v1004
    %v1014 = vadd.f32 %v928, %v1004
    %v1015 = vadd.f32 %v931, %v1004
    %v1016 = vadd.f32 %v934, %v1004
    %v1017 = vadd.f32 %v937, %v1004
    %v1018 = vadd.f32 %v940, %v1004
    %v1019 = vadd.f32 %v943, %v1004
    %v1020 = vadd.f32 %v946, %v1004
    %v1021 = vadd.f32 %v949, %v1004
    %v1022 = vadd.f32 %v952, %v1004
    %v1023 = vadd.f32 %v955, %v1004
    %v1024 = vadd.f32 %v958, %v1004
    %v1025 = vadd.f32 %v961, %v1004
    %v1026 = vadd.f32 %v964, %v1004
    %v1027 = vadd.f32 %v967, %v1004
    %v1028 = vadd.f32 %v970, %v1004
    %v1029 = vadd.f32 %v973, %v1004
    %v1030 = vadd.f32 %v976, %v1004
    %v1031 = vadd.f32 %v979, %v1004
    %v1032 = vadd.f32 %v982, %v1004
    %v1033 = vadd.f32 %v985, %v1004
    %v1034 = vadd.f32 %v988, %v1004
    %v1035 = vadd.f32 %v991, %v1004
    %v1036 = vadd.f32 %v994, %v1004
    %v1069 = vlaneseq
    %v1070 = vshrl.u32 %v1069, 7
    %v1071 = vsub.s32 0, %v1070
    %v1072 = vrot.slane %v1005, %v1071
    %v1073 = vlaneseq
    %v1074 = vshrl.u32 %v1073, 7
    %v1075 = vsub.s32 1, %v1074
    %v1076 = vrot.slane %v1005, %v1075
    %v1077 = vlaneseq
    %v1078 = vshrl.u32 %v1077, 7
    %v1079 = vsub.s32 2, %v1078
    %v1080 = vrot.slane %v1005, %v1079
    %v1081 = vlaneseq
    %v1082 = vshrl.u32 %v1081, 7
    %v1083 = vsub.s32 3, %v1082
    %v1084 = vrot.slane %v1005, %v1083
    %v1085 = vlaneseq
    %v1086 = vshrl.u32 %v1085, 7
    %v1087 = vsub.s32 4, %v1086
    %v1088 = vrot.slane %v1005, %v1087
    %v1089 = vlaneseq
    %v1090 = vshrl.u32 %v1089, 7
    %v1091 = vsub.s32 5, %v1090
    %v1092 = vrot.slane %v1005, %v1091
    %v1093 = vlaneseq
    %v1094 = vshrl.u32 %v1093, 7
    %v1095 = vsub.s32 6, %v1094
    %v1096 = vrot.slane %v1005, %v1095
    %v1097 = vlaneseq
    %v1098 = vshrl.u32 %v1097, 7
    %v1099 = vsub.s32 7, %v1098
    %v1100 = vrot.slane %v1005, %v1099
    %v1101 = vlaneseq
    %v1102 = vshrl.u32 %v1101, 7
    %v1103 = vsub.s32 0, %v1102
    %v1104 = vrot.slane %v1006, %v1103
    %v1105 = vlaneseq
    %v1106 = vshrl.u32 %v1105, 7
    %v1107 = vsub.s32 1, %v1106
    %v1108 = vrot.slane %v1006, %v1107
    %v1109 = vlaneseq
    %v1110 = vshrl.u32 %v1109, 7
    %v1111 = vsub.s32 2, %v1110
    %v1112 = vrot.slane %v1006, %v1111
    %v1113 = vlaneseq
    %v1114 = vshrl.u32 %v1113, 7
    %v1115 = vsub.s32 3, %v1114
    %v1116 = vrot.slane %v1006, %v1115
    %v1117 = vlaneseq
    %v1118 = vshrl.u32 %v1117, 7
    %v1119 = vsub.s32 4, %v1118
    %v1120 = vrot.slane %v1006, %v1119
    %v1121 = vlaneseq
    %v1122 = vshrl.u32 %v1121, 7
    %v1123 = vsub.s32 5, %v1122
    %v1124 = vrot.slane %v1006, %v1123
    %v1125 = vlaneseq
    %v1126 = vshrl.u32 %v1125, 7
    %v1127 = vsub.s32 6, %v1126
    %v1128 = vrot.slane %v1006, %v1127
    %v1129 = vlaneseq
    %v1130 = vshrl.u32 %v1129, 7
    %v1131 = vsub.s32 7, %v1130
    %v1132 = vrot.slane %v1006, %v1131
    %v1133 = vlaneseq
    %v1134 = vshrl.u32 %v1133, 7
    %v1135 = vsub.s32 0, %v1134
    %v1136 = vrot.slane %v1007, %v1135
    %v1137 = vlaneseq
    %v1138 = vshrl.u32 %v1137, 7
    %v1139 = vsub.s32 1, %v1138
    %v1140 = vrot.slane %v1007, %v1139
    %v1141 = vlaneseq
    %v1142 = vshrl.u32 %v1141, 7
    %v1143 = vsub.s32 2, %v1142
    %v1144 = vrot.slane %v1007, %v1143
    %v1145 = vlaneseq
    %v1146 = vshrl.u32 %v1145, 7
    %v1147 = vsub.s32 3, %v1146
    %v1148 = vrot.slane %v1007, %v1147
    %v1149 = vlaneseq
    %v1150 = vshrl.u32 %v1149, 7
    %v1151 = vsub.s32 4, %v1150
    %v1152 = vrot.slane %v1007, %v1151
    %v1153 = vlaneseq
    %v1154 = vshrl.u32 %v1153, 7
    %v1155 = vsub.s32 5, %v1154
    %v1156 = vrot.slane %v1007, %v1155
    %v1157 = vlaneseq
    %v1158 = vshrl.u32 %v1157, 7
    %v1159 = vsub.s32 6, %v1158
    %v1160 = vrot.slane %v1007, %v1159
    %v1161 = vlaneseq
    %v1162 = vshrl.u32 %v1161, 7
    %v1163 = vsub.s32 7, %v1162
    %v1164 = vrot.slane %v1007, %v1163
    %v1165 = vlaneseq
    %v1166 = vshrl.u32 %v1165, 7
    %v1167 = vsub.s32 0, %v1166
    %v1168 = vrot.slane %v1008, %v1167
    %v1169 = vlaneseq
    %v1170 = vshrl.u32 %v1169, 7
    %v1171 = vsub.s32 1, %v1170
    %v1172 = vrot.slane %v1008, %v1171
    %v1173 = vlaneseq
    %v1174 = vshrl.u32 %v1173, 7
    %v1175 = vsub.s32 2, %v1174
    %v1176 = vrot.slane %v1008, %v1175
    %v1177 = vlaneseq
    %v1178 = vshrl.u32 %v1177, 7
    %v1179 = vsub.s32 3, %v1178
    %v1180 = vrot.slane %v1008, %v1179
    %v1181 = vlaneseq
    %v1182 = vshrl.u32 %v1181, 7
    %v1183 = vsub.s32 4, %v1182
    %v1184 = vrot.slane %v1008, %v1183
    %v1185 = vlaneseq
    %v1186 = vshrl.u32 %v1185, 7
    %v1187 = vsub.s32 5, %v1186
    %v1188 = vrot.slane %v1008, %v1187
    %v1189 = vlaneseq
    %v1190 = vshrl.u32 %v1189, 7
    %v1191 = vsub.s32 6, %v1190
    %v1192 = vrot.slane %v1008, %v1191
    %v1193 = vlaneseq
    %v1194 = vshrl.u32 %v1193, 7
    %v1195 = vsub.s32 7, %v1194
    %v1196 = vrot.slane %v1008, %v1195
    %v1197 = vlaneseq
    %v1198 = vshrl.u32 %v1197, 7
    %v1199 = vsub.s32 0, %v1198
    %v1200 = vrot.slane %v1009, %v1199
    %v1201 = vlaneseq
    %v1202 = vshrl.u32 %v1201, 7
    %v1203 = vsub.s32 1, %v1202
    %v1204 = vrot.slane %v1009, %v1203
    %v1205 = vlaneseq
    %v1206 = vshrl.u32 %v1205, 7
    %v1207 = vsub.s32 2, %v1206
    %v1208 = vrot.slane %v1009, %v1207
    %v1209 = vlaneseq
    %v1210 = vshrl.u32 %v1209, 7
    %v1211 = vsub.s32 3, %v1210
    %v1212 = vrot.slane %v1009, %v1211
    %v1213 = vlaneseq
    %v1214 = vshrl.u32 %v1213, 7
    %v1215 = vsub.s32 4, %v1214
    %v1216 = vrot.slane %v1009, %v1215
    %v1217 = vlaneseq
    %v1218 = vshrl.u32 %v1217, 7
    %v1219 = vsub.s32 5, %v1218
    %v1220 = vrot.slane %v1009, %v1219
    %v1221 = vlaneseq
    %v1222 = vshrl.u32 %v1221, 7
    %v1223 = vsub.s32 6, %v1222
    %v1224 = vrot.slane %v1009, %v1223
    %v1225 = vlaneseq
    %v1226 = vshrl.u32 %v1225, 7
    %v1227 = vsub.s32 7, %v1226
    %v1228 = vrot.slane %v1009, %v1227
    %v1229 = vlaneseq
    %v1230 = vshrl.u32 %v1229, 7
    %v1231 = vsub.s32 0, %v1230
    %v1232 = vrot.slane %v1010, %v1231
    %v1233 = vlaneseq
    %v1234 = vshrl.u32 %v1233, 7
    %v1235 = vsub.s32 1, %v1234
    %v1236 = vrot.slane %v1010, %v1235
    %v1237 = vlaneseq
    %v1238 = vshrl.u32 %v1237, 7
    %v1239 = vsub.s32 2, %v1238
    %v1240 = vrot.slane %v1010, %v1239
    %v1241 = vlaneseq
    %v1242 = vshrl.u32 %v1241, 7
    %v1243 = vsub.s32 3, %v1242
    %v1244 = vrot.slane %v1010, %v1243
    %v1245 = vlaneseq
    %v1246 = vshrl.u32 %v1245, 7
    %v1247 = vsub.s32 4, %v1246
    %v1248 = vrot.slane %v1010, %v1247
    %v1249 = vlaneseq
    %v1250 = vshrl.u32 %v1249, 7
    %v1251 = vsub.s32 5, %v1250
    %v1252 = vrot.slane %v1010, %v1251
    %v1253 = vlaneseq
    %v1254 = vshrl.u32 %v1253, 7
    %v1255 = vsub.s32 6, %v1254
    %v1256 = vrot.slane %v1010, %v1255
    %v1257 = vlaneseq
    %v1258 = vshrl.u32 %v1257, 7
    %v1259 = vsub.s32 7, %v1258
    %v1260 = vrot.slane %v1010, %v1259
    %v1261 = vlaneseq
    %v1262 = vshrl.u32 %v1261, 7
    %v1263 = vsub.s32 0, %v1262
    %v1264 = vrot.slane %v1011, %v1263
    %v1265 = vlaneseq
    %v1266 = vshrl.u32 %v1265, 7
    %v1267 = vsub.s32 1, %v1266
    %v1268 = vrot.slane %v1011, %v1267
    %v1269 = vlaneseq
    %v1270 = vshrl.u32 %v1269, 7
    %v1271 = vsub.s32 2, %v1270
    %v1272 = vrot.slane %v1011, %v1271
    %v1273 = vlaneseq
    %v1274 = vshrl.u32 %v1273, 7
    %v1275 = vsub.s32 3, %v1274
    %v1276 = vrot.slane %v1011, %v1275
    %v1277 = vlaneseq
    %v1278 = vshrl.u32 %v1277, 7
    %v1279 = vsub.s32 4, %v1278
    %v1280 = vrot.slane %v1011, %v1279
    %v1281 = vlaneseq
    %v1282 = vshrl.u32 %v1281, 7
    %v1283 = vsub.s32 5, %v1282
    %v1284 = vrot.slane %v1011, %v1283
    %v1285 = vlaneseq
    %v1286 = vshrl.u32 %v1285, 7
    %v1287 = vsub.s32 6, %v1286
    %v1288 = vrot.slane %v1011, %v1287
    %v1289 = vlaneseq
    %v1290 = vshrl.u32 %v1289, 7
    %v1291 = vsub.s32 7, %v1290
    %v1292 = vrot.slane %v1011, %v1291
    %v1293 = vlaneseq
    %v1294 = vshrl.u32 %v1293, 7
    %v1295 = vsub.s32 0, %v1294
    %v1296 = vrot.slane %v1012, %v1295
    %v1297 = vlaneseq
    %v1298 = vshrl.u32 %v1297, 7
    %v1299 = vsub.s32 1, %v1298
    %v1300 = vrot.slane %v1012, %v1299
    %v1301 = vlaneseq
    %v1302 = vshrl.u32 %v1301, 7
    %v1303 = vsub.s32 2, %v1302
    %v1304 = vrot.slane %v1012, %v1303
    %v1305 = vlaneseq
    %v1306 = vshrl.u32 %v1305, 7
    %v1307 = vsub.s32 3, %v1306
    %v1308 = vrot.slane %v1012, %v1307
    %v1309 = vlaneseq
    %v1310 = vshrl.u32 %v1309, 7
    %v1311 = vsub.s32 4, %v1310
    %v1312 = vrot.slane %v1012, %v1311
    %v1313 = vlaneseq
    %v1314 = vshrl.u32 %v1313, 7
    %v1315 = vsub.s32 5, %v1314
    %v1316 = vrot.slane %v1012, %v1315
    %v1317 = vlaneseq
    %v1318 = vshrl.u32 %v1317, 7
    %v1319 = vsub.s32 6, %v1318
    %v1320 = vrot.slane %v1012, %v1319
    %v1321 = vlaneseq
    %v1322 = vshrl.u32 %v1321, 7
    %v1323 = vsub.s32 7, %v1322
    %v1324 = vrot.slane %v1012, %v1323
    %v1325 = vlaneseq
    %v1326 = vshrl.u32 %v1325, 7
    %v1327 = vsub.s32 0, %v1326
    %v1328 = vrot.slane %v1013, %v1327
    %v1329 = vlaneseq
    %v1330 = vshrl.u32 %v1329, 7
    %v1331 = vsub.s32 1, %v1330
    %v1332 = vrot.slane %v1013, %v1331
    %v1333 = vlaneseq
    %v1334 = vshrl.u32 %v1333, 7
    %v1335 = vsub.s32 2, %v1334
    %v1336 = vrot.slane %v1013, %v1335
    %v1337 = vlaneseq
    %v1338 = vshrl.u32 %v1337, 7
    %v1339 = vsub.s32 3, %v1338
    %v1340 = vrot.slane %v1013, %v1339
    %v1341 = vlaneseq
    %v1342 = vshrl.u32 %v1341, 7
    %v1343 = vsub.s32 4, %v1342
    %v1344 = vrot.slane %v1013, %v1343
    %v1345 = vlaneseq
    %v1346 = vshrl.u32 %v1345, 7
    %v1347 = vsub.s32 5, %v1346
    %v1348 = vrot.slane %v1013, %v1347
    %v1349 = vlaneseq
    %v1350 = vshrl.u32 %v1349, 7
    %v1351 = vsub.s32 6, %v1350
    %v1352 = vrot.slane %v1013, %v1351
    %v1353 = vlaneseq
    %v1354 = vshrl.u32 %v1353, 7
    %v1355 = vsub.s32 7, %v1354
    %v1356 = vrot.slane %v1013, %v1355
    %v1357 = vlaneseq
    %v1358 = vshrl.u32 %v1357, 7
    %v1359 = vsub.s32 0, %v1358
    %v1360 = vrot.slane %v1014, %v1359
    %v1361 = vlaneseq
    %v1362 = vshrl.u32 %v1361, 7
    %v1363 = vsub.s32 1, %v1362
    %v1364 = vrot.slane %v1014, %v1363
    %v1365 = vlaneseq
    %v1366 = vshrl.u32 %v1365, 7
    %v1367 = vsub.s32 2, %v1366
    %v1368 = vrot.slane %v1014, %v1367
    %v1369 = vlaneseq
    %v1370 = vshrl.u32 %v1369, 7
    %v1371 = vsub.s32 3, %v1370
    %v1372 = vrot.slane %v1014, %v1371
    %v1373 = vlaneseq
    %v1374 = vshrl.u32 %v1373, 7
    %v1375 = vsub.s32 4, %v1374
    %v1376 = vrot.slane %v1014, %v1375
    %v1377 = vlaneseq
    %v1378 = vshrl.u32 %v1377, 7
    %v1379 = vsub.s32 5, %v1378
    %v1380 = vrot.slane %v1014, %v1379
    %v1381 = vlaneseq
    %v1382 = vshrl.u32 %v1381, 7
    %v1383 = vsub.s32 6, %v1382
    %v1384 = vrot.slane %v1014, %v1383
    %v1385 = vlaneseq
    %v1386 = vshrl.u32 %v1385, 7
    %v1387 = vsub.s32 7, %v1386
    %v1388 = vrot.slane %v1014, %v1387
    %v1389 = vlaneseq
    %v1390 = vshrl.u32 %v1389, 7
    %v1391 = vsub.s32 0, %v1390
    %v1392 = vrot.slane %v1015, %v1391
    %v1393 = vlaneseq
    %v1394 = vshrl.u32 %v1393, 7
    %v1395 = vsub.s32 1, %v1394
    %v1396 = vrot.slane %v1015, %v1395
    %v1397 = vlaneseq
    %v1398 = vshrl.u32 %v1397, 7
    %v1399 = vsub.s32 2, %v1398
    %v1400 = vrot.slane %v1015, %v1399
    %v1401 = vlaneseq
    %v1402 = vshrl.u32 %v1401, 7
    %v1403 = vsub.s32 3, %v1402
    %v1404 = vrot.slane %v1015, %v1403
    %v1405 = vlaneseq
    %v1406 = vshrl.u32 %v1405, 7
    %v1407 = vsub.s32 4, %v1406
    %v1408 = vrot.slane %v1015, %v1407
    %v1409 = vlaneseq
    %v1410 = vshrl.u32 %v1409, 7
    %v1411 = vsub.s32 5, %v1410
    %v1412 = vrot.slane %v1015, %v1411
    %v1413 = vlaneseq
    %v1414 = vshrl.u32 %v1413, 7
    %v1415 = vsub.s32 6, %v1414
    %v1416 = vrot.slane %v1015, %v1415
    %v1417 = vlaneseq
    %v1418 = vshrl.u32 %v1417, 7
    %v1419 = vsub.s32 7, %v1418
    %v1420 = vrot.slane %v1015, %v1419
    %v1421 = vlaneseq
    %v1422 = vshrl.u32 %v1421, 7
    %v1423 = vsub.s32 0, %v1422
    %v1424 = vrot.slane %v1016, %v1423
    %v1425 = vlaneseq
    %v1426 = vshrl.u32 %v1425, 7
    %v1427 = vsub.s32 1, %v1426
    %v1428 = vrot.slane %v1016, %v1427
    %v1429 = vlaneseq
    %v1430 = vshrl.u32 %v1429, 7
    %v1431 = vsub.s32 2, %v1430
    %v1432 = vrot.slane %v1016, %v1431
    %v1433 = vlaneseq
    %v1434 = vshrl.u32 %v1433, 7
    %v1435 = vsub.s32 3, %v1434
    %v1436 = vrot.slane %v1016, %v1435
    %v1437 = vlaneseq
    %v1438 = vshrl.u32 %v1437, 7
    %v1439 = vsub.s32 4, %v1438
    %v1440 = vrot.slane %v1016, %v1439
    %v1441 = vlaneseq
    %v1442 = vshrl.u32 %v1441, 7
    %v1443 = vsub.s32 5, %v1442
    %v1444 = vrot.slane %v1016, %v1443
    %v1445 = vlaneseq
    %v1446 = vshrl.u32 %v1445, 7
    %v1447 = vsub.s32 6, %v1446
    %v1448 = vrot.slane %v1016, %v1447
    %v1449 = vlaneseq
    %v1450 = vshrl.u32 %v1449, 7
    %v1451 = vsub.s32 7, %v1450
    %v1452 = vrot.slane %v1016, %v1451
    %v1453 = vlaneseq
    %v1454 = vshrl.u32 %v1453, 7
    %v1455 = vsub.s32 0, %v1454
    %v1456 = vrot.slane %v1017, %v1455
    %v1457 = vlaneseq
    %v1458 = vshrl.u32 %v1457, 7
    %v1459 = vsub.s32 1, %v1458
    %v1460 = vrot.slane %v1017, %v1459
    %v1461 = vlaneseq
    %v1462 = vshrl.u32 %v1461, 7
    %v1463 = vsub.s32 2, %v1462
    %v1464 = vrot.slane %v1017, %v1463
    %v1465 = vlaneseq
    %v1466 = vshrl.u32 %v1465, 7
    %v1467 = vsub.s32 3, %v1466
    %v1468 = vrot.slane %v1017, %v1467
    %v1469 = vlaneseq
    %v1470 = vshrl.u32 %v1469, 7
    %v1471 = vsub.s32 4, %v1470
    %v1472 = vrot.slane %v1017, %v1471
    %v1473 = vlaneseq
    %v1474 = vshrl.u32 %v1473, 7
    %v1475 = vsub.s32 5, %v1474
    %v1476 = vrot.slane %v1017, %v1475
    %v1477 = vlaneseq
    %v1478 = vshrl.u32 %v1477, 7
    %v1479 = vsub.s32 6, %v1478
    %v1480 = vrot.slane %v1017, %v1479
    %v1481 = vlaneseq
    %v1482 = vshrl.u32 %v1481, 7
    %v1483 = vsub.s32 7, %v1482
    %v1484 = vrot.slane %v1017, %v1483
    %v1485 = vlaneseq
    %v1486 = vshrl.u32 %v1485, 7
    %v1487 = vsub.s32 0, %v1486
    %v1488 = vrot.slane %v1018, %v1487
    %v1489 = vlaneseq
    %v1490 = vshrl.u32 %v1489, 7
    %v1491 = vsub.s32 1, %v1490
    %v1492 = vrot.slane %v1018, %v1491
    %v1493 = vlaneseq
    %v1494 = vshrl.u32 %v1493, 7
    %v1495 = vsub.s32 2, %v1494
    %v1496 = vrot.slane %v1018, %v1495
    %v1497 = vlaneseq
    %v1498 = vshrl.u32 %v1497, 7
    %v1499 = vsub.s32 3, %v1498
    %v1500 = vrot.slane %v1018, %v1499
    %v1501 = vlaneseq
    %v1502 = vshrl.u32 %v1501, 7
    %v1503 = vsub.s32 4, %v1502
    %v1504 = vrot.slane %v1018, %v1503
    %v1505 = vlaneseq
    %v1506 = vshrl.u32 %v1505, 7
    %v1507 = vsub.s32 5, %v1506
    %v1508 = vrot.slane %v1018, %v1507
    %v1509 = vlaneseq
    %v1510 = vshrl.u32 %v1509, 7
    %v1511 = vsub.s32 6, %v1510
    %v1512 = vrot.slane %v1018, %v1511
    %v1513 = vlaneseq
    %v1514 = vshrl.u32 %v1513, 7
    %v1515 = vsub.s32 7, %v1514
    %v1516 = vrot.slane %v1018, %v1515
    %v1517 = vlaneseq
    %v1518 = vshrl.u32 %v1517, 7
    %v1519 = vsub.s32 0, %v1518
    %v1520 = vrot.slane %v1019, %v1519
    %v1521 = vlaneseq
    %v1522 = vshrl.u32 %v1521, 7
    %v1523 = vsub.s32 1, %v1522
    %v1524 = vrot.slane %v1019, %v1523
    %v1525 = vlaneseq
    %v1526 = vshrl.u32 %v1525, 7
    %v1527 = vsub.s32 2, %v1526
    %v1528 = vrot.slane %v1019, %v1527
    %v1529 = vlaneseq
    %v1530 = vshrl.u32 %v1529, 7
    %v1531 = vsub.s32 3, %v1530
    %v1532 = vrot.slane %v1019, %v1531
    %v1533 = vlaneseq
    %v1534 = vshrl.u32 %v1533, 7
    %v1535 = vsub.s32 4, %v1534
    %v1536 = vrot.slane %v1019, %v1535
    %v1537 = vlaneseq
    %v1538 = vshrl.u32 %v1537, 7
    %v1539 = vsub.s32 5, %v1538
    %v1540 = vrot.slane %v1019, %v1539
    %v1541 = vlaneseq
    %v1542 = vshrl.u32 %v1541, 7
    %v1543 = vsub.s32 6, %v1542
    %v1544 = vrot.slane %v1019, %v1543
    %v1545 = vlaneseq
    %v1546 = vshrl.u32 %v1545, 7
    %v1547 = vsub.s32 7, %v1546
    %v1548 = vrot.slane %v1019, %v1547
    %v1549 = vlaneseq
    %v1550 = vshrl.u32 %v1549, 7
    %v1551 = vsub.s32 0, %v1550
    %v1552 = vrot.slane %v1020, %v1551
    %v1553 = vlaneseq
    %v1554 = vshrl.u32 %v1553, 7
    %v1555 = vsub.s32 1, %v1554
    %v1556 = vrot.slane %v1020, %v1555
    %v1557 = vlaneseq
    %v1558 = vshrl.u32 %v1557, 7
    %v1559 = vsub.s32 2, %v1558
    %v1560 = vrot.slane %v1020, %v1559
    %v1561 = vlaneseq
    %v1562 = vshrl.u32 %v1561, 7
    %v1563 = vsub.s32 3, %v1562
    %v1564 = vrot.slane %v1020, %v1563
    %v1565 = vlaneseq
    %v1566 = vshrl.u32 %v1565, 7
    %v1567 = vsub.s32 4, %v1566
    %v1568 = vrot.slane %v1020, %v1567
    %v1569 = vlaneseq
    %v1570 = vshrl.u32 %v1569, 7
    %v1571 = vsub.s32 5, %v1570
    %v1572 = vrot.slane %v1020, %v1571
    %v1573 = vlaneseq
    %v1574 = vshrl.u32 %v1573, 7
    %v1575 = vsub.s32 6, %v1574
    %v1576 = vrot.slane %v1020, %v1575
    %v1577 = vlaneseq
    %v1578 = vshrl.u32 %v1577, 7
    %v1579 = vsub.s32 7, %v1578
    %v1580 = vrot.slane %v1020, %v1579
    %v1581 = vlaneseq
    %v1582 = vshrl.u32 %v1581, 7
    %v1583 = vsub.s32 0, %v1582
    %v1584 = vrot.slane %v1021, %v1583
    %v1585 = vlaneseq
    %v1586 = vshrl.u32 %v1585, 7
    %v1587 = vsub.s32 1, %v1586
    %v1588 = vrot.slane %v1021, %v1587
    %v1589 = vlaneseq
    %v1590 = vshrl.u32 %v1589, 7
    %v1591 = vsub.s32 2, %v1590
    %v1592 = vrot.slane %v1021, %v1591
    %v1593 = vlaneseq
    %v1594 = vshrl.u32 %v1593, 7
    %v1595 = vsub.s32 3, %v1594
    %v1596 = vrot.slane %v1021, %v1595
    %v1597 = vlaneseq
    %v1598 = vshrl.u32 %v1597, 7
    %v1599 = vsub.s32 4, %v1598
    %v1600 = vrot.slane %v1021, %v1599
    %v1601 = vlaneseq
    %v1602 = vshrl.u32 %v1601, 7
    %v1603 = vsub.s32 5, %v1602
    %v1604 = vrot.slane %v1021, %v1603
    %v1605 = vlaneseq
    %v1606 = vshrl.u32 %v1605, 7
    %v1607 = vsub.s32 6, %v1606
    %v1608 = vrot.slane %v1021, %v1607
    %v1609 = vlaneseq
    %v1610 = vshrl.u32 %v1609, 7
    %v1611 = vsub.s32 7, %v1610
    %v1612 = vrot.slane %v1021, %v1611
    %v1613 = vlaneseq
    %v1614 = vshrl.u32 %v1613, 7
    %v1615 = vsub.s32 0, %v1614
    %v1616 = vrot.slane %v1022, %v1615
    %v1617 = vlaneseq
    %v1618 = vshrl.u32 %v1617, 7
    %v1619 = vsub.s32 1, %v1618
    %v1620 = vrot.slane %v1022, %v1619
    %v1621 = vlaneseq
    %v1622 = vshrl.u32 %v1621, 7
    %v1623 = vsub.s32 2, %v1622
    %v1624 = vrot.slane %v1022, %v1623
    %v1625 = vlaneseq
    %v1626 = vshrl.u32 %v1625, 7
    %v1627 = vsub.s32 3, %v1626
    %v1628 = vrot.slane %v1022, %v1627
    %v1629 = vlaneseq
    %v1630 = vshrl.u32 %v1629, 7
    %v1631 = vsub.s32 4, %v1630
    %v1632 = vrot.slane %v1022, %v1631
    %v1633 = vlaneseq
    %v1634 = vshrl.u32 %v1633, 7
    %v1635 = vsub.s32 5, %v1634
    %v1636 = vrot.slane %v1022, %v1635
    %v1637 = vlaneseq
    %v1638 = vshrl.u32 %v1637, 7
    %v1639 = vsub.s32 6, %v1638
    %v1640 = vrot.slane %v1022, %v1639
    %v1641 = vlaneseq
    %v1642 = vshrl.u32 %v1641, 7
    %v1643 = vsub.s32 7, %v1642
    %v1644 = vrot.slane %v1022, %v1643
    %v1645 = vlaneseq
    %v1646 = vshrl.u32 %v1645, 7
    %v1647 = vsub.s32 0, %v1646
    %v1648 = vrot.slane %v1023, %v1647
    %v1649 = vlaneseq
    %v1650 = vshrl.u32 %v1649, 7
    %v1651 = vsub.s32 1, %v1650
    %v1652 = vrot.slane %v1023, %v1651
    %v1653 = vlaneseq
    %v1654 = vshrl.u32 %v1653, 7
    %v1655 = vsub.s32 2, %v1654
    %v1656 = vrot.slane %v1023, %v1655
    %v1657 = vlaneseq
    %v1658 = vshrl.u32 %v1657, 7
    %v1659 = vsub.s32 3, %v1658
    %v1660 = vrot.slane %v1023, %v1659
    %v1661 = vlaneseq
    %v1662 = vshrl.u32 %v1661, 7
    %v1663 = vsub.s32 4, %v1662
    %v1664 = vrot.slane %v1023, %v1663
    %v1665 = vlaneseq
    %v1666 = vshrl.u32 %v1665, 7
    %v1667 = vsub.s32 5, %v1666
    %v1668 = vrot.slane %v1023, %v1667
    %v1669 = vlaneseq
    %v1670 = vshrl.u32 %v1669, 7
    %v1671 = vsub.s32 6, %v1670
    %v1672 = vrot.slane %v1023, %v1671
    %v1673 = vlaneseq
    %v1674 = vshrl.u32 %v1673, 7
    %v1675 = vsub.s32 7, %v1674
    %v1676 = vrot.slane %v1023, %v1675
    %v1677 = vlaneseq
    %v1678 = vshrl.u32 %v1677, 7
    %v1679 = vsub.s32 0, %v1678
    %v1680 = vrot.slane %v1024, %v1679
    %v1681 = vlaneseq
    %v1682 = vshrl.u32 %v1681, 7
    %v1683 = vsub.s32 1, %v1682
    %v1684 = vrot.slane %v1024, %v1683
    %v1685 = vlaneseq
    %v1686 = vshrl.u32 %v1685, 7
    %v1687 = vsub.s32 2, %v1686
    %v1688 = vrot.slane %v1024, %v1687
    %v1689 = vlaneseq
    %v1690 = vshrl.u32 %v1689, 7
    %v1691 = vsub.s32 3, %v1690
    %v1692 = vrot.slane %v1024, %v1691
    %v1693 = vlaneseq
    %v1694 = vshrl.u32 %v1693, 7
    %v1695 = vsub.s32 4, %v1694
    %v1696 = vrot.slane %v1024, %v1695
    %v1697 = vlaneseq
    %v1698 = vshrl.u32 %v1697, 7
    %v1699 = vsub.s32 5, %v1698
    %v1700 = vrot.slane %v1024, %v1699
    %v1701 = vlaneseq
    %v1702 = vshrl.u32 %v1701, 7
    %v1703 = vsub.s32 6, %v1702
    %v1704 = vrot.slane %v1024, %v1703
    %v1705 = vlaneseq
    %v1706 = vshrl.u32 %v1705, 7
    %v1707 = vsub.s32 7, %v1706
    %v1708 = vrot.slane %v1024, %v1707
    %v1709 = vlaneseq
    %v1710 = vshrl.u32 %v1709, 7
    %v1711 = vsub.s32 0, %v1710
    %v1712 = vrot.slane %v1025, %v1711
    %v1713 = vlaneseq
    %v1714 = vshrl.u32 %v1713, 7
    %v1715 = vsub.s32 1, %v1714
    %v1716 = vrot.slane %v1025, %v1715
    %v1717 = vlaneseq
    %v1718 = vshrl.u32 %v1717, 7
    %v1719 = vsub.s32 2, %v1718
    %v1720 = vrot.slane %v1025, %v1719
    %v1721 = vlaneseq
    %v1722 = vshrl.u32 %v1721, 7
    %v1723 = vsub.s32 3, %v1722
    %v1724 = vrot.slane %v1025, %v1723
    %v1725 = vlaneseq
    %v1726 = vshrl.u32 %v1725, 7
    %v1727 = vsub.s32 4, %v1726
    %v1728 = vrot.slane %v1025, %v1727
    %v1729 = vlaneseq
    %v1730 = vshrl.u32 %v1729, 7
    %v1731 = vsub.s32 5, %v1730
    %v1732 = vrot.slane %v1025, %v1731
    %v1733 = vlaneseq
    %v1734 = vshrl.u32 %v1733, 7
    %v1735 = vsub.s32 6, %v1734
    %v1736 = vrot.slane %v1025, %v1735
    %v1737 = vlaneseq
    %v1738 = vshrl.u32 %v1737, 7
    %v1739 = vsub.s32 7, %v1738
    %v1740 = vrot.slane %v1025, %v1739
    %v1741 = vlaneseq
    %v1742 = vshrl.u32 %v1741, 7
    %v1743 = vsub.s32 0, %v1742
    %v1744 = vrot.slane %v1026, %v1743
    %v1745 = vlaneseq
    %v1746 = vshrl.u32 %v1745, 7
    %v1747 = vsub.s32 1, %v1746
    %v1748 = vrot.slane %v1026, %v1747
    %v1749 = vlaneseq
    %v1750 = vshrl.u32 %v1749, 7
    %v1751 = vsub.s32 2, %v1750
    %v1752 = vrot.slane %v1026, %v1751
    %v1753 = vlaneseq
    %v1754 = vshrl.u32 %v1753, 7
    %v1755 = vsub.s32 3, %v1754
    %v1756 = vrot.slane %v1026, %v1755
    %v1757 = vlaneseq
    %v1758 = vshrl.u32 %v1757, 7
    %v1759 = vsub.s32 4, %v1758
    %v1760 = vrot.slane %v1026, %v1759
    %v1761 = vlaneseq
    %v1762 = vshrl.u32 %v1761, 7
    %v1763 = vsub.s32 5, %v1762
    %v1764 = vrot.slane %v1026, %v1763
    %v1765 = vlaneseq
    %v1766 = vshrl.u32 %v1765, 7
    %v1767 = vsub.s32 6, %v1766
    %v1768 = vrot.slane %v1026, %v1767
    %v1769 = vlaneseq
    %v1770 = vshrl.u32 %v1769, 7
    %v1771 = vsub.s32 7, %v1770
    %v1772 = vrot.slane %v1026, %v1771
    %v1773 = vlaneseq
    %v1774 = vshrl.u32 %v1773, 7
    %v1775 = vsub.s32 0, %v1774
    %v1776 = vrot.slane %v1027, %v1775
    %v1777 = vlaneseq
    %v1778 = vshrl.u32 %v1777, 7
    %v1779 = vsub.s32 1, %v1778
    %v1780 = vrot.slane %v1027, %v1779
    %v1781 = vlaneseq
    %v1782 = vshrl.u32 %v1781, 7
    %v1783 = vsub.s32 2, %v1782
    %v1784 = vrot.slane %v1027, %v1783
    %v1785 = vlaneseq
    %v1786 = vshrl.u32 %v1785, 7
    %v1787 = vsub.s32 3, %v1786
    %v1788 = vrot.slane %v1027, %v1787
    %v1789 = vlaneseq
    %v1790 = vshrl.u32 %v1789, 7
    %v1791 = vsub.s32 4, %v1790
    %v1792 = vrot.slane %v1027, %v1791
    %v1793 = vlaneseq
    %v1794 = vshrl.u32 %v1793, 7
    %v1795 = vsub.s32 5, %v1794
    %v1796 = vrot.slane %v1027, %v1795
    %v1797 = vlaneseq
    %v1798 = vshrl.u32 %v1797, 7
    %v1799 = vsub.s32 6, %v1798
    %v1800 = vrot.slane %v1027, %v1799
    %v1801 = vlaneseq
    %v1802 = vshrl.u32 %v1801, 7
    %v1803 = vsub.s32 7, %v1802
    %v1804 = vrot.slane %v1027, %v1803
    %v1805 = vlaneseq
    %v1806 = vshrl.u32 %v1805, 7
    %v1807 = vsub.s32 0, %v1806
    %v1808 = vrot.slane %v1028, %v1807
    %v1809 = vlaneseq
    %v1810 = vshrl.u32 %v1809, 7
    %v1811 = vsub.s32 1, %v1810
    %v1812 = vrot.slane %v1028, %v1811
    %v1813 = vlaneseq
    %v1814 = vshrl.u32 %v1813, 7
    %v1815 = vsub.s32 2, %v1814
    %v1816 = vrot.slane %v1028, %v1815
    %v1817 = vlaneseq
    %v1818 = vshrl.u32 %v1817, 7
    %v1819 = vsub.s32 3, %v1818
    %v1820 = vrot.slane %v1028, %v1819
    %v1821 = vlaneseq
    %v1822 = vshrl.u32 %v1821, 7
    %v1823 = vsub.s32 4, %v1822
    %v1824 = vrot.slane %v1028, %v1823
    %v1825 = vlaneseq
    %v1826 = vshrl.u32 %v1825, 7
    %v1827 = vsub.s32 5, %v1826
    %v1828 = vrot.slane %v1028, %v1827
    %v1829 = vlaneseq
    %v1830 = vshrl.u32 %v1829, 7
    %v1831 = vsub.s32 6, %v1830
    %v1832 = vrot.slane %v1028, %v1831
    %v1833 = vlaneseq
    %v1834 = vshrl.u32 %v1833, 7
    %v1835 = vsub.s32 7, %v1834
    %v1836 = vrot.slane %v1028, %v1835
    %v1837 = vlaneseq
    %v1838 = vshrl.u32 %v1837, 7
    %v1839 = vsub.s32 0, %v1838
    %v1840 = vrot.slane %v1029, %v1839
    %v1841 = vlaneseq
    %v1842 = vshrl.u32 %v1841, 7
    %v1843 = vsub.s32 1, %v1842
    %v1844 = vrot.slane %v1029, %v1843
    %v1845 = vlaneseq
    %v1846 = vshrl.u32 %v1845, 7
    %v1847 = vsub.s32 2, %v1846
    %v1848 = vrot.slane %v1029, %v1847
    %v1849 = vlaneseq
    %v1850 = vshrl.u32 %v1849, 7
    %v1851 = vsub.s32 3, %v1850
    %v1852 = vrot.slane %v1029, %v1851
    %v1853 = vlaneseq
    %v1854 = vshrl.u32 %v1853, 7
    %v1855 = vsub.s32 4, %v1854
    %v1856 = vrot.slane %v1029, %v1855
    %v1857 = vlaneseq
    %v1858 = vshrl.u32 %v1857, 7
    %v1859 = vsub.s32 5, %v1858
    %v1860 = vrot.slane %v1029, %v1859
    %v1861 = vlaneseq
    %v1862 = vshrl.u32 %v1861, 7
    %v1863 = vsub.s32 6, %v1862
    %v1864 = vrot.slane %v1029, %v1863
    %v1865 = vlaneseq
    %v1866 = vshrl.u32 %v1865, 7
    %v1867 = vsub.s32 7, %v1866
    %v1868 = vrot.slane %v1029, %v1867
    %v1869 = vlaneseq
    %v1870 = vshrl.u32 %v1869, 7
    %v1871 = vsub.s32 0, %v1870
    %v1872 = vrot.slane %v1030, %v1871
    %v1873 = vlaneseq
    %v1874 = vshrl.u32 %v1873, 7
    %v1875 = vsub.s32 1, %v1874
    %v1876 = vrot.slane %v1030, %v1875
    %v1877 = vlaneseq
    %v1878 = vshrl.u32 %v1877, 7
    %v1879 = vsub.s32 2, %v1878
    %v1880 = vrot.slane %v1030, %v1879
    %v1881 = vlaneseq
    %v1882 = vshrl.u32 %v1881, 7
    %v1883 = vsub.s32 3, %v1882
    %v1884 = vrot.slane %v1030, %v1883
    %v1885 = vlaneseq
    %v1886 = vshrl.u32 %v1885, 7
    %v1887 = vsub.s32 4, %v1886
    %v1888 = vrot.slane %v1030, %v1887
    %v1889 = vlaneseq
    %v1890 = vshrl.u32 %v1889, 7
    %v1891 = vsub.s32 5, %v1890
    %v1892 = vrot.slane %v1030, %v1891
    %v1893 = vlaneseq
    %v1894 = vshrl.u32 %v1893, 7
    %v1895 = vsub.s32 6, %v1894
    %v1896 = vrot.slane %v1030, %v1895
    %v1897 = vlaneseq
    %v1898 = vshrl.u32 %v1897, 7
    %v1899 = vsub.s32 7, %v1898
    %v1900 = vrot.slane %v1030, %v1899
    %v1901 = vlaneseq
    %v1902 = vshrl.u32 %v1901, 7
    %v1903 = vsub.s32 0, %v1902
    %v1904 = vrot.slane %v1031, %v1903
    %v1905 = vlaneseq
    %v1906 = vshrl.u32 %v1905, 7
    %v1907 = vsub.s32 1, %v1906
    %v1908 = vrot.slane %v1031, %v1907
    %v1909 = vlaneseq
    %v1910 = vshrl.u32 %v1909, 7
    %v1911 = vsub.s32 2, %v1910
    %v1912 = vrot.slane %v1031, %v1911
    %v1913 = vlaneseq
    %v1914 = vshrl.u32 %v1913, 7
    %v1915 = vsub.s32 3, %v1914
    %v1916 = vrot.slane %v1031, %v1915
    %v1917 = vlaneseq
    %v1918 = vshrl.u32 %v1917, 7
    %v1919 = vsub.s32 4, %v1918
    %v1920 = vrot.slane %v1031, %v1919
    %v1921 = vlaneseq
    %v1922 = vshrl.u32 %v1921, 7
    %v1923 = vsub.s32 5, %v1922
    %v1924 = vrot.slane %v1031, %v1923
    %v1925 = vlaneseq
    %v1926 = vshrl.u32 %v1925, 7
    %v1927 = vsub.s32 6, %v1926
    %v1928 = vrot.slane %v1031, %v1927
    %v1929 = vlaneseq
    %v1930 = vshrl.u32 %v1929, 7
    %v1931 = vsub.s32 7, %v1930
    %v1932 = vrot.slane %v1031, %v1931
    %v1933 = vlaneseq
    %v1934 = vshrl.u32 %v1933, 7
    %v1935 = vsub.s32 0, %v1934
    %v1936 = vrot.slane %v1032, %v1935
    %v1937 = vlaneseq
    %v1938 = vshrl.u32 %v1937, 7
    %v1939 = vsub.s32 1, %v1938
    %v1940 = vrot.slane %v1032, %v1939
    %v1941 = vlaneseq
    %v1942 = vshrl.u32 %v1941, 7
    %v1943 = vsub.s32 2, %v1942
    %v1944 = vrot.slane %v1032, %v1943
    %v1945 = vlaneseq
    %v1946 = vshrl.u32 %v1945, 7
    %v1947 = vsub.s32 3, %v1946
    %v1948 = vrot.slane %v1032, %v1947
    %v1949 = vlaneseq
    %v1950 = vshrl.u32 %v1949, 7
    %v1951 = vsub.s32 4, %v1950
    %v1952 = vrot.slane %v1032, %v1951
    %v1953 = vlaneseq
    %v1954 = vshrl.u32 %v1953, 7
    %v1955 = vsub.s32 5, %v1954
    %v1956 = vrot.slane %v1032, %v1955
    %v1957 = vlaneseq
    %v1958 = vshrl.u32 %v1957, 7
    %v1959 = vsub.s32 6, %v1958
    %v1960 = vrot.slane %v1032, %v1959
    %v1961 = vlaneseq
    %v1962 = vshrl.u32 %v1961, 7
    %v1963 = vsub.s32 7, %v1962
    %v1964 = vrot.slane %v1032, %v1963
    %v1965 = vlaneseq
    %v1966 = vshrl.u32 %v1965, 7
    %v1967 = vsub.s32 0, %v1966
    %v1968 = vrot.slane %v1033, %v1967
    %v1969 = vlaneseq
    %v1970 = vshrl.u32 %v1969, 7
    %v1971 = vsub.s32 1, %v1970
    %v1972 = vrot.slane %v1033, %v1971
    %v1973 = vlaneseq
    %v1974 = vshrl.u32 %v1973, 7
    %v1975 = vsub.s32 2, %v1974
    %v1976 = vrot.slane %v1033, %v1975
    %v1977 = vlaneseq
    %v1978 = vshrl.u32 %v1977, 7
    %v1979 = vsub.s32 3, %v1978
    %v1980 = vrot.slane %v1033, %v1979
    %v1981 = vlaneseq
    %v1982 = vshrl.u32 %v1981, 7
    %v1983 = vsub.s32 4, %v1982
    %v1984 = vrot.slane %v1033, %v1983
    %v1985 = vlaneseq
    %v1986 = vshrl.u32 %v1985, 7
    %v1987 = vsub.s32 5, %v1986
    %v1988 = vrot.slane %v1033, %v1987
    %v1989 = vlaneseq
    %v1990 = vshrl.u32 %v1989, 7
    %v1991 = vsub.s32 6, %v1990
    %v1992 = vrot.slane %v1033, %v1991
    %v1993 = vlaneseq
    %v1994 = vshrl.u32 %v1993, 7
    %v1995 = vsub.s32 7, %v1994
    %v1996 = vrot.slane %v1033, %v1995
    %v1997 = vlaneseq
    %v1998 = vshrl.u32 %v1997, 7
    %v1999 = vsub.s32 0, %v1998
    %v2000 = vrot.slane %v1034, %v1999
    %v2001 = vlaneseq
    %v2002 = vshrl.u32 %v2001, 7
    %v2003 = vsub.s32 1, %v2002
    %v2004 = vrot.slane %v1034, %v2003
    %v2005 = vlaneseq
    %v2006 = vshrl.u32 %v2005, 7
    %v2007 = vsub.s32 2, %v2006
    %v2008 = vrot.slane %v1034, %v2007
    %v2009 = vlaneseq
    %v2010 = vshrl.u32 %v2009, 7
    %v2011 = vsub.s32 3, %v2010
    %v2012 = vrot.slane %v1034, %v2011
    %v2013 = vlaneseq
    %v2014 = vshrl.u32 %v2013, 7
    %v2015 = vsub.s32 4, %v2014
    %v2016 = vrot.slane %v1034, %v2015
    %v2017 = vlaneseq
    %v2018 = vshrl.u32 %v2017, 7
    %v2019 = vsub.s32 5, %v2018
    %v2020 = vrot.slane %v1034, %v2019
    %v2021 = vlaneseq
    %v2022 = vshrl.u32 %v2021, 7
    %v2023 = vsub.s32 6, %v2022
    %v2024 = vrot.slane %v1034, %v2023
    %v2025 = vlaneseq
    %v2026 = vshrl.u32 %v2025, 7
    %v2027 = vsub.s32 7, %v2026
    %v2028 = vrot.slane %v1034, %v2027
    %v2029 = vlaneseq
    %v2030 = vshrl.u32 %v2029, 7
    %v2031 = vsub.s32 0, %v2030
    %v2032 = vrot.slane %v1035, %v2031
    %v2033 = vlaneseq
    %v2034 = vshrl.u32 %v2033, 7
    %v2035 = vsub.s32 1, %v2034
    %v2036 = vrot.slane %v1035, %v2035
    %v2037 = vlaneseq
    %v2038 = vshrl.u32 %v2037, 7
    %v2039 = vsub.s32 2, %v2038
    %v2040 = vrot.slane %v1035, %v2039
    %v2041 = vlaneseq
    %v2042 = vshrl.u32 %v2041, 7
    %v2043 = vsub.s32 3, %v2042
    %v2044 = vrot.slane %v1035, %v2043
    %v2045 = vlaneseq
    %v2046 = vshrl.u32 %v2045, 7
    %v2047 = vsub.s32 4, %v2046
    %v2048 = vrot.slane %v1035, %v2047
    %v2049 = vlaneseq
    %v2050 = vshrl.u32 %v2049, 7
    %v2051 = vsub.s32 5, %v2050
    %v2052 = vrot.slane %v1035, %v2051
    %v2053 = vlaneseq
    %v2054 = vshrl.u32 %v2053, 7
    %v2055 = vsub.s32 6, %v2054
    %v2056 = vrot.slane %v1035, %v2055
    %v2057 = vlaneseq
    %v2058 = vshrl.u32 %v2057, 7
    %v2059 = vsub.s32 7, %v2058
    %v2060 = vrot.slane %v1035, %v2059
    %v2061 = vlaneseq
    %v2062 = vshrl.u32 %v2061, 7
    %v2063 = vsub.s32 0, %v2062
    %v2064 = vrot.slane %v1036, %v2063
    %v2065 = vlaneseq
    %v2066 = vshrl.u32 %v2065, 7
    %v2067 = vsub.s32 1, %v2066
    %v2068 = vrot.slane %v1036, %v2067
    %v2069 = vlaneseq
    %v2070 = vshrl.u32 %v2069, 7
    %v2071 = vsub.s32 2, %v2070
    %v2072 = vrot.slane %v1036, %v2071
    %v2073 = vlaneseq
    %v2074 = vshrl.u32 %v2073, 7
    %v2075 = vsub.s32 3, %v2074
    %v2076 = vrot.slane %v1036, %v2075
    %v2077 = vlaneseq
    %v2078 = vshrl.u32 %v2077, 7
    %v2079 = vsub.s32 4, %v2078
    %v2080 = vrot.slane %v1036, %v2079
    %v2081 = vlaneseq
    %v2082 = vshrl.u32 %v2081, 7
    %v2083 = vsub.s32 5, %v2082
    %v2084 = vrot.slane %v1036, %v2083
    %v2085 = vlaneseq
    %v2086 = vshrl.u32 %v2085, 7
    %v2087 = vsub.s32 6, %v2086
    %v2088 = vrot.slane %v1036, %v2087
    %v2089 = vlaneseq
    %v2090 = vshrl.u32 %v2089, 7
    %v2091 = vsub.s32 7, %v2090
    %v2092 = vrot.slane %v1036, %v2091
    %v2093 = vcombine.low %v1072, %v1076
    %v2094 = vcombine.low %v1080, %v1084
    %v2095 = vcombine.low %v1088, %v1092
    %v2096 = vcombine.low %v1096, %v1100
    %v2098 = vunpack.c.l.s4 1966171168
    %v2099 = vunpack.c.0.s8 %v2098
    %v2100 = vlaneseq
    %v2101 = vshrl.u32 %v2100, 7
    %v2102 = vsub.s32 %v2099, %v2101
    %v2103 = vrot.slane %v2093, %v2102
    %v2105 = vunpack.c.l.s4 1966171168
    %v2106 = vunpack.c.0.s8 %v2105
    %v2107 = vlaneseq
    %v2108 = vshrl.u32 %v2107, 7
    %v2109 = vsub.s32 %v2106, %v2108
    %v2110 = vrot.slane %v2094, %v2109
    %v2112 = vunpack.c.l.s4 1966171168
    %v2113 = vunpack.c.0.s8 %v2112
    %v2114 = vlaneseq
    %v2115 = vshrl.u32 %v2114, 7
    %v2116 = vsub.s32 %v2113, %v2115
    %v2117 = vrot.slane %v2095, %v2116
    %v2119 = vunpack.c.l.s4 1966171168
    %v2120 = vunpack.c.0.s8 %v2119
    %v2121 = vlaneseq
    %v2122 = vshrl.u32 %v2121, 7
    %v2123 = vsub.s32 %v2120, %v2122
    %v2124 = vrot.slane %v2096, %v2123
    %v2125 = vcombine.low %v2103, %v2110
    %v2126 = vcombine.low %v2117, %v2124
    %v2128 = vunpack.c.l.s4 1966171168
    %v2129 = vunpack.c.0.s8 %v2128
    %v2130 = vlaneseq
    %v2131 = vshrl.u32 %v2130, 7
    %v2132 = vsub.s32 %v2129, %v2131
    %v2133 = vrot.slane %v2125, %v2132
    %v2135 = vunpack.c.l.s4 1966171168
    %v2136 = vunpack.c.0.s8 %v2135
    %v2137 = vlaneseq
    %v2138 = vshrl.u32 %v2137, 7
    %v2139 = vsub.s32 %v2136, %v2138
    %v2140 = vrot.slane %v2126, %v2139
    %v2141 = vcombine.low %v2133, %v2140
    %v2142 = vcombine.low %v1104, %v1108
    %v2143 = vcombine.low %v1112, %v1116
    %v2144 = vcombine.low %v1120, %v1124
    %v2145 = vcombine.low %v1128, %v1132
    %v2147 = vunpack.c.l.s4 1966171168
    %v2148 = vunpack.c.0.s8 %v2147
    %v2149 = vlaneseq
    %v2150 = vshrl.u32 %v2149, 7
    %v2151 = vsub.s32 %v2148, %v2150
    %v2152 = vrot.slane %v2142, %v2151
    %v2154 = vunpack.c.l.s4 1966171168
    %v2155 = vunpack.c.0.s8 %v2154
    %v2156 = vlaneseq
    %v2157 = vshrl.u32 %v2156, 7
    %v2158 = vsub.s32 %v2155, %v2157
    %v2159 = vrot.slane %v2143, %v2158
    %v2161 = vunpack.c.l.s4 1966171168
    %v2162 = vunpack.c.0.s8 %v2161
    %v2163 = vlaneseq
    %v2164 = vshrl.u32 %v2163, 7
    %v2165 = vsub.s32 %v2162, %v2164
    %v2166 = vrot.slane %v2144, %v2165
    %v2168 = vunpack.c.l.s4 1966171168
    %v2169 = vunpack.c.0.s8 %v2168
    %v2170 = vlaneseq
    %v2171 = vshrl.u32 %v2170, 7
    %v2172 = vsub.s32 %v2169, %v2171
    %v2173 = vrot.slane %v2145, %v2172
    %v2174 = vcombine.low %v2152, %v2159
    %v2175 = vcombine.low %v2166, %v2173
    %v2177 = vunpack.c.l.s4 1966171168
    %v2178 = vunpack.c.0.s8 %v2177
    %v2179 = vlaneseq
    %v2180 = vshrl.u32 %v2179, 7
    %v2181 = vsub.s32 %v2178, %v2180
    %v2182 = vrot.slane %v2174, %v2181
    %v2184 = vunpack.c.l.s4 1966171168
    %v2185 = vunpack.c.0.s8 %v2184
    %v2186 = vlaneseq
    %v2187 = vshrl.u32 %v2186, 7
    %v2188 = vsub.s32 %v2185, %v2187
    %v2189 = vrot.slane %v2175, %v2188
    %v2190 = vcombine.low %v2182, %v2189
    %v2191 = vcombine.low %v1136, %v1140
    %v2192 = vcombine.low %v1144, %v1148
    %v2193 = vcombine.low %v1152, %v1156
    %v2194 = vcombine.low %v1160, %v1164
    %v2196 = vunpack.c.l.s4 1966171168
    %v2197 = vunpack.c.0.s8 %v2196
    %v2198 = vlaneseq
    %v2199 = vshrl.u32 %v2198, 7
    %v2200 = vsub.s32 %v2197, %v2199
    %v2201 = vrot.slane %v2191, %v2200
    %v2203 = vunpack.c.l.s4 1966171168
    %v2204 = vunpack.c.0.s8 %v2203
    %v2205 = vlaneseq
    %v2206 = vshrl.u32 %v2205, 7
    %v2207 = vsub.s32 %v2204, %v2206
    %v2208 = vrot.slane %v2192, %v2207
    %v2210 = vunpack.c.l.s4 1966171168
    %v2211 = vunpack.c.0.s8 %v2210
    %v2212 = vlaneseq
    %v2213 = vshrl.u32 %v2212, 7
    %v2214 = vsub.s32 %v2211, %v2213
    %v2215 = vrot.slane %v2193, %v2214
    %v2217 = vunpack.c.l.s4 1966171168
    %v2218 = vunpack.c.0.s8 %v2217
    %v2219 = vlaneseq
    %v2220 = vshrl.u32 %v2219, 7
    %v2221 = vsub.s32 %v2218, %v2220
    %v2222 = vrot.slane %v2194, %v2221
    %v2223 = vcombine.low %v2201, %v2208
    %v2224 = vcombine.low %v2215, %v2222
    %v2226 = vunpack.c.l.s4 1966171168
    %v2227 = vunpack.c.0.s8 %v2226
    %v2228 = vlaneseq
    %v2229 = vshrl.u32 %v2228, 7
    %v2230 = vsub.s32 %v2227, %v2229
    %v2231 = vrot.slane %v2223, %v2230
    %v2233 = vunpack.c.l.s4 1966171168
    %v2234 = vunpack.c.0.s8 %v2233
    %v2235 = vlaneseq
    %v2236 = vshrl.u32 %v2235, 7
    %v2237 = vsub.s32 %v2234, %v2236
    %v2238 = vrot.slane %v2224, %v2237
    %v2239 = vcombine.low %v2231, %v2238
    %v2240 = vcombine.low %v1168, %v1172
    %v2241 = vcombine.low %v1176, %v1180
    %v2242 = vcombine.low %v1184, %v1188
    %v2243 = vcombine.low %v1192, %v1196
    %v2245 = vunpack.c.l.s4 1966171168
    %v2246 = vunpack.c.0.s8 %v2245
    %v2247 = vlaneseq
    %v2248 = vshrl.u32 %v2247, 7
    %v2249 = vsub.s32 %v2246, %v2248
    %v2250 = vrot.slane %v2240, %v2249
    %v2252 = vunpack.c.l.s4 1966171168
    %v2253 = vunpack.c.0.s8 %v2252
    %v2254 = vlaneseq
    %v2255 = vshrl.u32 %v2254, 7
    %v2256 = vsub.s32 %v2253, %v2255
    %v2257 = vrot.slane %v2241, %v2256
    %v2259 = vunpack.c.l.s4 1966171168
    %v2260 = vunpack.c.0.s8 %v2259
    %v2261 = vlaneseq
    %v2262 = vshrl.u32 %v2261, 7
    %v2263 = vsub.s32 %v2260, %v2262
    %v2264 = vrot.slane %v2242, %v2263
    %v2266 = vunpack.c.l.s4 1966171168
    %v2267 = vunpack.c.0.s8 %v2266
    %v2268 = vlaneseq
    %v2269 = vshrl.u32 %v2268, 7
    %v2270 = vsub.s32 %v2267, %v2269
    %v2271 = vrot.slane %v2243, %v2270
    %v2272 = vcombine.low %v2250, %v2257
    %v2273 = vcombine.low %v2264, %v2271
    %v2275 = vunpack.c.l.s4 1966171168
    %v2276 = vunpack.c.0.s8 %v2275
    %v2277 = vlaneseq
    %v2278 = vshrl.u32 %v2277, 7
    %v2279 = vsub.s32 %v2276, %v2278
    %v2280 = vrot.slane %v2272, %v2279
    %v2282 = vunpack.c.l.s4 1966171168
    %v2283 = vunpack.c.0.s8 %v2282
    %v2284 = vlaneseq
    %v2285 = vshrl.u32 %v2284, 7
    %v2286 = vsub.s32 %v2283, %v2285
    %v2287 = vrot.slane %v2273, %v2286
    %v2288 = vcombine.low %v2280, %v2287
    %v2289 = vcombine.low %v1200, %v1204
    %v2290 = vcombine.low %v1208, %v1212
    %v2291 = vcombine.low %v1216, %v1220
    %v2292 = vcombine.low %v1224, %v1228
    %v2294 = vunpack.c.l.s4 1966171168
    %v2295 = vunpack.c.0.s8 %v2294
    %v2296 = vlaneseq
    %v2297 = vshrl.u32 %v2296, 7
    %v2298 = vsub.s32 %v2295, %v2297
    %v2299 = vrot.slane %v2289, %v2298
    %v2301 = vunpack.c.l.s4 1966171168
    %v2302 = vunpack.c.0.s8 %v2301
    %v2303 = vlaneseq
    %v2304 = vshrl.u32 %v2303, 7
    %v2305 = vsub.s32 %v2302, %v2304
    %v2306 = vrot.slane %v2290, %v2305
    %v2308 = vunpack.c.l.s4 1966171168
    %v2309 = vunpack.c.0.s8 %v2308
    %v2310 = vlaneseq
    %v2311 = vshrl.u32 %v2310, 7
    %v2312 = vsub.s32 %v2309, %v2311
    %v2313 = vrot.slane %v2291, %v2312
    %v2315 = vunpack.c.l.s4 1966171168
    %v2316 = vunpack.c.0.s8 %v2315
    %v2317 = vlaneseq
    %v2318 = vshrl.u32 %v2317, 7
    %v2319 = vsub.s32 %v2316, %v2318
    %v2320 = vrot.slane %v2292, %v2319
    %v2321 = vcombine.low %v2299, %v2306
    %v2322 = vcombine.low %v2313, %v2320
    %v2324 = vunpack.c.l.s4 1966171168
    %v2325 = vunpack.c.0.s8 %v2324
    %v2326 = vlaneseq
    %v2327 = vshrl.u32 %v2326, 7
    %v2328 = vsub.s32 %v2325, %v2327
    %v2329 = vrot.slane %v2321, %v2328
    %v2331 = vunpack.c.l.s4 1966171168
    %v2332 = vunpack.c.0.s8 %v2331
    %v2333 = vlaneseq
    %v2334 = vshrl.u32 %v2333, 7
    %v2335 = vsub.s32 %v2332, %v2334
    %v2336 = vrot.slane %v2322, %v2335
    %v2337 = vcombine.low %v2329, %v2336
    %v2338 = vcombine.low %v1232, %v1236
    %v2339 = vcombine.low %v1240, %v1244
    %v2340 = vcombine.low %v1248, %v1252
    %v2341 = vcombine.low %v1256, %v1260
    %v2343 = vunpack.c.l.s4 1966171168
    %v2344 = vunpack.c.0.s8 %v2343
    %v2345 = vlaneseq
    %v2346 = vshrl.u32 %v2345, 7
    %v2347 = vsub.s32 %v2344, %v2346
    %v2348 = vrot.slane %v2338, %v2347
    %v2350 = vunpack.c.l.s4 1966171168
    %v2351 = vunpack.c.0.s8 %v2350
    %v2352 = vlaneseq
    %v2353 = vshrl.u32 %v2352, 7
    %v2354 = vsub.s32 %v2351, %v2353
    %v2355 = vrot.slane %v2339, %v2354
    %v2357 = vunpack.c.l.s4 1966171168
    %v2358 = vunpack.c.0.s8 %v2357
    %v2359 = vlaneseq
    %v2360 = vshrl.u32 %v2359, 7
    %v2361 = vsub.s32 %v2358, %v2360
    %v2362 = vrot.slane %v2340, %v2361
    %v2364 = vunpack.c.l.s4 1966171168
    %v2365 = vunpack.c.0.s8 %v2364
    %v2366 = vlaneseq
    %v2367 = vshrl.u32 %v2366, 7
    %v2368 = vsub.s32 %v2365, %v2367
    %v2369 = vrot.slane %v2341, %v2368
    %v2370 = vcombine.low %v2348, %v2355
    %v2371 = vcombine.low %v2362, %v2369
    %v2373 = vunpack.c.l.s4 1966171168
    %v2374 = vunpack.c.0.s8 %v2373
    %v2375 = vlaneseq
    %v2376 = vshrl.u32 %v2375, 7
    %v2377 = vsub.s32 %v2374, %v2376
    %v2378 = vrot.slane %v2370, %v2377
    %v2380 = vunpack.c.l.s4 1966171168
    %v2381 = vunpack.c.0.s8 %v2380
    %v2382 = vlaneseq
    %v2383 = vshrl.u32 %v2382, 7
    %v2384 = vsub.s32 %v2381, %v2383
    %v2385 = vrot.slane %v2371, %v2384
    %v2386 = vcombine.low %v2378, %v2385
    %v2387 = vcombine.low %v1264, %v1268
    %v2388 = vcombine.low %v1272, %v1276
    %v2389 = vcombine.low %v1280, %v1284
    %v2390 = vcombine.low %v1288, %v1292
    %v2392 = vunpack.c.l.s4 1966171168
    %v2393 = vunpack.c.0.s8 %v2392
    %v2394 = vlaneseq
    %v2395 = vshrl.u32 %v2394, 7
    %v2396 = vsub.s32 %v2393, %v2395
    %v2397 = vrot.slane %v2387, %v2396
    %v2399 = vunpack.c.l.s4 1966171168
    %v2400 = vunpack.c.0.s8 %v2399
    %v2401 = vlaneseq
    %v2402 = vshrl.u32 %v2401, 7
    %v2403 = vsub.s32 %v2400, %v2402
    %v2404 = vrot.slane %v2388, %v2403
    %v2406 = vunpack.c.l.s4 1966171168
    %v2407 = vunpack.c.0.s8 %v2406
    %v2408 = vlaneseq
    %v2409 = vshrl.u32 %v2408, 7
    %v2410 = vsub.s32 %v2407, %v2409
    %v2411 = vrot.slane %v2389, %v2410
    %v2413 = vunpack.c.l.s4 1966171168
    %v2414 = vunpack.c.0.s8 %v2413
    %v2415 = vlaneseq
    %v2416 = vshrl.u32 %v2415, 7
    %v2417 = vsub.s32 %v2414, %v2416
    %v2418 = vrot.slane %v2390, %v2417
    %v2419 = vcombine.low %v2397, %v2404
    %v2420 = vcombine.low %v2411, %v2418
    %v2422 = vunpack.c.l.s4 1966171168
    %v2423 = vunpack.c.0.s8 %v2422
    %v2424 = vlaneseq
    %v2425 = vshrl.u32 %v2424, 7
    %v2426 = vsub.s32 %v2423, %v2425
    %v2427 = vrot.slane %v2419, %v2426
    %v2429 = vunpack.c.l.s4 1966171168
    %v2430 = vunpack.c.0.s8 %v2429
    %v2431 = vlaneseq
    %v2432 = vshrl.u32 %v2431, 7
    %v2433 = vsub.s32 %v2430, %v2432
    %v2434 = vrot.slane %v2420, %v2433
    %v2435 = vcombine.low %v2427, %v2434
    %v2436 = vcombine.low %v1296, %v1300
    %v2437 = vcombine.low %v1304, %v1308
    %v2438 = vcombine.low %v1312, %v1316
    %v2439 = vcombine.low %v1320, %v1324
    %v2441 = vunpack.c.l.s4 1966171168
    %v2442 = vunpack.c.0.s8 %v2441
    %v2443 = vlaneseq
    %v2444 = vshrl.u32 %v2443, 7
    %v2445 = vsub.s32 %v2442, %v2444
    %v2446 = vrot.slane %v2436, %v2445
    %v2448 = vunpack.c.l.s4 1966171168
    %v2449 = vunpack.c.0.s8 %v2448
    %v2450 = vlaneseq
    %v2451 = vshrl.u32 %v2450, 7
    %v2452 = vsub.s32 %v2449, %v2451
    %v2453 = vrot.slane %v2437, %v2452
    %v2455 = vunpack.c.l.s4 1966171168
    %v2456 = vunpack.c.0.s8 %v2455
    %v2457 = vlaneseq
    %v2458 = vshrl.u32 %v2457, 7
    %v2459 = vsub.s32 %v2456, %v2458
    %v2460 = vrot.slane %v2438, %v2459
    %v2462 = vunpack.c.l.s4 1966171168
    %v2463 = vunpack.c.0.s8 %v2462
    %v2464 = vlaneseq
    %v2465 = vshrl.u32 %v2464, 7
    %v2466 = vsub.s32 %v2463, %v2465
    %v2467 = vrot.slane %v2439, %v2466
    %v2468 = vcombine.low %v2446, %v2453
    %v2469 = vcombine.low %v2460, %v2467
    %v2471 = vunpack.c.l.s4 1966171168
    %v2472 = vunpack.c.0.s8 %v2471
    %v2473 = vlaneseq
    %v2474 = vshrl.u32 %v2473, 7
    %v2475 = vsub.s32 %v2472, %v2474
    %v2476 = vrot.slane %v2468, %v2475
    %v2478 = vunpack.c.l.s4 1966171168
    %v2479 = vunpack.c.0.s8 %v2478
    %v2480 = vlaneseq
    %v2481 = vshrl.u32 %v2480, 7
    %v2482 = vsub.s32 %v2479, %v2481
    %v2483 = vrot.slane %v2469, %v2482
    %v2484 = vcombine.low %v2476, %v2483
    %v2485 = vcombine.low %v1328, %v1332
    %v2486 = vcombine.low %v1336, %v1340
    %v2487 = vcombine.low %v1344, %v1348
    %v2488 = vcombine.low %v1352, %v1356
    %v2490 = vunpack.c.l.s4 1966171168
    %v2491 = vunpack.c.0.s8 %v2490
    %v2492 = vlaneseq
    %v2493 = vshrl.u32 %v2492, 7
    %v2494 = vsub.s32 %v2491, %v2493
    %v2495 = vrot.slane %v2485, %v2494
    %v2497 = vunpack.c.l.s4 1966171168
    %v2498 = vunpack.c.0.s8 %v2497
    %v2499 = vlaneseq
    %v2500 = vshrl.u32 %v2499, 7
    %v2501 = vsub.s32 %v2498, %v2500
    %v2502 = vrot.slane %v2486, %v2501
    %v2504 = vunpack.c.l.s4 1966171168
    %v2505 = vunpack.c.0.s8 %v2504
    %v2506 = vlaneseq
    %v2507 = vshrl.u32 %v2506, 7
    %v2508 = vsub.s32 %v2505, %v2507
    %v2509 = vrot.slane %v2487, %v2508
    %v2511 = vunpack.c.l.s4 1966171168
    %v2512 = vunpack.c.0.s8 %v2511
    %v2513 = vlaneseq
    %v2514 = vshrl.u32 %v2513, 7
    %v2515 = vsub.s32 %v2512, %v2514
    %v2516 = vrot.slane %v2488, %v2515
    %v2517 = vcombine.low %v2495, %v2502
    %v2518 = vcombine.low %v2509, %v2516
    %v2520 = vunpack.c.l.s4 1966171168
    %v2521 = vunpack.c.0.s8 %v2520
    %v2522 = vlaneseq
    %v2523 = vshrl.u32 %v2522, 7
    %v2524 = vsub.s32 %v2521, %v2523
    %v2525 = vrot.slane %v2517, %v2524
    %v2527 = vunpack.c.l.s4 1966171168
    %v2528 = vunpack.c.0.s8 %v2527
    %v2529 = vlaneseq
    %v2530 = vshrl.u32 %v2529, 7
    %v2531 = vsub.s32 %v2528, %v2530
    %v2532 = vrot.slane %v2518, %v2531
    %v2533 = vcombine.low %v2525, %v2532
    %v2534 = vcombine.low %v1360, %v1364
    %v2535 = vcombine.low %v1368, %v1372
    %v2536 = vcombine.low %v1376, %v1380
    %v2537 = vcombine.low %v1384, %v1388
    %v2539 = vunpack.c.l.s4 1966171168
    %v2540 = vunpack.c.0.s8 %v2539
    %v2541 = vlaneseq
    %v2542 = vshrl.u32 %v2541, 7
    %v2543 = vsub.s32 %v2540, %v2542
    %v2544 = vrot.slane %v2534, %v2543
    %v2546 = vunpack.c.l.s4 1966171168
    %v2547 = vunpack.c.0.s8 %v2546
    %v2548 = vlaneseq
    %v2549 = vshrl.u32 %v2548, 7
    %v2550 = vsub.s32 %v2547, %v2549
    %v2551 = vrot.slane %v2535, %v2550
    %v2553 = vunpack.c.l.s4 1966171168
    %v2554 = vunpack.c.0.s8 %v2553
    %v2555 = vlaneseq
    %v2556 = vshrl.u32 %v2555, 7
    %v2557 = vsub.s32 %v2554, %v2556
    %v2558 = vrot.slane %v2536, %v2557
    %v2560 = vunpack.c.l.s4 1966171168
    %v2561 = vunpack.c.0.s8 %v2560
    %v2562 = vlaneseq
    %v2563 = vshrl.u32 %v2562, 7
    %v2564 = vsub.s32 %v2561, %v2563
    %v2565 = vrot.slane %v2537, %v2564
    %v2566 = vcombine.low %v2544, %v2551
    %v2567 = vcombine.low %v2558, %v2565
    %v2569 = vunpack.c.l.s4 1966171168
    %v2570 = vunpack.c.0.s8 %v2569
    %v2571 = vlaneseq
    %v2572 = vshrl.u32 %v2571, 7
    %v2573 = vsub.s32 %v2570, %v2572
    %v2574 = vrot.slane %v2566, %v2573
    %v2576 = vunpack.c.l.s4 1966171168
    %v2577 = vunpack.c.0.s8 %v2576
    %v2578 = vlaneseq
    %v2579 = vshrl.u32 %v2578, 7
    %v2580 = vsub.s32 %v2577, %v2579
    %v2581 = vrot.slane %v2567, %v2580
    %v2582 = vcombine.low %v2574, %v2581
    %v2583 = vcombine.low %v1392, %v1396
    %v2584 = vcombine.low %v1400, %v1404
    %v2585 = vcombine.low %v1408, %v1412
    %v2586 = vcombine.low %v1416, %v1420
    %v2588 = vunpack.c.l.s4 1966171168
    %v2589 = vunpack.c.0.s8 %v2588
    %v2590 = vlaneseq
    %v2591 = vshrl.u32 %v2590, 7
    %v2592 = vsub.s32 %v2589, %v2591
    %v2593 = vrot.slane %v2583, %v2592
    %v2595 = vunpack.c.l.s4 1966171168
    %v2596 = vunpack.c.0.s8 %v2595
    %v2597 = vlaneseq
    %v2598 = vshrl.u32 %v2597, 7
    %v2599 = vsub.s32 %v2596, %v2598
    %v2600 = vrot.slane %v2584, %v2599
    %v2602 = vunpack.c.l.s4 1966171168
    %v2603 = vunpack.c.0.s8 %v2602
    %v2604 = vlaneseq
    %v2605 = vshrl.u32 %v2604, 7
    %v2606 = vsub.s32 %v2603, %v2605
    %v2607 = vrot.slane %v2585, %v2606
    %v2609 = vunpack.c.l.s4 1966171168
    %v2610 = vunpack.c.0.s8 %v2609
    %v2611 = vlaneseq
    %v2612 = vshrl.u32 %v2611, 7
    %v2613 = vsub.s32 %v2610, %v2612
    %v2614 = vrot.slane %v2586, %v2613
    %v2615 = vcombine.low %v2593, %v2600
    %v2616 = vcombine.low %v2607, %v2614
    %v2618 = vunpack.c.l.s4 1966171168
    %v2619 = vunpack.c.0.s8 %v2618
    %v2620 = vlaneseq
    %v2621 = vshrl.u32 %v2620, 7
    %v2622 = vsub.s32 %v2619, %v2621
    %v2623 = vrot.slane %v2615, %v2622
    %v2625 = vunpack.c.l.s4 1966171168
    %v2626 = vunpack.c.0.s8 %v2625
    %v2627 = vlaneseq
    %v2628 = vshrl.u32 %v2627, 7
    %v2629 = vsub.s32 %v2626, %v2628
    %v2630 = vrot.slane %v2616, %v2629
    %v2631 = vcombine.low %v2623, %v2630
    %v2632 = vcombine.low %v1424, %v1428
    %v2633 = vcombine.low %v1432, %v1436
    %v2634 = vcombine.low %v1440, %v1444
    %v2635 = vcombine.low %v1448, %v1452
    %v2637 = vunpack.c.l.s4 1966171168
    %v2638 = vunpack.c.0.s8 %v2637
    %v2639 = vlaneseq
    %v2640 = vshrl.u32 %v2639, 7
    %v2641 = vsub.s32 %v2638, %v2640
    %v2642 = vrot.slane %v2632, %v2641
    %v2644 = vunpack.c.l.s4 1966171168
    %v2645 = vunpack.c.0.s8 %v2644
    %v2646 = vlaneseq
    %v2647 = vshrl.u32 %v2646, 7
    %v2648 = vsub.s32 %v2645, %v2647
    %v2649 = vrot.slane %v2633, %v2648
    %v2651 = vunpack.c.l.s4 1966171168
    %v2652 = vunpack.c.0.s8 %v2651
    %v2653 = vlaneseq
    %v2654 = vshrl.u32 %v2653, 7
    %v2655 = vsub.s32 %v2652, %v2654
    %v2656 = vrot.slane %v2634, %v2655
    %v2658 = vunpack.c.l.s4 1966171168
    %v2659 = vunpack.c.0.s8 %v2658
    %v2660 = vlaneseq
    %v2661 = vshrl.u32 %v2660, 7
    %v2662 = vsub.s32 %v2659, %v2661
    %v2663 = vrot.slane %v2635, %v2662
    %v2664 = vcombine.low %v2642, %v2649
    %v2665 = vcombine.low %v2656, %v2663
    %v2667 = vunpack.c.l.s4 1966171168
    %v2668 = vunpack.c.0.s8 %v2667
    %v2669 = vlaneseq
    %v2670 = vshrl.u32 %v2669, 7
    %v2671 = vsub.s32 %v2668, %v2670
    %v2672 = vrot.slane %v2664, %v2671
    %v2674 = vunpack.c.l.s4 1966171168
    %v2675 = vunpack.c.0.s8 %v2674
    %v2676 = vlaneseq
    %v2677 = vshrl.u32 %v2676, 7
    %v2678 = vsub.s32 %v2675, %v2677
    %v2679 = vrot.slane %v2665, %v2678
    %v2680 = vcombine.low %v2672, %v2679
    %v2681 = vcombine.low %v1456, %v1460
    %v2682 = vcombine.low %v1464, %v1468
    %v2683 = vcombine.low %v1472, %v1476
    %v2684 = vcombine.low %v1480, %v1484
    %v2686 = vunpack.c.l.s4 1966171168
    %v2687 = vunpack.c.0.s8 %v2686
    %v2688 = vlaneseq
    %v2689 = vshrl.u32 %v2688, 7
    %v2690 = vsub.s32 %v2687, %v2689
    %v2691 = vrot.slane %v2681, %v2690
    %v2693 = vunpack.c.l.s4 1966171168
    %v2694 = vunpack.c.0.s8 %v2693
    %v2695 = vlaneseq
    %v2696 = vshrl.u32 %v2695, 7
    %v2697 = vsub.s32 %v2694, %v2696
    %v2698 = vrot.slane %v2682, %v2697
    %v2700 = vunpack.c.l.s4 1966171168
    %v2701 = vunpack.c.0.s8 %v2700
    %v2702 = vlaneseq
    %v2703 = vshrl.u32 %v2702, 7
    %v2704 = vsub.s32 %v2701, %v2703
    %v2705 = vrot.slane %v2683, %v2704
    %v2707 = vunpack.c.l.s4 1966171168
    %v2708 = vunpack.c.0.s8 %v2707
    %v2709 = vlaneseq
    %v2710 = vshrl.u32 %v2709, 7
    %v2711 = vsub.s32 %v2708, %v2710
    %v2712 = vrot.slane %v2684, %v2711
    %v2713 = vcombine.low %v2691, %v2698
    %v2714 = vcombine.low %v2705, %v2712
    %v2716 = vunpack.c.l.s4 1966171168
    %v2717 = vunpack.c.0.s8 %v2716
    %v2718 = vlaneseq
    %v2719 = vshrl.u32 %v2718, 7
    %v2720 = vsub.s32 %v2717, %v2719
    %v2721 = vrot.slane %v2713, %v2720
    %v2723 = vunpack.c.l.s4 1966171168
    %v2724 = vunpack.c.0.s8 %v2723
    %v2725 = vlaneseq
    %v2726 = vshrl.u32 %v2725, 7
    %v2727 = vsub.s32 %v2724, %v2726
    %v2728 = vrot.slane %v2714, %v2727
    %v2729 = vcombine.low %v2721, %v2728
    %v2730 = vcombine.low %v1488, %v1492
    %v2731 = vcombine.low %v1496, %v1500
    %v2732 = vcombine.low %v1504, %v1508
    %v2733 = vcombine.low %v1512, %v1516
    %v2735 = vunpack.c.l.s4 1966171168
    %v2736 = vunpack.c.0.s8 %v2735
    %v2737 = vlaneseq
    %v2738 = vshrl.u32 %v2737, 7
    %v2739 = vsub.s32 %v2736, %v2738
    %v2740 = vrot.slane %v2730, %v2739
    %v2742 = vunpack.c.l.s4 1966171168
    %v2743 = vunpack.c.0.s8 %v2742
    %v2744 = vlaneseq
    %v2745 = vshrl.u32 %v2744, 7
    %v2746 = vsub.s32 %v2743, %v2745
    %v2747 = vrot.slane %v2731, %v2746
    %v2749 = vunpack.c.l.s4 1966171168
    %v2750 = vunpack.c.0.s8 %v2749
    %v2751 = vlaneseq
    %v2752 = vshrl.u32 %v2751, 7
    %v2753 = vsub.s32 %v2750, %v2752
    %v2754 = vrot.slane %v2732, %v2753
    %v2756 = vunpack.c.l.s4 1966171168
    %v2757 = vunpack.c.0.s8 %v2756
    %v2758 = vlaneseq
    %v2759 = vshrl.u32 %v2758, 7
    %v2760 = vsub.s32 %v2757, %v2759
    %v2761 = vrot.slane %v2733, %v2760
    %v2762 = vcombine.low %v2740, %v2747
    %v2763 = vcombine.low %v2754, %v2761
    %v2765 = vunpack.c.l.s4 1966171168
    %v2766 = vunpack.c.0.s8 %v2765
    %v2767 = vlaneseq
    %v2768 = vshrl.u32 %v2767, 7
    %v2769 = vsub.s32 %v2766, %v2768
    %v2770 = vrot.slane %v2762, %v2769
    %v2772 = vunpack.c.l.s4 1966171168
    %v2773 = vunpack.c.0.s8 %v2772
    %v2774 = vlaneseq
    %v2775 = vshrl.u32 %v2774, 7
    %v2776 = vsub.s32 %v2773, %v2775
    %v2777 = vrot.slane %v2763, %v2776
    %v2778 = vcombine.low %v2770, %v2777
    %v2779 = vcombine.low %v1520, %v1524
    %v2780 = vcombine.low %v1528, %v1532
    %v2781 = vcombine.low %v1536, %v1540
    %v2782 = vcombine.low %v1544, %v1548
    %v2784 = vunpack.c.l.s4 1966171168
    %v2785 = vunpack.c.0.s8 %v2784
    %v2786 = vlaneseq
    %v2787 = vshrl.u32 %v2786, 7
    %v2788 = vsub.s32 %v2785, %v2787
    %v2789 = vrot.slane %v2779, %v2788
    %v2791 = vunpack.c.l.s4 1966171168
    %v2792 = vunpack.c.0.s8 %v2791
    %v2793 = vlaneseq
    %v2794 = vshrl.u32 %v2793, 7
    %v2795 = vsub.s32 %v2792, %v2794
    %v2796 = vrot.slane %v2780, %v2795
    %v2798 = vunpack.c.l.s4 1966171168
    %v2799 = vunpack.c.0.s8 %v2798
    %v2800 = vlaneseq
    %v2801 = vshrl.u32 %v2800, 7
    %v2802 = vsub.s32 %v2799, %v2801
    %v2803 = vrot.slane %v2781, %v2802
    %v2805 = vunpack.c.l.s4 1966171168
    %v2806 = vunpack.c.0.s8 %v2805
    %v2807 = vlaneseq
    %v2808 = vshrl.u32 %v2807, 7
    %v2809 = vsub.s32 %v2806, %v2808
    %v2810 = vrot.slane %v2782, %v2809
    %v2811 = vcombine.low %v2789, %v2796
    %v2812 = vcombine.low %v2803, %v2810
    %v2814 = vunpack.c.l.s4 1966171168
    %v2815 = vunpack.c.0.s8 %v2814
    %v2816 = vlaneseq
    %v2817 = vshrl.u32 %v2816, 7
    %v2818 = vsub.s32 %v2815, %v2817
    %v2819 = vrot.slane %v2811, %v2818
    %v2821 = vunpack.c.l.s4 1966171168
    %v2822 = vunpack.c.0.s8 %v2821
    %v2823 = vlaneseq
    %v2824 = vshrl.u32 %v2823, 7
    %v2825 = vsub.s32 %v2822, %v2824
    %v2826 = vrot.slane %v2812, %v2825
    %v2827 = vcombine.low %v2819, %v2826
    %v2828 = vcombine.low %v1552, %v1556
    %v2829 = vcombine.low %v1560, %v1564
    %v2830 = vcombine.low %v1568, %v1572
    %v2831 = vcombine.low %v1576, %v1580
    %v2833 = vunpack.c.l.s4 1966171168
    %v2834 = vunpack.c.0.s8 %v2833
    %v2835 = vlaneseq
    %v2836 = vshrl.u32 %v2835, 7
    %v2837 = vsub.s32 %v2834, %v2836
    %v2838 = vrot.slane %v2828, %v2837
    %v2840 = vunpack.c.l.s4 1966171168
    %v2841 = vunpack.c.0.s8 %v2840
    %v2842 = vlaneseq
    %v2843 = vshrl.u32 %v2842, 7
    %v2844 = vsub.s32 %v2841, %v2843
    %v2845 = vrot.slane %v2829, %v2844
    %v2847 = vunpack.c.l.s4 1966171168
    %v2848 = vunpack.c.0.s8 %v2847
    %v2849 = vlaneseq
    %v2850 = vshrl.u32 %v2849, 7
    %v2851 = vsub.s32 %v2848, %v2850
    %v2852 = vrot.slane %v2830, %v2851
    %v2854 = vunpack.c.l.s4 1966171168
    %v2855 = vunpack.c.0.s8 %v2854
    %v2856 = vlaneseq
    %v2857 = vshrl.u32 %v2856, 7
    %v2858 = vsub.s32 %v2855, %v2857
    %v2859 = vrot.slane %v2831, %v2858
    %v2860 = vcombine.low %v2838, %v2845
    %v2861 = vcombine.low %v2852, %v2859
    %v2863 = vunpack.c.l.s4 1966171168
    %v2864 = vunpack.c.0.s8 %v2863
    %v2865 = vlaneseq
    %v2866 = vshrl.u32 %v2865, 7
    %v2867 = vsub.s32 %v2864, %v2866
    %v2868 = vrot.slane %v2860, %v2867
    %v2870 = vunpack.c.l.s4 1966171168
    %v2871 = vunpack.c.0.s8 %v2870
    %v2872 = vlaneseq
    %v2873 = vshrl.u32 %v2872, 7
    %v2874 = vsub.s32 %v2871, %v2873
    %v2875 = vrot.slane %v2861, %v2874
    %v2876 = vcombine.low %v2868, %v2875
    %v2877 = vcombine.low %v1584, %v1588
    %v2878 = vcombine.low %v1592, %v1596
    %v2879 = vcombine.low %v1600, %v1604
    %v2880 = vcombine.low %v1608, %v1612
    %v2882 = vunpack.c.l.s4 1966171168
    %v2883 = vunpack.c.0.s8 %v2882
    %v2884 = vlaneseq
    %v2885 = vshrl.u32 %v2884, 7
    %v2886 = vsub.s32 %v2883, %v2885
    %v2887 = vrot.slane %v2877, %v2886
    %v2889 = vunpack.c.l.s4 1966171168
    %v2890 = vunpack.c.0.s8 %v2889
    %v2891 = vlaneseq
    %v2892 = vshrl.u32 %v2891, 7
    %v2893 = vsub.s32 %v2890, %v2892
    %v2894 = vrot.slane %v2878, %v2893
    %v2896 = vunpack.c.l.s4 1966171168
    %v2897 = vunpack.c.0.s8 %v2896
    %v2898 = vlaneseq
    %v2899 = vshrl.u32 %v2898, 7
    %v2900 = vsub.s32 %v2897, %v2899
    %v2901 = vrot.slane %v2879, %v2900
    %v2903 = vunpack.c.l.s4 1966171168
    %v2904 = vunpack.c.0.s8 %v2903
    %v2905 = vlaneseq
    %v2906 = vshrl.u32 %v2905, 7
    %v2907 = vsub.s32 %v2904, %v2906
    %v2908 = vrot.slane %v2880, %v2907
    %v2909 = vcombine.low %v2887, %v2894
    %v2910 = vcombine.low %v2901, %v2908
    %v2912 = vunpack.c.l.s4 1966171168
    %v2913 = vunpack.c.0.s8 %v2912
    %v2914 = vlaneseq
    %v2915 = vshrl.u32 %v2914, 7
    %v2916 = vsub.s32 %v2913, %v2915
    %v2917 = vrot.slane %v2909, %v2916
    %v2919 = vunpack.c.l.s4 1966171168
    %v2920 = vunpack.c.0.s8 %v2919
    %v2921 = vlaneseq
    %v2922 = vshrl.u32 %v2921, 7
    %v2923 = vsub.s32 %v2920, %v2922
    %v2924 = vrot.slane %v2910, %v2923
    %v2925 = vcombine.low %v2917, %v2924
    %v2926 = vcombine.low %v1616, %v1620
    %v2927 = vcombine.low %v1624, %v1628
    %v2928 = vcombine.low %v1632, %v1636
    %v2929 = vcombine.low %v1640, %v1644
    %v2931 = vunpack.c.l.s4 1966171168
    %v2932 = vunpack.c.0.s8 %v2931
    %v2933 = vlaneseq
    %v2934 = vshrl.u32 %v2933, 7
    %v2935 = vsub.s32 %v2932, %v2934
    %v2936 = vrot.slane %v2926, %v2935
    %v2938 = vunpack.c.l.s4 1966171168
    %v2939 = vunpack.c.0.s8 %v2938
    %v2940 = vlaneseq
    %v2941 = vshrl.u32 %v2940, 7
    %v2942 = vsub.s32 %v2939, %v2941
    %v2943 = vrot.slane %v2927, %v2942
    %v2945 = vunpack.c.l.s4 1966171168
    %v2946 = vunpack.c.0.s8 %v2945
    %v2947 = vlaneseq
    %v2948 = vshrl.u32 %v2947, 7
    %v2949 = vsub.s32 %v2946, %v2948
    %v2950 = vrot.slane %v2928, %v2949
    %v2952 = vunpack.c.l.s4 1966171168
    %v2953 = vunpack.c.0.s8 %v2952
    %v2954 = vlaneseq
    %v2955 = vshrl.u32 %v2954, 7
    %v2956 = vsub.s32 %v2953, %v2955
    %v2957 = vrot.slane %v2929, %v2956
    %v2958 = vcombine.low %v2936, %v2943
    %v2959 = vcombine.low %v2950, %v2957
    %v2961 = vunpack.c.l.s4 1966171168
    %v2962 = vunpack.c.0.s8 %v2961
    %v2963 = vlaneseq
    %v2964 = vshrl.u32 %v2963, 7
    %v2965 = vsub.s32 %v2962, %v2964
    %v2966 = vrot.slane %v2958, %v2965
    %v2968 = vunpack.c.l.s4 1966171168
    %v2969 = vunpack.c.0.s8 %v2968
    %v2970 = vlaneseq
    %v2971 = vshrl.u32 %v2970, 7
    %v2972 = vsub.s32 %v2969, %v2971
    %v2973 = vrot.slane %v2959, %v2972
    %v2974 = vcombine.low %v2966, %v2973
    %v2975 = vcombine.low %v1648, %v1652
    %v2976 = vcombine.low %v1656, %v1660
    %v2977 = vcombine.low %v1664, %v1668
    %v2978 = vcombine.low %v1672, %v1676
    %v2980 = vunpack.c.l.s4 1966171168
    %v2981 = vunpack.c.0.s8 %v2980
    %v2982 = vlaneseq
    %v2983 = vshrl.u32 %v2982, 7
    %v2984 = vsub.s32 %v2981, %v2983
    %v2985 = vrot.slane %v2975, %v2984
    %v2987 = vunpack.c.l.s4 1966171168
    %v2988 = vunpack.c.0.s8 %v2987
    %v2989 = vlaneseq
    %v2990 = vshrl.u32 %v2989, 7
    %v2991 = vsub.s32 %v2988, %v2990
    %v2992 = vrot.slane %v2976, %v2991
    %v2994 = vunpack.c.l.s4 1966171168
    %v2995 = vunpack.c.0.s8 %v2994
    %v2996 = vlaneseq
    %v2997 = vshrl.u32 %v2996, 7
    %v2998 = vsub.s32 %v2995, %v2997
    %v2999 = vrot.slane %v2977, %v2998
    %v3001 = vunpack.c.l.s4 1966171168
    %v3002 = vunpack.c.0.s8 %v3001
    %v3003 = vlaneseq
    %v3004 = vshrl.u32 %v3003, 7
    %v3005 = vsub.s32 %v3002, %v3004
    %v3006 = vrot.slane %v2978, %v3005
    %v3007 = vcombine.low %v2985, %v2992
    %v3008 = vcombine.low %v2999, %v3006
    %v3010 = vunpack.c.l.s4 1966171168
    %v3011 = vunpack.c.0.s8 %v3010
    %v3012 = vlaneseq
    %v3013 = vshrl.u32 %v3012, 7
    %v3014 = vsub.s32 %v3011, %v3013
    %v3015 = vrot.slane %v3007, %v3014
    %v3017 = vunpack.c.l.s4 1966171168
    %v3018 = vunpack.c.0.s8 %v3017
    %v3019 = vlaneseq
    %v3020 = vshrl.u32 %v3019, 7
    %v3021 = vsub.s32 %v3018, %v3020
    %v3022 = vrot.slane %v3008, %v3021
    %v3023 = vcombine.low %v3015, %v3022
    %v3024 = vcombine.low %v1680, %v1684
    %v3025 = vcombine.low %v1688, %v1692
    %v3026 = vcombine.low %v1696, %v1700
    %v3027 = vcombine.low %v1704, %v1708
    %v3029 = vunpack.c.l.s4 1966171168
    %v3030 = vunpack.c.0.s8 %v3029
    %v3031 = vlaneseq
    %v3032 = vshrl.u32 %v3031, 7
    %v3033 = vsub.s32 %v3030, %v3032
    %v3034 = vrot.slane %v3024, %v3033
    %v3036 = vunpack.c.l.s4 1966171168
    %v3037 = vunpack.c.0.s8 %v3036
    %v3038 = vlaneseq
    %v3039 = vshrl.u32 %v3038, 7
    %v3040 = vsub.s32 %v3037, %v3039
    %v3041 = vrot.slane %v3025, %v3040
    %v3043 = vunpack.c.l.s4 1966171168
    %v3044 = vunpack.c.0.s8 %v3043
    %v3045 = vlaneseq
    %v3046 = vshrl.u32 %v3045, 7
    %v3047 = vsub.s32 %v3044, %v3046
    %v3048 = vrot.slane %v3026, %v3047
    %v3050 = vunpack.c.l.s4 1966171168
    %v3051 = vunpack.c.0.s8 %v3050
    %v3052 = vlaneseq
    %v3053 = vshrl.u32 %v3052, 7
    %v3054 = vsub.s32 %v3051, %v3053
    %v3055 = vrot.slane %v3027, %v3054
    %v3056 = vcombine.low %v3034, %v3041
    %v3057 = vcombine.low %v3048, %v3055
    %v3059 = vunpack.c.l.s4 1966171168
    %v3060 = vunpack.c.0.s8 %v3059
    %v3061 = vlaneseq
    %v3062 = vshrl.u32 %v3061, 7
    %v3063 = vsub.s32 %v3060, %v3062
    %v3064 = vrot.slane %v3056, %v3063
    %v3066 = vunpack.c.l.s4 1966171168
    %v3067 = vunpack.c.0.s8 %v3066
    %v3068 = vlaneseq
    %v3069 = vshrl.u32 %v3068, 7
    %v3070 = vsub.s32 %v3067, %v3069
    %v3071 = vrot.slane %v3057, %v3070
    %v3072 = vcombine.low %v3064, %v3071
    %v3073 = vcombine.low %v1712, %v1716
    %v3074 = vcombine.low %v1720, %v1724
    %v3075 = vcombine.low %v1728, %v1732
    %v3076 = vcombine.low %v1736, %v1740
    %v3078 = vunpack.c.l.s4 1966171168
    %v3079 = vunpack.c.0.s8 %v3078
    %v3080 = vlaneseq
    %v3081 = vshrl.u32 %v3080, 7
    %v3082 = vsub.s32 %v3079, %v3081
    %v3083 = vrot.slane %v3073, %v3082
    %v3085 = vunpack.c.l.s4 1966171168
    %v3086 = vunpack.c.0.s8 %v3085
    %v3087 = vlaneseq
    %v3088 = vshrl.u32 %v3087, 7
    %v3089 = vsub.s32 %v3086, %v3088
    %v3090 = vrot.slane %v3074, %v3089
    %v3092 = vunpack.c.l.s4 1966171168
    %v3093 = vunpack.c.0.s8 %v3092
    %v3094 = vlaneseq
    %v3095 = vshrl.u32 %v3094, 7
    %v3096 = vsub.s32 %v3093, %v3095
    %v3097 = vrot.slane %v3075, %v3096
    %v3099 = vunpack.c.l.s4 1966171168
    %v3100 = vunpack.c.0.s8 %v3099
    %v3101 = vlaneseq
    %v3102 = vshrl.u32 %v3101, 7
    %v3103 = vsub.s32 %v3100, %v3102
    %v3104 = vrot.slane %v3076, %v3103
    %v3105 = vcombine.low %v3083, %v3090
    %v3106 = vcombine.low %v3097, %v3104
    %v3108 = vunpack.c.l.s4 1966171168
    %v3109 = vunpack.c.0.s8 %v3108
    %v3110 = vlaneseq
    %v3111 = vshrl.u32 %v3110, 7
    %v3112 = vsub.s32 %v3109, %v3111
    %v3113 = vrot.slane %v3105, %v3112
    %v3115 = vunpack.c.l.s4 1966171168
    %v3116 = vunpack.c.0.s8 %v3115
    %v3117 = vlaneseq
    %v3118 = vshrl.u32 %v3117, 7
    %v3119 = vsub.s32 %v3116, %v3118
    %v3120 = vrot.slane %v3106, %v3119
    %v3121 = vcombine.low %v3113, %v3120
    %v3122 = vcombine.low %v1744, %v1748
    %v3123 = vcombine.low %v1752, %v1756
    %v3124 = vcombine.low %v1760, %v1764
    %v3125 = vcombine.low %v1768, %v1772
    %v3127 = vunpack.c.l.s4 1966171168
    %v3128 = vunpack.c.0.s8 %v3127
    %v3129 = vlaneseq
    %v3130 = vshrl.u32 %v3129, 7
    %v3131 = vsub.s32 %v3128, %v3130
    %v3132 = vrot.slane %v3122, %v3131
    %v3134 = vunpack.c.l.s4 1966171168
    %v3135 = vunpack.c.0.s8 %v3134
    %v3136 = vlaneseq
    %v3137 = vshrl.u32 %v3136, 7
    %v3138 = vsub.s32 %v3135, %v3137
    %v3139 = vrot.slane %v3123, %v3138
    %v3141 = vunpack.c.l.s4 1966171168
    %v3142 = vunpack.c.0.s8 %v3141
    %v3143 = vlaneseq
    %v3144 = vshrl.u32 %v3143, 7
    %v3145 = vsub.s32 %v3142, %v3144
    %v3146 = vrot.slane %v3124, %v3145
    %v3148 = vunpack.c.l.s4 1966171168
    %v3149 = vunpack.c.0.s8 %v3148
    %v3150 = vlaneseq
    %v3151 = vshrl.u32 %v3150, 7
    %v3152 = vsub.s32 %v3149, %v3151
    %v3153 = vrot.slane %v3125, %v3152
    %v3154 = vcombine.low %v3132, %v3139
    %v3155 = vcombine.low %v3146, %v3153
    %v3157 = vunpack.c.l.s4 1966171168
    %v3158 = vunpack.c.0.s8 %v3157
    %v3159 = vlaneseq
    %v3160 = vshrl.u32 %v3159, 7
    %v3161 = vsub.s32 %v3158, %v3160
    %v3162 = vrot.slane %v3154, %v3161
    %v3164 = vunpack.c.l.s4 1966171168
    %v3165 = vunpack.c.0.s8 %v3164
    %v3166 = vlaneseq
    %v3167 = vshrl.u32 %v3166, 7
    %v3168 = vsub.s32 %v3165, %v3167
    %v3169 = vrot.slane %v3155, %v3168
    %v3170 = vcombine.low %v3162, %v3169
    %v3171 = vcombine.low %v1776, %v1780
    %v3172 = vcombine.low %v1784, %v1788
    %v3173 = vcombine.low %v1792, %v1796
    %v3174 = vcombine.low %v1800, %v1804
    %v3176 = vunpack.c.l.s4 1966171168
    %v3177 = vunpack.c.0.s8 %v3176
    %v3178 = vlaneseq
    %v3179 = vshrl.u32 %v3178, 7
    %v3180 = vsub.s32 %v3177, %v3179
    %v3181 = vrot.slane %v3171, %v3180
    %v3183 = vunpack.c.l.s4 1966171168
    %v3184 = vunpack.c.0.s8 %v3183
    %v3185 = vlaneseq
    %v3186 = vshrl.u32 %v3185, 7
    %v3187 = vsub.s32 %v3184, %v3186
    %v3188 = vrot.slane %v3172, %v3187
    %v3190 = vunpack.c.l.s4 1966171168
    %v3191 = vunpack.c.0.s8 %v3190
    %v3192 = vlaneseq
    %v3193 = vshrl.u32 %v3192, 7
    %v3194 = vsub.s32 %v3191, %v3193
    %v3195 = vrot.slane %v3173, %v3194
    %v3197 = vunpack.c.l.s4 1966171168
    %v3198 = vunpack.c.0.s8 %v3197
    %v3199 = vlaneseq
    %v3200 = vshrl.u32 %v3199, 7
    %v3201 = vsub.s32 %v3198, %v3200
    %v3202 = vrot.slane %v3174, %v3201
    %v3203 = vcombine.low %v3181, %v3188
    %v3204 = vcombine.low %v3195, %v3202
    %v3206 = vunpack.c.l.s4 1966171168
    %v3207 = vunpack.c.0.s8 %v3206
    %v3208 = vlaneseq
    %v3209 = vshrl.u32 %v3208, 7
    %v3210 = vsub.s32 %v3207, %v3209
    %v3211 = vrot.slane %v3203, %v3210
    %v3213 = vunpack.c.l.s4 1966171168
    %v3214 = vunpack.c.0.s8 %v3213
    %v3215 = vlaneseq
    %v3216 = vshrl.u32 %v3215, 7
    %v3217 = vsub.s32 %v3214, %v3216
    %v3218 = vrot.slane %v3204, %v3217
    %v3219 = vcombine.low %v3211, %v3218
    %v3220 = vcombine.low %v1808, %v1812
    %v3221 = vcombine.low %v1816, %v1820
    %v3222 = vcombine.low %v1824, %v1828
    %v3223 = vcombine.low %v1832, %v1836
    %v3225 = vunpack.c.l.s4 1966171168
    %v3226 = vunpack.c.0.s8 %v3225
    %v3227 = vlaneseq
    %v3228 = vshrl.u32 %v3227, 7
    %v3229 = vsub.s32 %v3226, %v3228
    %v3230 = vrot.slane %v3220, %v3229
    %v3232 = vunpack.c.l.s4 1966171168
    %v3233 = vunpack.c.0.s8 %v3232
    %v3234 = vlaneseq
    %v3235 = vshrl.u32 %v3234, 7
    %v3236 = vsub.s32 %v3233, %v3235
    %v3237 = vrot.slane %v3221, %v3236
    %v3239 = vunpack.c.l.s4 1966171168
    %v3240 = vunpack.c.0.s8 %v3239
    %v3241 = vlaneseq
    %v3242 = vshrl.u32 %v3241, 7
    %v3243 = vsub.s32 %v3240, %v3242
    %v3244 = vrot.slane %v3222, %v3243
    %v3246 = vunpack.c.l.s4 1966171168
    %v3247 = vunpack.c.0.s8 %v3246
    %v3248 = vlaneseq
    %v3249 = vshrl.u32 %v3248, 7
    %v3250 = vsub.s32 %v3247, %v3249
    %v3251 = vrot.slane %v3223, %v3250
    %v3252 = vcombine.low %v3230, %v3237
    %v3253 = vcombine.low %v3244, %v3251
    %v3255 = vunpack.c.l.s4 1966171168
    %v3256 = vunpack.c.0.s8 %v3255
    %v3257 = vlaneseq
    %v3258 = vshrl.u32 %v3257, 7
    %v3259 = vsub.s32 %v3256, %v3258
    %v3260 = vrot.slane %v3252, %v3259
    %v3262 = vunpack.c.l.s4 1966171168
    %v3263 = vunpack.c.0.s8 %v3262
    %v3264 = vlaneseq
    %v3265 = vshrl.u32 %v3264, 7
    %v3266 = vsub.s32 %v3263, %v3265
    %v3267 = vrot.slane %v3253, %v3266
    %v3268 = vcombine.low %v3260, %v3267
    %v3269 = vcombine.low %v1840, %v1844
    %v3270 = vcombine.low %v1848, %v1852
    %v3271 = vcombine.low %v1856, %v1860
    %v3272 = vcombine.low %v1864, %v1868
    %v3274 = vunpack.c.l.s4 1966171168
    %v3275 = vunpack.c.0.s8 %v3274
    %v3276 = vlaneseq
    %v3277 = vshrl.u32 %v3276, 7
    %v3278 = vsub.s32 %v3275, %v3277
    %v3279 = vrot.slane %v3269, %v3278
    %v3281 = vunpack.c.l.s4 1966171168
    %v3282 = vunpack.c.0.s8 %v3281
    %v3283 = vlaneseq
    %v3284 = vshrl.u32 %v3283, 7
    %v3285 = vsub.s32 %v3282, %v3284
    %v3286 = vrot.slane %v3270, %v3285
    %v3288 = vunpack.c.l.s4 1966171168
    %v3289 = vunpack.c.0.s8 %v3288
    %v3290 = vlaneseq
    %v3291 = vshrl.u32 %v3290, 7
    %v3292 = vsub.s32 %v3289, %v3291
    %v3293 = vrot.slane %v3271, %v3292
    %v3295 = vunpack.c.l.s4 1966171168
    %v3296 = vunpack.c.0.s8 %v3295
    %v3297 = vlaneseq
    %v3298 = vshrl.u32 %v3297, 7
    %v3299 = vsub.s32 %v3296, %v3298
    %v3300 = vrot.slane %v3272, %v3299
    %v3301 = vcombine.low %v3279, %v3286
    %v3302 = vcombine.low %v3293, %v3300
    %v3304 = vunpack.c.l.s4 1966171168
    %v3305 = vunpack.c.0.s8 %v3304
    %v3306 = vlaneseq
    %v3307 = vshrl.u32 %v3306, 7
    %v3308 = vsub.s32 %v3305, %v3307
    %v3309 = vrot.slane %v3301, %v3308
    %v3311 = vunpack.c.l.s4 1966171168
    %v3312 = vunpack.c.0.s8 %v3311
    %v3313 = vlaneseq
    %v3314 = vshrl.u32 %v3313, 7
    %v3315 = vsub.s32 %v3312, %v3314
    %v3316 = vrot.slane %v3302, %v3315
    %v3317 = vcombine.low %v3309, %v3316
    %v3318 = vcombine.low %v1872, %v1876
    %v3319 = vcombine.low %v1880, %v1884
    %v3320 = vcombine.low %v1888, %v1892
    %v3321 = vcombine.low %v1896, %v1900
    %v3323 = vunpack.c.l.s4 1966171168
    %v3324 = vunpack.c.0.s8 %v3323
    %v3325 = vlaneseq
    %v3326 = vshrl.u32 %v3325, 7
    %v3327 = vsub.s32 %v3324, %v3326
    %v3328 = vrot.slane %v3318, %v3327
    %v3330 = vunpack.c.l.s4 1966171168
    %v3331 = vunpack.c.0.s8 %v3330
    %v3332 = vlaneseq
    %v3333 = vshrl.u32 %v3332, 7
    %v3334 = vsub.s32 %v3331, %v3333
    %v3335 = vrot.slane %v3319, %v3334
    %v3337 = vunpack.c.l.s4 1966171168
    %v3338 = vunpack.c.0.s8 %v3337
    %v3339 = vlaneseq
    %v3340 = vshrl.u32 %v3339, 7
    %v3341 = vsub.s32 %v3338, %v3340
    %v3342 = vrot.slane %v3320, %v3341
    %v3344 = vunpack.c.l.s4 1966171168
    %v3345 = vunpack.c.0.s8 %v3344
    %v3346 = vlaneseq
    %v3347 = vshrl.u32 %v3346, 7
    %v3348 = vsub.s32 %v3345, %v3347
    %v3349 = vrot.slane %v3321, %v3348
    %v3350 = vcombine.low %v3328, %v3335
    %v3351 = vcombine.low %v3342, %v3349
    %v3353 = vunpack.c.l.s4 1966171168
    %v3354 = vunpack.c.0.s8 %v3353
    %v3355 = vlaneseq
    %v3356 = vshrl.u32 %v3355, 7
    %v3357 = vsub.s32 %v3354, %v3356
    %v3358 = vrot.slane %v3350, %v3357
    %v3360 = vunpack.c.l.s4 1966171168
    %v3361 = vunpack.c.0.s8 %v3360
    %v3362 = vlaneseq
    %v3363 = vshrl.u32 %v3362, 7
    %v3364 = vsub.s32 %v3361, %v3363
    %v3365 = vrot.slane %v3351, %v3364
    %v3366 = vcombine.low %v3358, %v3365
    %v3367 = vcombine.low %v1904, %v1908
    %v3368 = vcombine.low %v1912, %v1916
    %v3369 = vcombine.low %v1920, %v1924
    %v3370 = vcombine.low %v1928, %v1932
    %v3372 = vunpack.c.l.s4 1966171168
    %v3373 = vunpack.c.0.s8 %v3372
    %v3374 = vlaneseq
    %v3375 = vshrl.u32 %v3374, 7
    %v3376 = vsub.s32 %v3373, %v3375
    %v3377 = vrot.slane %v3367, %v3376
    %v3379 = vunpack.c.l.s4 1966171168
    %v3380 = vunpack.c.0.s8 %v3379
    %v3381 = vlaneseq
    %v3382 = vshrl.u32 %v3381, 7
    %v3383 = vsub.s32 %v3380, %v3382
    %v3384 = vrot.slane %v3368, %v3383
    %v3386 = vunpack.c.l.s4 1966171168
    %v3387 = vunpack.c.0.s8 %v3386
    %v3388 = vlaneseq
    %v3389 = vshrl.u32 %v3388, 7
    %v3390 = vsub.s32 %v3387, %v3389
    %v3391 = vrot.slane %v3369, %v3390
    %v3393 = vunpack.c.l.s4 1966171168
    %v3394 = vunpack.c.0.s8 %v3393
    %v3395 = vlaneseq
    %v3396 = vshrl.u32 %v3395, 7
    %v3397 = vsub.s32 %v3394, %v3396
    %v3398 = vrot.slane %v3370, %v3397
    %v3399 = vcombine.low %v3377, %v3384
    %v3400 = vcombine.low %v3391, %v3398
    %v3402 = vunpack.c.l.s4 1966171168
    %v3403 = vunpack.c.0.s8 %v3402
    %v3404 = vlaneseq
    %v3405 = vshrl.u32 %v3404, 7
    %v3406 = vsub.s32 %v3403, %v3405
    %v3407 = vrot.slane %v3399, %v3406
    %v3409 = vunpack.c.l.s4 1966171168
    %v3410 = vunpack.c.0.s8 %v3409
    %v3411 = vlaneseq
    %v3412 = vshrl.u32 %v3411, 7
    %v3413 = vsub.s32 %v3410, %v3412
    %v3414 = vrot.slane %v3400, %v3413
    %v3415 = vcombine.low %v3407, %v3414
    %v3416 = vcombine.low %v1936, %v1940
    %v3417 = vcombine.low %v1944, %v1948
    %v3418 = vcombine.low %v1952, %v1956
    %v3419 = vcombine.low %v1960, %v1964
    %v3421 = vunpack.c.l.s4 1966171168
    %v3422 = vunpack.c.0.s8 %v3421
    %v3423 = vlaneseq
    %v3424 = vshrl.u32 %v3423, 7
    %v3425 = vsub.s32 %v3422, %v3424
    %v3426 = vrot.slane %v3416, %v3425
    %v3428 = vunpack.c.l.s4 1966171168
    %v3429 = vunpack.c.0.s8 %v3428
    %v3430 = vlaneseq
    %v3431 = vshrl.u32 %v3430, 7
    %v3432 = vsub.s32 %v3429, %v3431
    %v3433 = vrot.slane %v3417, %v3432
    %v3435 = vunpack.c.l.s4 1966171168
    %v3436 = vunpack.c.0.s8 %v3435
    %v3437 = vlaneseq
    %v3438 = vshrl.u32 %v3437, 7
    %v3439 = vsub.s32 %v3436, %v3438
    %v3440 = vrot.slane %v3418, %v3439
    %v3442 = vunpack.c.l.s4 1966171168
    %v3443 = vunpack.c.0.s8 %v3442
    %v3444 = vlaneseq
    %v3445 = vshrl.u32 %v3444, 7
    %v3446 = vsub.s32 %v3443, %v3445
    %v3447 = vrot.slane %v3419, %v3446
    %v3448 = vcombine.low %v3426, %v3433
    %v3449 = vcombine.low %v3440, %v3447
    %v3451 = vunpack.c.l.s4 1966171168
    %v3452 = vunpack.c.0.s8 %v3451
    %v3453 = vlaneseq
    %v3454 = vshrl.u32 %v3453, 7
    %v3455 = vsub.s32 %v3452, %v3454
    %v3456 = vrot.slane %v3448, %v3455
    %v3458 = vunpack.c.l.s4 1966171168
    %v3459 = vunpack.c.0.s8 %v3458
    %v3460 = vlaneseq
    %v3461 = vshrl.u32 %v3460, 7
    %v3462 = vsub.s32 %v3459, %v3461
    %v3463 = vrot.slane %v3449, %v3462
    %v3464 = vcombine.low %v3456, %v3463
    %v3465 = vcombine.low %v1968, %v1972
    %v3466 = vcombine.low %v1976, %v1980
    %v3467 = vcombine.low %v1984, %v1988
    %v3468 = vcombine.low %v1992, %v1996
    %v3470 = vunpack.c.l.s4 1966171168
    %v3471 = vunpack.c.0.s8 %v3470
    %v3472 = vlaneseq
    %v3473 = vshrl.u32 %v3472, 7
    %v3474 = vsub.s32 %v3471, %v3473
    %v3475 = vrot.slane %v3465, %v3474
    %v3477 = vunpack.c.l.s4 1966171168
    %v3478 = vunpack.c.0.s8 %v3477
    %v3479 = vlaneseq
    %v3480 = vshrl.u32 %v3479, 7
    %v3481 = vsub.s32 %v3478, %v3480
    %v3482 = vrot.slane %v3466, %v3481
    %v3484 = vunpack.c.l.s4 1966171168
    %v3485 = vunpack.c.0.s8 %v3484
    %v3486 = vlaneseq
    %v3487 = vshrl.u32 %v3486, 7
    %v3488 = vsub.s32 %v3485, %v3487
    %v3489 = vrot.slane %v3467, %v3488
    %v3491 = vunpack.c.l.s4 1966171168
    %v3492 = vunpack.c.0.s8 %v3491
    %v3493 = vlaneseq
    %v3494 = vshrl.u32 %v3493, 7
    %v3495 = vsub.s32 %v3492, %v3494
    %v3496 = vrot.slane %v3468, %v3495
    %v3497 = vcombine.low %v3475, %v3482
    %v3498 = vcombine.low %v3489, %v3496
    %v3500 = vunpack.c.l.s4 1966171168
    %v3501 = vunpack.c.0.s8 %v3500
    %v3502 = vlaneseq
    %v3503 = vshrl.u32 %v3502, 7
    %v3504 = vsub.s32 %v3501, %v3503
    %v3505 = vrot.slane %v3497, %v3504
    %v3507 = vunpack.c.l.s4 1966171168
    %v3508 = vunpack.c.0.s8 %v3507
    %v3509 = vlaneseq
    %v3510 = vshrl.u32 %v3509, 7
    %v3511 = vsub.s32 %v3508, %v3510
    %v3512 = vrot.slane %v3498, %v3511
    %v3513 = vcombine.low %v3505, %v3512
    %v3514 = vcombine.low %v2000, %v2004
    %v3515 = vcombine.low %v2008, %v2012
    %v3516 = vcombine.low %v2016, %v2020
    %v3517 = vcombine.low %v2024, %v2028
    %v3519 = vunpack.c.l.s4 1966171168
    %v3520 = vunpack.c.0.s8 %v3519
    %v3521 = vlaneseq
    %v3522 = vshrl.u32 %v3521, 7
    %v3523 = vsub.s32 %v3520, %v3522
    %v3524 = vrot.slane %v3514, %v3523
    %v3526 = vunpack.c.l.s4 1966171168
    %v3527 = vunpack.c.0.s8 %v3526
    %v3528 = vlaneseq
    %v3529 = vshrl.u32 %v3528, 7
    %v3530 = vsub.s32 %v3527, %v3529
    %v3531 = vrot.slane %v3515, %v3530
    %v3533 = vunpack.c.l.s4 1966171168
    %v3534 = vunpack.c.0.s8 %v3533
    %v3535 = vlaneseq
    %v3536 = vshrl.u32 %v3535, 7
    %v3537 = vsub.s32 %v3534, %v3536
    %v3538 = vrot.slane %v3516, %v3537
    %v3540 = vunpack.c.l.s4 1966171168
    %v3541 = vunpack.c.0.s8 %v3540
    %v3542 = vlaneseq
    %v3543 = vshrl.u32 %v3542, 7
    %v3544 = vsub.s32 %v3541, %v3543
    %v3545 = vrot.slane %v3517, %v3544
    %v3546 = vcombine.low %v3524, %v3531
    %v3547 = vcombine.low %v3538, %v3545
    %v3549 = vunpack.c.l.s4 1966171168
    %v3550 = vunpack.c.0.s8 %v3549
    %v3551 = vlaneseq
    %v3552 = vshrl.u32 %v3551, 7
    %v3553 = vsub.s32 %v3550, %v3552
    %v3554 = vrot.slane %v3546, %v3553
    %v3556 = vunpack.c.l.s4 1966171168
    %v3557 = vunpack.c.0.s8 %v3556
    %v3558 = vlaneseq
    %v3559 = vshrl.u32 %v3558, 7
    %v3560 = vsub.s32 %v3557, %v3559
    %v3561 = vrot.slane %v3547, %v3560
    %v3562 = vcombine.low %v3554, %v3561
    %v3563 = vcombine.low %v2032, %v2036
    %v3564 = vcombine.low %v2040, %v2044
    %v3565 = vcombine.low %v2048, %v2052
    %v3566 = vcombine.low %v2056, %v2060
    %v3568 = vunpack.c.l.s4 1966171168
    %v3569 = vunpack.c.0.s8 %v3568
    %v3570 = vlaneseq
    %v3571 = vshrl.u32 %v3570, 7
    %v3572 = vsub.s32 %v3569, %v3571
    %v3573 = vrot.slane %v3563, %v3572
    %v3575 = vunpack.c.l.s4 1966171168
    %v3576 = vunpack.c.0.s8 %v3575
    %v3577 = vlaneseq
    %v3578 = vshrl.u32 %v3577, 7
    %v3579 = vsub.s32 %v3576, %v3578
    %v3580 = vrot.slane %v3564, %v3579
    %v3582 = vunpack.c.l.s4 1966171168
    %v3583 = vunpack.c.0.s8 %v3582
    %v3584 = vlaneseq
    %v3585 = vshrl.u32 %v3584, 7
    %v3586 = vsub.s32 %v3583, %v3585
    %v3587 = vrot.slane %v3565, %v3586
    %v3589 = vunpack.c.l.s4 1966171168
    %v3590 = vunpack.c.0.s8 %v3589
    %v3591 = vlaneseq
    %v3592 = vshrl.u32 %v3591, 7
    %v3593 = vsub.s32 %v3590, %v3592
    %v3594 = vrot.slane %v3566, %v3593
    %v3595 = vcombine.low %v3573, %v3580
    %v3596 = vcombine.low %v3587, %v3594
    %v3598 = vunpack.c.l.s4 1966171168
    %v3599 = vunpack.c.0.s8 %v3598
    %v3600 = vlaneseq
    %v3601 = vshrl.u32 %v3600, 7
    %v3602 = vsub.s32 %v3599, %v3601
    %v3603 = vrot.slane %v3595, %v3602
    %v3605 = vunpack.c.l.s4 1966171168
    %v3606 = vunpack.c.0.s8 %v3605
    %v3607 = vlaneseq
    %v3608 = vshrl.u32 %v3607, 7
    %v3609 = vsub.s32 %v3606, %v3608
    %v3610 = vrot.slane %v3596, %v3609
    %v3611 = vcombine.low %v3603, %v3610
    %v3612 = vcombine.low %v2064, %v2068
    %v3613 = vcombine.low %v2072, %v2076
    %v3614 = vcombine.low %v2080, %v2084
    %v3615 = vcombine.low %v2088, %v2092
    %v3617 = vunpack.c.l.s4 1966171168
    %v3618 = vunpack.c.0.s8 %v3617
    %v3619 = vlaneseq
    %v3620 = vshrl.u32 %v3619, 7
    %v3621 = vsub.s32 %v3618, %v3620
    %v3622 = vrot.slane %v3612, %v3621
    %v3624 = vunpack.c.l.s4 1966171168
    %v3625 = vunpack.c.0.s8 %v3624
    %v3626 = vlaneseq
    %v3627 = vshrl.u32 %v3626, 7
    %v3628 = vsub.s32 %v3625, %v3627
    %v3629 = vrot.slane %v3613, %v3628
    %v3631 = vunpack.c.l.s4 1966171168
    %v3632 = vunpack.c.0.s8 %v3631
    %v3633 = vlaneseq
    %v3634 = vshrl.u32 %v3633, 7
    %v3635 = vsub.s32 %v3632, %v3634
    %v3636 = vrot.slane %v3614, %v3635
    %v3638 = vunpack.c.l.s4 1966171168
    %v3639 = vunpack.c.0.s8 %v3638
    %v3640 = vlaneseq
    %v3641 = vshrl.u32 %v3640, 7
    %v3642 = vsub.s32 %v3639, %v3641
    %v3643 = vrot.slane %v3615, %v3642
    %v3644 = vcombine.low %v3622, %v3629
    %v3645 = vcombine.low %v3636, %v3643
    %v3647 = vunpack.c.l.s4 1966171168
    %v3648 = vunpack.c.0.s8 %v3647
    %v3649 = vlaneseq
    %v3650 = vshrl.u32 %v3649, 7
    %v3651 = vsub.s32 %v3648, %v3650
    %v3652 = vrot.slane %v3644, %v3651
    %v3654 = vunpack.c.l.s4 1966171168
    %v3655 = vunpack.c.0.s8 %v3654
    %v3656 = vlaneseq
    %v3657 = vshrl.u32 %v3656, 7
    %v3658 = vsub.s32 %v3655, %v3657
    %v3659 = vrot.slane %v3645, %v3658
    %v3660 = vcombine.low %v3652, %v3659
    %3661 = vset.pattern.permute.xlu0 0
    %3662 = vperm.xlu0 %3661, %v2141
    %v3663 = vpop.permute.xlu0 %3662
    %3664 = vset.pattern.permute.xlu0 0
    %3665 = vperm.xlu0 %3664, %v2190
    %v3666 = vpop.permute.xlu0 %3665
    %3667 = vset.pattern.permute.xlu0 0
    %3668 = vperm.xlu0 %3667, %v2239
    %v3669 = vpop.permute.xlu0 %3668
    %3670 = vset.pattern.permute.xlu0 0
    %3671 = vperm.xlu0 %3670, %v2288
    %v3672 = vpop.permute.xlu0 %3671
    %3673 = vset.pattern.permute.xlu0 0
    %3674 = vperm.xlu0 %3673, %v2337
    %v3675 = vpop.permute.xlu0 %3674
    %3676 = vset.pattern.permute.xlu0 0
    %3677 = vperm.xlu0 %3676, %v2386
    %v3678 = vpop.permute.xlu0 %3677
    %3679 = vset.pattern.permute.xlu0 0
    %3680 = vperm.xlu0 %3679, %v2435
    %v3681 = vpop.permute.xlu0 %3680
    %3682 = vset.pattern.permute.xlu0 0
    %3683 = vperm.xlu0 %3682, %v2484
    %v3684 = vpop.permute.xlu0 %3683
    %3685 = vset.pattern.permute.xlu0 0
    %3686 = vperm.xlu0 %3685, %v2533
    %v3687 = vpop.permute.xlu0 %3686
    %3688 = vset.pattern.permute.xlu0 0
    %3689 = vperm.xlu0 %3688, %v2582
    %v3690 = vpop.permute.xlu0 %3689
    %3691 = vset.pattern.permute.xlu0 0
    %3692 = vperm.xlu0 %3691, %v2631
    %v3693 = vpop.permute.xlu0 %3692
    %3694 = vset.pattern.permute.xlu0 0
    %3695 = vperm.xlu0 %3694, %v2680
    %v3696 = vpop.permute.xlu0 %3695
    %3697 = vset.pattern.permute.xlu0 0
    %3698 = vperm.xlu0 %3697, %v2729
    %v3699 = vpop.permute.xlu0 %3698
    %3700 = vset.pattern.permute.xlu0 0
    %3701 = vperm.xlu0 %3700, %v2778
    %v3702 = vpop.permute.xlu0 %3701
    %3703 = vset.pattern.permute.xlu0 0
    %3704 = vperm.xlu0 %3703, %v2827
    %v3705 = vpop.permute.xlu0 %3704
    %3706 = vset.pattern.permute.xlu0 0
    %3707 = vperm.xlu0 %3706, %v2876
    %v3708 = vpop.permute.xlu0 %3707
    %3709 = vset.pattern.permute.xlu0 0
    %3710 = vperm.xlu0 %3709, %v2925
    %v3711 = vpop.permute.xlu0 %3710
    %3712 = vset.pattern.permute.xlu0 0
    %3713 = vperm.xlu0 %3712, %v2974
    %v3714 = vpop.permute.xlu0 %3713
    %3715 = vset.pattern.permute.xlu0 0
    %3716 = vperm.xlu0 %3715, %v3023
    %v3717 = vpop.permute.xlu0 %3716
    %3718 = vset.pattern.permute.xlu0 0
    %3719 = vperm.xlu0 %3718, %v3072
    %v3720 = vpop.permute.xlu0 %3719
    %3721 = vset.pattern.permute.xlu0 0
    %3722 = vperm.xlu0 %3721, %v3121
    %v3723 = vpop.permute.xlu0 %3722
    %3724 = vset.pattern.permute.xlu0 0
    %3725 = vperm.xlu0 %3724, %v3170
    %v3726 = vpop.permute.xlu0 %3725
    %3727 = vset.pattern.permute.xlu0 0
    %3728 = vperm.xlu0 %3727, %v3219
    %v3729 = vpop.permute.xlu0 %3728
    %3730 = vset.pattern.permute.xlu0 0
    %3731 = vperm.xlu0 %3730, %v3268
    %v3732 = vpop.permute.xlu0 %3731
    %3733 = vset.pattern.permute.xlu0 0
    %3734 = vperm.xlu0 %3733, %v3317
    %v3735 = vpop.permute.xlu0 %3734
    %3736 = vset.pattern.permute.xlu0 0
    %3737 = vperm.xlu0 %3736, %v3366
    %v3738 = vpop.permute.xlu0 %3737
    %3739 = vset.pattern.permute.xlu0 0
    %3740 = vperm.xlu0 %3739, %v3415
    %v3741 = vpop.permute.xlu0 %3740
    %3742 = vset.pattern.permute.xlu0 0
    %3743 = vperm.xlu0 %3742, %v3464
    %v3744 = vpop.permute.xlu0 %3743
    %3745 = vset.pattern.permute.xlu0 0
    %3746 = vperm.xlu0 %3745, %v3513
    %v3747 = vpop.permute.xlu0 %3746
    %3748 = vset.pattern.permute.xlu0 0
    %3749 = vperm.xlu0 %3748, %v3562
    %v3750 = vpop.permute.xlu0 %3749
    %3751 = vset.pattern.permute.xlu0 0
    %3752 = vperm.xlu0 %3751, %v3611
    %v3753 = vpop.permute.xlu0 %3752
    %3754 = vset.pattern.permute.xlu0 0
    %3755 = vperm.xlu0 %3754, %v3660
    %v3756 = vpop.permute.xlu0 %3755
    %v3757 = vlaneseq
    %v3758 = vand.u32 %v3757, 127
    %v3759 = vlaneseq
    %v3760 = vshrl.u32 %v3759, 7
    %v3761 = vsub.s32 %v3758, %v3760
    %v3762 = vrot.slane %v3663, %v3761
    %v3763 = vadd.s32 %v3758, 4294967288
    %v3764 = vlaneseq
    %v3765 = vshrl.u32 %v3764, 7
    %v3766 = vsub.s32 %v3763, %v3765
    %v3767 = vrot.slane %v3666, %v3766
    %vm3768 = vcmask 130112
    %v3769 = vsel %vm3768, %v3767, %v3762
    %v3770 = vadd.s32 %v3758, 4294967280
    %v3771 = vlaneseq
    %v3772 = vshrl.u32 %v3771, 7
    %v3773 = vsub.s32 %v3770, %v3772
    %v3774 = vrot.slane %v3669, %v3773
    %vm3775 = vcmask 195712
    %v3776 = vsel %vm3775, %v3774, %v3769
    %v3777 = vadd.s32 %v3758, 4294967272
    %v3778 = vlaneseq
    %v3779 = vshrl.u32 %v3778, 7
    %v3780 = vsub.s32 %v3777, %v3779
    %v3781 = vrot.slane %v3672, %v3780
    %vm3782 = vcmask 261312
    %v3783 = vsel %vm3782, %v3781, %v3776
    %v3784 = vadd.s32 %v3758, 4294967264
    %v3785 = vlaneseq
    %v3786 = vshrl.u32 %v3785, 7
    %v3787 = vsub.s32 %v3784, %v3786
    %v3788 = vrot.slane %v3675, %v3787
    %vm3789 = vcmask 326912
    %v3790 = vsel %vm3789, %v3788, %v3783
    %v3791 = vadd.s32 %v3758, 4294967256
    %v3792 = vlaneseq
    %v3793 = vshrl.u32 %v3792, 7
    %v3794 = vsub.s32 %v3791, %v3793
    %v3795 = vrot.slane %v3678, %v3794
    %vm3796 = vcmask 392512
    %v3797 = vsel %vm3796, %v3795, %v3790
    %v3798 = vadd.s32 %v3758, 4294967248
    %v3799 = vlaneseq
    %v3800 = vshrl.u32 %v3799, 7
    %v3801 = vsub.s32 %v3798, %v3800
    %v3802 = vrot.slane %v3681, %v3801
    %vm3803 = vcmask 458112
    %v3804 = vsel %vm3803, %v3802, %v3797
    %v3805 = vadd.s32 %v3758, 4294967240
    %v3806 = vlaneseq
    %v3807 = vshrl.u32 %v3806, 7
    %v3808 = vsub.s32 %v3805, %v3807
    %v3809 = vrot.slane %v3684, %v3808
    %vm3810 = vcmask 523712
    %v3811 = vsel %vm3810, %v3809, %v3804
    %v3812 = vadd.s32 %v3758, 4294967232
    %v3813 = vlaneseq
    %v3814 = vshrl.u32 %v3813, 7
    %v3815 = vsub.s32 %v3812, %v3814
    %v3816 = vrot.slane %v3687, %v3815
    %vm3817 = vcmask 589312
    %v3818 = vsel %vm3817, %v3816, %v3811
    %v3819 = vadd.s32 %v3758, 4294967224
    %v3820 = vlaneseq
    %v3821 = vshrl.u32 %v3820, 7
    %v3822 = vsub.s32 %v3819, %v3821
    %v3823 = vrot.slane %v3690, %v3822
    %vm3824 = vcmask 654912
    %v3825 = vsel %vm3824, %v3823, %v3818
    %v3826 = vadd.s32 %v3758, 4294967216
    %v3827 = vlaneseq
    %v3828 = vshrl.u32 %v3827, 7
    %v3829 = vsub.s32 %v3826, %v3828
    %v3830 = vrot.slane %v3693, %v3829
    %vm3831 = vcmask 720512
    %v3832 = vsel %vm3831, %v3830, %v3825
    %v3833 = vadd.s32 %v3758, 4294967208
    %v3834 = vlaneseq
    %v3835 = vshrl.u32 %v3834, 7
    %v3836 = vsub.s32 %v3833, %v3835
    %v3837 = vrot.slane %v3696, %v3836
    %vm3838 = vcmask 786112
    %v3839 = vsel %vm3838, %v3837, %v3832
    %v3840 = vadd.s32 %v3758, 4294967200
    %v3841 = vlaneseq
    %v3842 = vshrl.u32 %v3841, 7
    %v3843 = vsub.s32 %v3840, %v3842
    %v3844 = vrot.slane %v3699, %v3843
    %vm3845 = vcmask 851712
    %v3846 = vsel %vm3845, %v3844, %v3839
    %v3847 = vadd.s32 %v3758, 4294967192
    %v3848 = vlaneseq
    %v3849 = vshrl.u32 %v3848, 7
    %v3850 = vsub.s32 %v3847, %v3849
    %v3851 = vrot.slane %v3702, %v3850
    %vm3852 = vcmask 917312
    %v3853 = vsel %vm3852, %v3851, %v3846
    %v3854 = vadd.s32 %v3758, 4294967184
    %v3855 = vlaneseq
    %v3856 = vshrl.u32 %v3855, 7
    %v3857 = vsub.s32 %v3854, %v3856
    %v3858 = vrot.slane %v3705, %v3857
    %vm3859 = vcmask 982912
    %v3860 = vsel %vm3859, %v3858, %v3853
    %v3861 = vadd.s32 %v3758, 4294967176
    %v3862 = vlaneseq
    %v3863 = vshrl.u32 %v3862, 7
    %v3864 = vsub.s32 %v3861, %v3863
    %v3865 = vrot.slane %v3708, %v3864
    %vm3866 = vcmask 1048512
    %v3867 = vsel %vm3866, %v3865, %v3860
    %v3868 = vlaneseq
    %v3869 = vshrl.u32 %v3868, 7
    %v3870 = vsub.s32 %v3758, %v3869
    %v3871 = vrot.slane %v3711, %v3870
    %v3872 = vlaneseq
    %v3873 = vshrl.u32 %v3872, 7
    %v3874 = vsub.s32 %v3763, %v3873
    %v3875 = vrot.slane %v3714, %v3874
    %v3876 = vsel %vm3768, %v3875, %v3871
    %v3877 = vlaneseq
    %v3878 = vshrl.u32 %v3877, 7
    %v3879 = vsub.s32 %v3770, %v3878
    %v3880 = vrot.slane %v3717, %v3879
    %v3881 = vsel %vm3775, %v3880, %v3876
    %v3882 = vlaneseq
    %v3883 = vshrl.u32 %v3882, 7
    %v3884 = vsub.s32 %v3777, %v3883
    %v3885 = vrot.slane %v3720, %v3884
    %v3886 = vsel %vm3782, %v3885, %v3881
    %v3887 = vlaneseq
    %v3888 = vshrl.u32 %v3887, 7
    %v3889 = vsub.s32 %v3784, %v3888
    %v3890 = vrot.slane %v3723, %v3889
    %v3891 = vsel %vm3789, %v3890, %v3886
    %v3892 = vlaneseq
    %v3893 = vshrl.u32 %v3892, 7
    %v3894 = vsub.s32 %v3791, %v3893
    %v3895 = vrot.slane %v3726, %v3894
    %v3896 = vsel %vm3796, %v3895, %v3891
    %v3897 = vlaneseq
    %v3898 = vshrl.u32 %v3897, 7
    %v3899 = vsub.s32 %v3798, %v3898
    %v3900 = vrot.slane %v3729, %v3899
    %v3901 = vsel %vm3803, %v3900, %v3896
    %v3902 = vlaneseq
    %v3903 = vshrl.u32 %v3902, 7
    %v3904 = vsub.s32 %v3805, %v3903
    %v3905 = vrot.slane %v3732, %v3904
    %v3906 = vsel %vm3810, %v3905, %v3901
    %v3907 = vlaneseq
    %v3908 = vshrl.u32 %v3907, 7
    %v3909 = vsub.s32 %v3812, %v3908
    %v3910 = vrot.slane %v3735, %v3909
    %v3911 = vsel %vm3817, %v3910, %v3906
    %v3912 = vlaneseq
    %v3913 = vshrl.u32 %v3912, 7
    %v3914 = vsub.s32 %v3819, %v3913
    %v3915 = vrot.slane %v3738, %v3914
    %v3916 = vsel %vm3824, %v3915, %v3911
    %v3917 = vlaneseq
    %v3918 = vshrl.u32 %v3917, 7
    %v3919 = vsub.s32 %v3826, %v3918
    %v3920 = vrot.slane %v3741, %v3919
    %v3921 = vsel %vm3831, %v3920, %v3916
    %v3922 = vlaneseq
    %v3923 = vshrl.u32 %v3922, 7
    %v3924 = vsub.s32 %v3833, %v3923
    %v3925 = vrot.slane %v3744, %v3924
    %v3926 = vsel %vm3838, %v3925, %v3921
    %v3927 = vlaneseq
    %v3928 = vshrl.u32 %v3927, 7
    %v3929 = vsub.s32 %v3840, %v3928
    %v3930 = vrot.slane %v3747, %v3929
    %v3931 = vsel %vm3845, %v3930, %v3926
    %v3932 = vlaneseq
    %v3933 = vshrl.u32 %v3932, 7
    %v3934 = vsub.s32 %v3847, %v3933
    %v3935 = vrot.slane %v3750, %v3934
    %v3936 = vsel %vm3852, %v3935, %v3931
    %v3937 = vlaneseq
    %v3938 = vshrl.u32 %v3937, 7
    %v3939 = vsub.s32 %v3854, %v3938
    %v3940 = vrot.slane %v3753, %v3939
    %v3941 = vsel %vm3859, %v3940, %v3936
    %v3942 = vlaneseq
    %v3943 = vshrl.u32 %v3942, 7
    %v3944 = vsub.s32 %v3861, %v3943
    %v3945 = vrot.slane %v3756, %v3944
    %v3946 = vsel %vm3866, %v3945, %v3941
    %v3947 = vcombine.low %v3867, %v3946
    %v3949 = vunpack.c.l.s4 1966171168
    %v3950 = vunpack.c.0.s8 %v3949
    %v3951 = vlaneseq
    %v3952 = vshrl.u32 %v3951, 7
    %v3953 = vsub.s32 %v3950, %v3952
    %v3954 = vrot.slane %v3947, %v3953
    %v3956 = vunpack.c.l.s4 1966171168
    %v3957 = vunpack.c.0.s8 %v3956
    %v3958 = vlaneseq
    %v3959 = vshrl.u32 %v3958, 7
    %v3960 = vsub.s32 %v3957, %v3959
    %v3961 = vrot.slane %v3954, %v3960
    %v3963 = vlaneseq
    %vm3964 = vcmp.ge.s32.totalorder %v3963, 0
    %vm3965 = vcmp.lt.s32.totalorder %v3963, 256
    %vm3966 = vmand %vm3964, %vm3965
    %3967 = vst.msk [vmem:[#allocation3] sm:$0x3] %vm3966, %v3961
    // Predicated region
    $region30: #{pm25_cnn_forward.1} parent=1 // pred_check
      _
    $region31: #{pm25_cnn_forward.1} parent=1 // pred_check_branch
      %3969 = sbr.rel (0) target = $region33
    $region32: #{pm25_cnn_forward.1} parent=1 // pred_region
      %s3971 = ssub.s32 32, 32
      %3972 = vsyncadd [#allocation4], %s3971
      %s3974 = sshll.u32 [#allocation3], 4
      %s3975 = int_to_ptr.vmem [resolvable:$true] %s3974
      %3977 = dma.vmem_to_hbm [thread:$0]  %s3975, 32, %s7, [#allocation4]
    $region33: #{pm25_cnn_forward.1} parent=1 // pred_fallthru
      _
    // Predicated region
    $region34: #{pm25_cnn_forward.1} parent=1 // pred_check
      _
    $region35: #{pm25_cnn_forward.1} parent=1 // pred_check_branch
      %3979 = sbr.rel (0) target = $region37
    $region36: #{pm25_cnn_forward.1} parent=1 // pred_region
      %3980 = dma.done [#allocation4], 32
    $region37: #{pm25_cnn_forward.1} parent=1 // pred_fallthru
      _
    %3981 = vsyncpa [#allocation4], 1

</llo_original>
